<compile_context>
chip_gen: v6e
topology: v6e:2x2x1
jax: 0.10.0
libtpu: 0.0.40
codegen_flags: <defaults>
</compile_context>

<pallas_src>
import functools

import jax
import jax.numpy as jnp
from jax.experimental import pallas as pl
from jax.experimental.pallas import tpu as pltpu


LATENT_DIM = 2
INPUT_DIM = 784
DEPTH = 3


def _encoder_dimensions(latent_dim=LATENT_DIM, input_dim=INPUT_DIM, depth=DEPTH):
    dim_step = (input_dim - latent_dim) // depth
    return [input_dim - dim_step * k for k in range(depth)]  # [784, 524, 264]


def _round_up(x, m):
    return ((x + m - 1) // m) * m


# ---------------------------------------------------------------------------
# Kernel
# ---------------------------------------------------------------------------
def vae_forward_kernel(
    x_ref, eps_ref,
    e0w_ref, e0b_ref, e1w_ref, e1b_ref,
    mlw_ref, mlb_ref,
    d0w_ref, d0b_ref, d1w_ref, d1b_ref, d2w_ref, d2b_ref,
    recon_ref, ml_ref,
):
    f32 = jnp.float32
    bf16 = jnp.bfloat16

    x = x_ref[...].astype(bf16)   # no-op if the caller already hands bf16

    # ---- encoder: Linear + ReLU x2 (bf16 operands, f32 MXU accumulation) ----
    h = jnp.dot(x, e0w_ref[...], preferred_element_type=f32) + e0b_ref[...]
    h = jnp.maximum(h, 0.0)
    h = jnp.dot(h.astype(bf16), e1w_ref[...], preferred_element_type=f32) + e1b_ref[...]
    h = jnp.maximum(h, 0.0)

    # ---- fused latent heads: one (384, 4) matmul instead of two N=2 passes ----
    ml = jnp.dot(h.astype(bf16), mlw_ref[...], preferred_element_type=f32) + mlb_ref[...]
    mu = ml[:, :LATENT_DIM]
    logvar = ml[:, LATENT_DIM:]

    # ---- reparametrise: z = mu + exp(0.5*logvar) * eps ----
    z = mu + jnp.exp(0.5 * logvar) * eps_ref[...].astype(f32)

    # ---- decoder[0]: K = latent_dim (=2) -> VPU broadcast-FMAs, skip degenerate MXU pass ----
    d0w = d0w_ref[...].astype(f32)          # (L, 384)
    d = d0b_ref[...]                        # (1, 384), broadcasts on first add
    for k in range(LATENT_DIM):             # unrolled at trace time
        d = d + z[:, k:k + 1] * d0w[k:k + 1, :]
    d = jnp.maximum(d, 0.0)

    # ---- decoder[1]: Linear + ReLU, decoder[2]: Linear + Sigmoid ----
    d = jnp.dot(d.astype(bf16), d1w_ref[...], preferred_element_type=f32) + d1b_ref[...]
    d = jnp.maximum(d, 0.0)
    logits = jnp.dot(d.astype(bf16), d2w_ref[...], preferred_element_type=f32) + d2b_ref[...]
    recon = jax.nn.sigmoid(logits)

    recon_ref[...] = recon.astype(recon_ref.dtype)
    ml_ref[...] = ml.astype(ml_ref.dtype)


# ---------------------------------------------------------------------------
# Params: PyTorch-style uniform init (f32, (in,out) weights / (1,out) biases),
# then a one-time pack: fuse latent heads, zero-pad hidden widths to lane
# multiples (524->640, 264->384), cast weights to bf16.  Done OUTSIDE jit.
# ---------------------------------------------------------------------------
def init_vae_params(key, latent_dim=LATENT_DIM, input_dim=INPUT_DIM, depth=DEPTH):
    dims = _encoder_dimensions(latent_dim, input_dim, depth)  # [784, 524, 264]
    layer_shapes = [
        (dims[0], dims[1]),      # encoder[0]
        (dims[1], dims[2]),      # encoder[1]
        (dims[2], latent_dim),   # encoder_mean
        (dims[2], latent_dim),   # encoder_logvar
        (latent_dim, dims[2]),   # decoder[0]
        (dims[2], dims[1]),      # decoder[1]
        (dims[1], dims[0]),      # decoder[2]
    ]
    params = []
    keys = jax.random.split(key, len(layer_shapes))
    for k, (din, dout) in zip(keys, layer_shapes):
        kw, kb = jax.random.split(k)
        bound = 1.0 / float(din) ** 0.5
        w = jax.random.uniform(kw, (din, dout), jnp.float32, -bound, bound)
        b = jax.random.uniform(kb, (1, dout), jnp.float32, -bound, bound)
        params.append((w, b))
    return params


def pack_vae_params(params, latent_dim=LATENT_DIM):
    (e0w, e0b), (e1w, e1b), (mw, mb), (lw, lb), (d0w, d0b), (d1w, d1b), (d2w, d2b) = params
    d0 = e0w.shape[0]                      # 784 (kept unpadded: x / recon layout)
    d1 = e0w.shape[1]                      # 524
    d2 = e1w.shape[1]                      # 264
    d1p, d2p = _round_up(d1, 128), _round_up(d2, 128)   # 640, 384

    def pad(a, shape):
        return jnp.pad(a, [(0, t - s) for s, t in zip(a.shape, shape)])

    # Fuse mean/logvar heads once (hoisted out of the jitted hot path).
    mlw = jnp.concatenate([mw, lw], axis=1)             # (264, 2L)
    mlb = jnp.concatenate([mb, lb], axis=1)              # (1, 2L)

    bf16 = jnp.bfloat16
    packed = (
        pad(e0w, (d0, d1p)).astype(bf16), pad(e0b, (1, d1p)),
        pad(e1w, (d1p, d2p)).astype(bf16), pad(e1b, (1, d2p)),
        pad(mlw, (d2p, 2 * latent_dim)).astype(bf16), mlb,
        pad(d0w, (latent_dim, d2p)).astype(bf16), pad(d0b, (1, d2p)),
        pad(d1w, (d2p, d1p)).astype(bf16), pad(d1b, (1, d1p)),
        pad(d2w, (d1p, d0)).astype(bf16), d2b,
    )
    return tuple(jax.device_put(a) for a in packed)


# ---------------------------------------------------------------------------
# Wrapper
# ---------------------------------------------------------------------------
@functools.partial(jax.jit, static_argnames=("tm", "recon_dtype"))
def vae_forward(x, eps, packed, tm=512, recon_dtype=jnp.bfloat16):
    """x: (B, 784) (or any shape with 784 trailing elements per row, like the torch
    .view(-1, 784)); eps: (B, latent_dim) standard-normal noise."""
    x = x.reshape(-1, INPUT_DIM)
    B = x.shape[0]
    L2 = 2 * LATENT_DIM

    # Batch tiling: no jnp.pad (that was a full extra HBM round-trip of x).  The last
    # block may be ragged; Pallas masks its out-of-range stores and garbage rows are
    # row-local in every op, so they never contaminate valid rows.
    tm = _round_up(tm, 8)
    tm_eff = min(tm, B)
    if B > 8 and pl.cdiv(B, tm_eff) < 2:
        # Ensure >= 2 grid steps so both v7x TensorCores get work (harmless elsewhere).
        tm_eff = _round_up(pl.cdiv(B, 2), 8)
    grid = (pl.cdiv(B, tm_eff),)

    def batch_spec(n):
        return pl.BlockSpec((tm_eff, n), lambda i: (i, 0))

    def const_spec(arr):
        # Weights/biases: same block every grid step -> DMA'd once, stay VMEM-resident.
        return pl.BlockSpec(arr.shape, lambda i: (0, 0))

    in_specs = [batch_spec(INPUT_DIM), batch_spec(LATENT_DIM)] + [const_spec(w) for w in packed]
    out_specs = (batch_spec(INPUT_DIM), batch_spec(L2))
    out_shape = (
        jax.ShapeDtypeStruct((B, INPUT_DIM), recon_dtype),   # recon (bf16 by default)
        jax.ShapeDtypeStruct((B, L2), jnp.float32),          # fused [mu | logvar]
    )

    weight_bytes = sum(int(w.size) * w.dtype.itemsize for w in packed)
    mxu_flops = 2 * B * sum(int(w.shape[0]) * int(w.shape[1]) for w in packed[::2])
    cost = pl.CostEstimate(
        flops=mxu_flops,
        transcendentals=B * (INPUT_DIM + LATENT_DIM),        # sigmoid per pixel + exp per latent
        bytes_accessed=(B * INPUT_DIM * x.dtype.itemsize
                        + B * LATENT_DIM * eps.dtype.itemsize
                        + B * INPUT_DIM * jnp.dtype(recon_dtype).itemsize
                        + B * L2 * 4
                        + weight_bytes),
    )

    recon, ml = pl.pallas_call(
        vae_forward_kernel,
        out_shape=out_shape,
        grid=grid,
        in_specs=in_specs,
        out_specs=out_specs,
        compiler_params=pltpu.CompilerParams(
            dimension_semantics=("parallel",),
            vmem_limit_bytes=(48 << 20) if tm_eff > 512 else (32 << 20),
        ),
        cost_estimate=cost,
    )(x, eps, *packed)

    return recon, ml[:, :LATENT_DIM], ml[:, LATENT_DIM:]


# ---------------------------------------------------------------------------
# Plain-JAX reference (unpadded weights, same bf16-matmul / f32-accum policy)
# ---------------------------------------------------------------------------
def vae_forward_ref(x, eps, params):
    (e0w, e0b), (e1w, e1b), (mw, mb), (lw, lb), (d0w, d0b), (d1w, d1b), (d2w, d2b) = params
    bf16, f32 = jnp.bfloat16, jnp.float32
    x = x.reshape(-1, INPUT_DIM)

    def lin(a, w, b):
        return jnp.dot(a.astype(bf16), w.astype(bf16), preferred_element_type=f32) + b

    h = jnp.maximum(lin(x, e0w, e0b), 0.0)
    h = jnp.maximum(lin(h, e1w, e1b), 0.0)
    mu = lin(h, mw, mb)
    logvar = lin(h, lw, lb)
    z = mu + jnp.exp(0.5 * logvar) * eps
    d0wf = d0w.astype(bf16).astype(f32)
    d = d0b
    for k in range(LATENT_DIM):
        d = d + z[:, k:k + 1] * d0wf[k:k + 1, :]
    d = jnp.maximum(d, 0.0)
    d = jnp.maximum(lin(d, d1w, d1b), 0.0)
    recon = jax.nn.sigmoid(lin(d, d2w, d2b))
    return recon, mu, logvar


if __name__ == "__main__":
    key = jax.random.PRNGKey(0)
    params = init_vae_params(jax.random.fold_in(key, 0))
    packed = pack_vae_params(params)

    # TODO(synk): torch.normal() samples noise inside reparametrise(); here the noise
    # `eps` is an explicit input for determinism (pltpu.prng_* could generate it in-kernel).
    def check(B, tm, recon_dtype):
        kx, ke = jax.random.split(jax.random.fold_in(key, 1000 + B))
        x = jax.random.uniform(kx, (B, INPUT_DIM), jnp.float32)       # images in [0, 1]
        eps = jax.random.normal(ke, (B, LATENT_DIM), jnp.float32)
        recon, mu, logvar = vae_forward(x, eps, packed, tm=tm, recon_dtype=recon_dtype)
        jax.block_until_ready((recon, mu, logvar))
        r_ref, mu_ref, lv_ref = vae_forward_ref(x, eps, params)
        assert recon.shape == (B, INPUT_DIM) and recon.dtype == jnp.dtype(recon_dtype)
        assert mu.shape == (B, LATENT_DIM) and logvar.shape == (B, LATENT_DIM)
        tol = 1e-2 if recon_dtype == jnp.bfloat16 else 1e-3
        assert jnp.allclose(recon.astype(jnp.float32), r_ref, atol=tol, rtol=tol)
        assert jnp.allclose(mu, mu_ref, atol=1e-3, rtol=1e-3)
        assert jnp.allclose(logvar, lv_ref, atol=1e-3, rtol=1e-3)

    check(8, 512, jnp.bfloat16)    # single small tile, default bf16 recon
    check(20, 8, jnp.bfloat16)     # grid=(3,), ragged last block (20 = 2*8 + 4)
    check(16, 512, jnp.float32)    # auto-split into 2 grid steps (v7x), f32 recon path

    print("KERNEL_OK")
</pallas_src>

<mosaic_0001>
module attributes {stable_mosaic.version = 11 : i64} {
  func.func @vae_forward_kernel(%arg0: i32, %arg1: memref<8x784xf32, #tpu.memory_space<vmem>>, %arg2: memref<8x2xf32, #tpu.memory_space<vmem>>, %arg3: memref<784x640xbf16, #tpu.memory_space<vmem>>, %arg4: memref<1x640xf32, #tpu.memory_space<vmem>>, %arg5: memref<640x384xbf16, #tpu.memory_space<vmem>>, %arg6: memref<1x384xf32, #tpu.memory_space<vmem>>, %arg7: memref<384x4xbf16, #tpu.memory_space<vmem>>, %arg8: memref<1x4xf32, #tpu.memory_space<vmem>>, %arg9: memref<2x384xbf16, #tpu.memory_space<vmem>>, %arg10: memref<1x384xf32, #tpu.memory_space<vmem>>, %arg11: memref<384x640xbf16, #tpu.memory_space<vmem>>, %arg12: memref<1x640xf32, #tpu.memory_space<vmem>>, %arg13: memref<640x784xbf16, #tpu.memory_space<vmem>>, %arg14: memref<1x784xf32, #tpu.memory_space<vmem>>, %arg15: memref<8x784xbf16, #tpu.memory_space<vmem>>, %arg16: memref<8x4xf32, #tpu.memory_space<vmem>>) attributes {dimension_semantics = [#tpu.dimension_semantics<parallel>], iteration_bounds = array<i64: 1>, scalar_prefetch = 0 : i64, scratch_operands = 0 : i64, tpu.core_type = #tpu.core_type<tc>, window_params = [{transform_indices = @transform_0, window_bounds = array<i64: 8, 784>}, {transform_indices = @transform_1, window_bounds = array<i64: 8, 2>}, {pipeline_mode = #tpu.pipeline_mode<synchronous>, transform_indices = @transform_2, window_bounds = array<i64: 784, 640>}, {pipeline_mode = #tpu.pipeline_mode<synchronous>, transform_indices = @transform_3, window_bounds = array<i64: 1, 640>}, {pipeline_mode = #tpu.pipeline_mode<synchronous>, transform_indices = @transform_4, window_bounds = array<i64: 640, 384>}, {pipeline_mode = #tpu.pipeline_mode<synchronous>, transform_indices = @transform_5, window_bounds = array<i64: 1, 384>}, {pipeline_mode = #tpu.pipeline_mode<synchronous>, transform_indices = @transform_6, window_bounds = array<i64: 384, 4>}, {pipeline_mode = #tpu.pipeline_mode<synchronous>, transform_indices = @transform_7, window_bounds = array<i64: 1, 4>}, {pipeline_mode = #tpu.pipeline_mode<synchronous>, transform_indices = @transform_8, window_bounds = array<i64: 2, 384>}, {pipeline_mode = #tpu.pipeline_mode<synchronous>, transform_indices = @transform_9, window_bounds = array<i64: 1, 384>}, {pipeline_mode = #tpu.pipeline_mode<synchronous>, transform_indices = @transform_10, window_bounds = array<i64: 384, 640>}, {pipeline_mode = #tpu.pipeline_mode<synchronous>, transform_indices = @transform_11, window_bounds = array<i64: 1, 640>}, {pipeline_mode = #tpu.pipeline_mode<synchronous>, transform_indices = @transform_12, window_bounds = array<i64: 640, 784>}, {pipeline_mode = #tpu.pipeline_mode<synchronous>, transform_indices = @transform_13, window_bounds = array<i64: 1, 784>}, {transform_indices = @transform_14, window_bounds = array<i64: 8, 784>}, {transform_indices = @transform_15, window_bounds = array<i64: 8, 4>}]} {
    %c0 = arith.constant 0 : index
    %c0_0 = arith.constant 0 : index
    %0 = vector.load %arg1[%c0, %c0_0] : memref<8x784xf32, #tpu.memory_space<vmem>>, vector<8x784xf32>
    %1 = arith.truncf %0 : vector<8x784xf32> to vector<8x784xbf16>
    %c0_1 = arith.constant 0 : index
    %c0_2 = arith.constant 0 : index
    %2 = vector.load %arg3[%c0_1, %c0_2] : memref<784x640xbf16, #tpu.memory_space<vmem>>, vector<784x640xbf16>
    %cst = arith.constant dense<0.000000e+00> : vector<8x640xf32>
    %3 = tpu.matmul %1, %2, %cst {dimension_numbers = #tpu.dot_dimension_numbers<[1], [0], [0], [1], [0, 0, 1, 1], [], []>} : vector<8x784xbf16>, vector<784x640xbf16>, vector<8x640xf32> -> vector<8x640xf32>
    %c0_3 = arith.constant 0 : index
    %c0_4 = arith.constant 0 : index
    %4 = vector.load %arg4[%c0_3, %c0_4] : memref<1x640xf32, #tpu.memory_space<vmem>>, vector<1x640xf32>
    %5 = vector.broadcast %4 : vector<1x640xf32> to vector<8x640xf32>
    %6 = arith.addf %3, %5 : vector<8x640xf32>
    %cst_5 = arith.constant 0.000000e+00 : f32
    %7 = vector.broadcast %cst_5 : f32 to vector<8x640xf32>
    %8 = arith.maximumf %6, %7 : vector<8x640xf32>
    %9 = arith.truncf %8 : vector<8x640xf32> to vector<8x640xbf16>
    %c0_6 = arith.constant 0 : index
    %c0_7 = arith.constant 0 : index
    %10 = vector.load %arg5[%c0_6, %c0_7] : memref<640x384xbf16, #tpu.memory_space<vmem>>, vector<640x384xbf16>
    %cst_8 = arith.constant dense<0.000000e+00> : vector<8x384xf32>
    %11 = tpu.matmul %9, %10, %cst_8 {dimension_numbers = #tpu.dot_dimension_numbers<[1], [0], [0], [1], [0, 0, 1, 1], [], []>} : vector<8x640xbf16>, vector<640x384xbf16>, vector<8x384xf32> -> vector<8x384xf32>
    %c0_9 = arith.constant 0 : index
    %c0_10 = arith.constant 0 : index
    %12 = vector.load %arg6[%c0_9, %c0_10] : memref<1x384xf32, #tpu.memory_space<vmem>>, vector<1x384xf32>
    %13 = vector.broadcast %12 : vector<1x384xf32> to vector<8x384xf32>
    %14 = arith.addf %11, %13 : vector<8x384xf32>
    %cst_11 = arith.constant 0.000000e+00 : f32
    %15 = vector.broadcast %cst_11 : f32 to vector<8x384xf32>
    %16 = arith.maximumf %14, %15 : vector<8x384xf32>
    %17 = arith.truncf %16 : vector<8x384xf32> to vector<8x384xbf16>
    %c0_12 = arith.constant 0 : index
    %c0_13 = arith.constant 0 : index
    %18 = vector.load %arg7[%c0_12, %c0_13] : memref<384x4xbf16, #tpu.memory_space<vmem>>, vector<384x4xbf16>
    %cst_14 = arith.constant dense<0.000000e+00> : vector<8x4xf32>
    %19 = tpu.matmul %17, %18, %cst_14 {dimension_numbers = #tpu.dot_dimension_numbers<[1], [0], [0], [1], [0, 0, 1, 1], [], []>} : vector<8x384xbf16>, vector<384x4xbf16>, vector<8x4xf32> -> vector<8x4xf32>
    %c0_15 = arith.constant 0 : index
    %c0_16 = arith.constant 0 : index
    %20 = vector.load %arg8[%c0_15, %c0_16] : memref<1x4xf32, #tpu.memory_space<vmem>>, vector<1x4xf32>
    %21 = vector.broadcast %20 : vector<1x4xf32> to vector<8x4xf32>
    %22 = arith.addf %19, %21 : vector<8x4xf32>
    %23 = vector.extract_strided_slice %22 {offsets = [0, 0], sizes = [8, 2], strides = [1, 1]} : vector<8x4xf32> to vector<8x2xf32>
    %24 = vector.extract_strided_slice %22 {offsets = [0, 2], sizes = [8, 2], strides = [1, 1]} : vector<8x4xf32> to vector<8x2xf32>
    %cst_17 = arith.constant 5.000000e-01 : f32
    %25 = vector.broadcast %cst_17 : f32 to vector<8x2xf32>
    %26 = arith.mulf %25, %24 : vector<8x2xf32>
    %27 = math.exp %26 : vector<8x2xf32>
    %c0_18 = arith.constant 0 : index
    %c0_19 = arith.constant 0 : index
    %28 = vector.load %arg2[%c0_18, %c0_19] : memref<8x2xf32, #tpu.memory_space<vmem>>, vector<8x2xf32>
    %29 = arith.mulf %27, %28 : vector<8x2xf32>
    %30 = arith.addf %23, %29 : vector<8x2xf32>
    %c0_20 = arith.constant 0 : index
    %c0_21 = arith.constant 0 : index
    %31 = vector.load %arg9[%c0_20, %c0_21] : memref<2x384xbf16, #tpu.memory_space<vmem>>, vector<2x384xbf16>
    %32 = arith.extf %31 : vector<2x384xbf16> to vector<2x384xf32>
    %c0_22 = arith.constant 0 : index
    %c0_23 = arith.constant 0 : index
    %33 = vector.load %arg10[%c0_22, %c0_23] : memref<1x384xf32, #tpu.memory_space<vmem>>, vector<1x384xf32>
    %34 = vector.extract_strided_slice %30 {offsets = [0, 0], sizes = [8, 1], strides = [1, 1]} : vector<8x2xf32> to vector<8x1xf32>
    %35 = vector.extract_strided_slice %32 {offsets = [0, 0], sizes = [1, 384], strides = [1, 1]} : vector<2x384xf32> to vector<1x384xf32>
    %36 = vector.broadcast %34 : vector<8x1xf32> to vector<8x384xf32>
    %37 = vector.broadcast %35 : vector<1x384xf32> to vector<8x384xf32>
    %38 = arith.mulf %36, %37 : vector<8x384xf32>
    %39 = vector.broadcast %33 : vector<1x384xf32> to vector<8x384xf32>
    %40 = arith.addf %39, %38 : vector<8x384xf32>
    %41 = vector.extract_strided_slice %30 {offsets = [0, 1], sizes = [8, 1], strides = [1, 1]} : vector<8x2xf32> to vector<8x1xf32>
    %42 = vector.extract_strided_slice %32 {offsets = [1, 0], sizes = [1, 384], strides = [1, 1]} : vector<2x384xf32> to vector<1x384xf32>
    %43 = vector.broadcast %41 : vector<8x1xf32> to vector<8x384xf32>
    %44 = vector.broadcast %42 : vector<1x384xf32> to vector<8x384xf32>
    %45 = arith.mulf %43, %44 : vector<8x384xf32>
    %46 = arith.addf %40, %45 : vector<8x384xf32>
    %cst_24 = arith.constant 0.000000e+00 : f32
    %47 = vector.broadcast %cst_24 : f32 to vector<8x384xf32>
    %48 = arith.maximumf %46, %47 : vector<8x384xf32>
    %49 = arith.truncf %48 : vector<8x384xf32> to vector<8x384xbf16>
    %c0_25 = arith.constant 0 : index
    %c0_26 = arith.constant 0 : index
    %50 = vector.load %arg11[%c0_25, %c0_26] : memref<384x640xbf16, #tpu.memory_space<vmem>>, vector<384x640xbf16>
    %cst_27 = arith.constant dense<0.000000e+00> : vector<8x640xf32>
    %51 = tpu.matmul %49, %50, %cst_27 {dimension_numbers = #tpu.dot_dimension_numbers<[1], [0], [0], [1], [0, 0, 1, 1], [], []>} : vector<8x384xbf16>, vector<384x640xbf16>, vector<8x640xf32> -> vector<8x640xf32>
    %c0_28 = arith.constant 0 : index
    %c0_29 = arith.constant 0 : index
    %52 = vector.load %arg12[%c0_28, %c0_29] : memref<1x640xf32, #tpu.memory_space<vmem>>, vector<1x640xf32>
    %53 = vector.broadcast %52 : vector<1x640xf32> to vector<8x640xf32>
    %54 = arith.addf %51, %53 : vector<8x640xf32>
    %cst_30 = arith.constant 0.000000e+00 : f32
    %55 = vector.broadcast %cst_30 : f32 to vector<8x640xf32>
    %56 = arith.maximumf %54, %55 : vector<8x640xf32>
    %57 = arith.truncf %56 : vector<8x640xf32> to vector<8x640xbf16>
    %c0_31 = arith.constant 0 : index
    %c0_32 = arith.constant 0 : index
    %58 = vector.load %arg13[%c0_31, %c0_32] : memref<640x784xbf16, #tpu.memory_space<vmem>>, vector<640x784xbf16>
    %cst_33 = arith.constant dense<0.000000e+00> : vector<8x784xf32>
    %59 = tpu.matmul %57, %58, %cst_33 {dimension_numbers = #tpu.dot_dimension_numbers<[1], [0], [0], [1], [0, 0, 1, 1], [], []>} : vector<8x640xbf16>, vector<640x784xbf16>, vector<8x784xf32> -> vector<8x784xf32>
    %c0_34 = arith.constant 0 : index
    %c0_35 = arith.constant 0 : index
    %60 = vector.load %arg14[%c0_34, %c0_35] : memref<1x784xf32, #tpu.memory_space<vmem>>, vector<1x784xf32>
    %61 = vector.broadcast %60 : vector<1x784xf32> to vector<8x784xf32>
    %62 = arith.addf %59, %61 : vector<8x784xf32>
    %63 = arith.negf %62 : vector<8x784xf32>
    %64 = math.exp %63 : vector<8x784xf32>
    %cst_36 = arith.constant 1.000000e+00 : f32
    %65 = vector.broadcast %cst_36 : f32 to vector<8x784xf32>
    %66 = arith.addf %65, %64 : vector<8x784xf32>
    %67 = arith.divf %65, %66 : vector<8x784xf32>
    %68 = arith.truncf %67 : vector<8x784xf32> to vector<8x784xbf16>
    %c0_37 = arith.constant 0 : index
    %c0_38 = arith.constant 0 : index
    %69 = vector.load %arg15[%c0_37, %c0_38] : memref<8x784xbf16, #tpu.memory_space<vmem>>, vector<8x784xbf16>
    tpu.vector_store %arg15[%c0_37, %c0_38], %68 {strides = array<i32>} : memref<8x784xbf16, #tpu.memory_space<vmem>>, vector<8x784xbf16>,
    %c0_39 = arith.constant 0 : index
    %c0_40 = arith.constant 0 : index
    %70 = vector.load %arg16[%c0_39, %c0_40] : memref<8x4xf32, #tpu.memory_space<vmem>>, vector<8x4xf32>
    tpu.vector_store %arg16[%c0_39, %c0_40], %22 {strides = array<i32>} : memref<8x4xf32, #tpu.memory_space<vmem>>, vector<8x4xf32>,
    return
  }
  func.func @transform_0(%arg0: i32) -> (i32, i32) {
    %c0_i32 = arith.constant 0 : i32
    %c0_i32_0 = arith.constant 0 : i32
    return %arg0, %c0_i32 : i32, i32
  }
  func.func @transform_1(%arg0: i32) -> (i32, i32) {
    %c0_i32 = arith.constant 0 : i32
    %c0_i32_0 = arith.constant 0 : i32
    return %arg0, %c0_i32 : i32, i32
  }
  func.func @transform_2(%arg0: i32) -> (i32, i32) {
    %c0_i32 = arith.constant 0 : i32
    %c0_i32_0 = arith.constant 0 : i32
    %c0_i32_1 = arith.constant 0 : i32
    return %c0_i32, %c0_i32_0 : i32, i32
  }
  func.func @transform_3(%arg0: i32) -> (i32, i32) {
    %c0_i32 = arith.constant 0 : i32
    %c0_i32_0 = arith.constant 0 : i32
    %c0_i32_1 = arith.constant 0 : i32
    return %c0_i32, %c0_i32_0 : i32, i32
  }
  func.func @transform_4(%arg0: i32) -> (i32, i32) {
    %c0_i32 = arith.constant 0 : i32
    %c0_i32_0 = arith.constant 0 : i32
    %c0_i32_1 = arith.constant 0 : i32
    return %c0_i32, %c0_i32_0 : i32, i32
  }
  func.func @transform_5(%arg0: i32) -> (i32, i32) {
    %c0_i32 = arith.constant 0 : i32
    %c0_i32_0 = arith.constant 0 : i32
    %c0_i32_1 = arith.constant 0 : i32
    return %c0_i32, %c0_i32_0 : i32, i32
  }
  func.func @transform_6(%arg0: i32) -> (i32, i32) {
    %c0_i32 = arith.constant 0 : i32
    %c0_i32_0 = arith.constant 0 : i32
    %c0_i32_1 = arith.constant 0 : i32
    return %c0_i32, %c0_i32_0 : i32, i32
  }
  func.func @transform_7(%arg0: i32) -> (i32, i32) {
    %c0_i32 = arith.constant 0 : i32
    %c0_i32_0 = arith.constant 0 : i32
    %c0_i32_1 = arith.constant 0 : i32
    return %c0_i32, %c0_i32_0 : i32, i32
  }
  func.func @transform_8(%arg0: i32) -> (i32, i32) {
    %c0_i32 = arith.constant 0 : i32
    %c0_i32_0 = arith.constant 0 : i32
    %c0_i32_1 = arith.constant 0 : i32
    return %c0_i32, %c0_i32_0 : i32, i32
  }
  func.func @transform_9(%arg0: i32) -> (i32, i32) {
    %c0_i32 = arith.constant 0 : i32
    %c0_i32_0 = arith.constant 0 : i32
    %c0_i32_1 = arith.constant 0 : i32
    return %c0_i32, %c0_i32_0 : i32, i32
  }
  func.func @transform_10(%arg0: i32) -> (i32, i32) {
    %c0_i32 = arith.constant 0 : i32
    %c0_i32_0 = arith.constant 0 : i32
    %c0_i32_1 = arith.constant 0 : i32
    return %c0_i32, %c0_i32_0 : i32, i32
  }
  func.func @transform_11(%arg0: i32) -> (i32, i32) {
    %c0_i32 = arith.constant 0 : i32
    %c0_i32_0 = arith.constant 0 : i32
    %c0_i32_1 = arith.constant 0 : i32
    return %c0_i32, %c0_i32_0 : i32, i32
  }
  func.func @transform_12(%arg0: i32) -> (i32, i32) {
    %c0_i32 = arith.constant 0 : i32
    %c0_i32_0 = arith.constant 0 : i32
    %c0_i32_1 = arith.constant 0 : i32
    return %c0_i32, %c0_i32_0 : i32, i32
  }
  func.func @transform_13(%arg0: i32) -> (i32, i32) {
    %c0_i32 = arith.constant 0 : i32
    %c0_i32_0 = arith.constant 0 : i32
    %c0_i32_1 = arith.constant 0 : i32
    return %c0_i32, %c0_i32_0 : i32, i32
  }
  func.func @transform_14(%arg0: i32) -> (i32, i32) {
    %c0_i32 = arith.constant 0 : i32
    %c0_i32_0 = arith.constant 0 : i32
    return %arg0, %c0_i32 : i32, i32
  }
  func.func @transform_15(%arg0: i32) -> (i32, i32) {
    %c0_i32 = arith.constant 0 : i32
    %c0_i32_0 = arith.constant 0 : i32
    return %arg0, %c0_i32 : i32, i32
  }
}

</mosaic_0001>

<llo_original>
// kernel: vae_forward.1
$region0: #{vae_forward.1}
  #allocation0 [shape = 'u32[]', space=smem, size = 0x4, offset = 0x4, fixed_abs, tag = 'smem constant byte address 0x4 - core index']
  #allocation1 [shape = 'u32[144,128]{1,0:T(1,128)}', space=vmem, size = 0x12000, scoped, tag = 'internal scratch']
  %s0 = inlined_call_operand.vmem [shape: f32[8,784], index: 0, kind: input, shape index: {}]
  %s1 = inlined_call_operand.vmem [shape: f32[8,2], index: 1, kind: input, shape index: {}]
  %s2 = inlined_call_operand.vmem [shape: bf16[784,640], index: 2, kind: input, shape index: {}]
  %s3 = inlined_call_operand.vmem [shape: f32[1,640], index: 3, kind: input, shape index: {}]
  %s4 = inlined_call_operand.vmem [shape: bf16[640,384], index: 4, kind: input, shape index: {}]
  %s5 = inlined_call_operand.vmem [shape: f32[1,384], index: 5, kind: input, shape index: {}]
  %s6 = inlined_call_operand.vmem [shape: bf16[384,4], index: 6, kind: input, shape index: {}]
  %s7 = inlined_call_operand.vmem [shape: f32[1,4], index: 7, kind: input, shape index: {}]
  %s8 = inlined_call_operand.vmem [shape: bf16[2,384], index: 8, kind: input, shape index: {}]
  %s9 = inlined_call_operand.vmem [shape: f32[1,384], index: 9, kind: input, shape index: {}]
  %s10 = inlined_call_operand.vmem [shape: bf16[384,640], index: 10, kind: input, shape index: {}]
  %s11 = inlined_call_operand.vmem [shape: f32[1,640], index: 11, kind: input, shape index: {}]
  %s12 = inlined_call_operand.vmem [shape: bf16[640,784], index: 12, kind: input, shape index: {}]
  %s13 = inlined_call_operand.vmem [shape: f32[1,784], index: 13, kind: input, shape index: {}]
  %s14 = inlined_call_operand.hbm [shape: bf16[8,784], index: 14, kind: output, shape index: {0}]
  %s15 = inlined_call_operand.vmem [shape: f32[8,4], index: 15, kind: output, shape index: {1}]
  %16 = xla_tuple %s14, %s15
  %s17 = sld [smem:[#allocation0]]
  $region74: #{vae_forward.1} parent=0
    _
  %s19 = ssub.s32 1, %s17
  %s20 = scalar_select 0, %s19, %s17
  $region1: #{vae_forward.1} parent=0
    #allocation2 [shape = 'u8[14336]{0}', space=vmem, size = 0x3800, scoped, tag = 'output window, operand 0, single buffered']
    #allocation3 [shape = 's32[1]{0}', space=sflag, size = 0x4, scoped, tag = 'scoped memory for vae_forward.1']
    %21 = vsyncpa [#allocation3], 0
    // Predicated region
    $region2: #{vae_forward.1} parent=1 // pred_check
      _
    $region3: #{vae_forward.1} parent=1 // pred_check_branch
      %23 = sbr.rel (0) target = $region5
    $region4: #{vae_forward.1} parent=1 // pred_region
      _
    $region5: #{vae_forward.1} parent=1 // pred_fallthru
      _
    // Predicated region
    $region6: #{vae_forward.1} parent=1 // pred_check
      _
    $region7: #{vae_forward.1} parent=1 // pred_check_branch
      %25 = sbr.rel (0) target = $region9
    $region8: #{vae_forward.1} parent=1 // pred_region
      _
    $region9: #{vae_forward.1} parent=1 // pred_fallthru
      _
    // Predicated region
    $region10: #{vae_forward.1} parent=1 // pred_check
      _
    $region11: #{vae_forward.1} parent=1 // pred_check_branch
      %27 = sbr.rel (0) target = $region13
    $region12: #{vae_forward.1} parent=1 // pred_region
      _
    $region13: #{vae_forward.1} parent=1 // pred_fallthru
      _
    // Predicated region
    $region14: #{vae_forward.1} parent=1 // pred_check
      _
    $region15: #{vae_forward.1} parent=1 // pred_check_branch
      %29 = sbr.rel (0) target = $region17
    $region16: #{vae_forward.1} parent=1 // pred_region
      _
    $region17: #{vae_forward.1} parent=1 // pred_fallthru
      _
    // Predicated region
    $region18: #{vae_forward.1} parent=1 // pred_check
      _
    $region19: #{vae_forward.1} parent=1 // pred_check_branch
      %31 = sbr.rel (0) target = $region21
    $region20: #{vae_forward.1} parent=1 // pred_region
      _
    $region21: #{vae_forward.1} parent=1 // pred_fallthru
      _
    // Predicated region
    $region22: #{vae_forward.1} parent=1 // pred_check
      _
    $region23: #{vae_forward.1} parent=1 // pred_check_branch
      %33 = sbr.rel (0) target = $region25
    $region24: #{vae_forward.1} parent=1 // pred_region
      _
    $region25: #{vae_forward.1} parent=1 // pred_fallthru
      _
    // Predicated region
    $region26: #{vae_forward.1} parent=1 // pred_check
      _
    $region27: #{vae_forward.1} parent=1 // pred_check_branch
      %35 = sbr.rel (0) target = $region29
    $region28: #{vae_forward.1} parent=1 // pred_region
      _
    $region29: #{vae_forward.1} parent=1 // pred_fallthru
      _
    // Predicated region
    $region30: #{vae_forward.1} parent=1 // pred_check
      _
    $region31: #{vae_forward.1} parent=1 // pred_check_branch
      %37 = sbr.rel (0) target = $region33
    $region32: #{vae_forward.1} parent=1 // pred_region
      _
    $region33: #{vae_forward.1} parent=1 // pred_fallthru
      _
    // Predicated region
    $region34: #{vae_forward.1} parent=1 // pred_check
      _
    $region35: #{vae_forward.1} parent=1 // pred_check_branch
      %39 = sbr.rel (0) target = $region37
    $region36: #{vae_forward.1} parent=1 // pred_region
      _
    $region37: #{vae_forward.1} parent=1 // pred_fallthru
      _
    // Predicated region
    $region38: #{vae_forward.1} parent=1 // pred_check
      _
    $region39: #{vae_forward.1} parent=1 // pred_check_branch
      %41 = sbr.rel (0) target = $region41
    $region40: #{vae_forward.1} parent=1 // pred_region
      _
    $region41: #{vae_forward.1} parent=1 // pred_fallthru
      _
    // Predicated region
    $region42: #{vae_forward.1} parent=1 // pred_check
      _
    $region43: #{vae_forward.1} parent=1 // pred_check_branch
      %43 = sbr.rel (0) target = $region45
    $region44: #{vae_forward.1} parent=1 // pred_region
      _
    $region45: #{vae_forward.1} parent=1 // pred_fallthru
      _
    // Predicated region
    $region46: #{vae_forward.1} parent=1 // pred_check
      _
    $region47: #{vae_forward.1} parent=1 // pred_check_branch
      %45 = sbr.rel (0) target = $region49
    $region48: #{vae_forward.1} parent=1 // pred_region
      _
    $region49: #{vae_forward.1} parent=1 // pred_fallthru
      _
    // Predicated region
    $region50: #{vae_forward.1} parent=1 // pred_check
      _
    $region51: #{vae_forward.1} parent=1 // pred_check_branch
      %47 = sbr.rel (0) target = $region53
    $region52: #{vae_forward.1} parent=1 // pred_region
      _
    $region53: #{vae_forward.1} parent=1 // pred_fallthru
      _
    // Predicated region
    $region54: #{vae_forward.1} parent=1 // pred_check
      _
    $region55: #{vae_forward.1} parent=1 // pred_check_branch
      %49 = sbr.rel (0) target = $region57
    $region56: #{vae_forward.1} parent=1 // pred_region
      _
    $region57: #{vae_forward.1} parent=1 // pred_fallthru
      _
    %v51 = vld [vmem:[%s0] sm:$0xff]
    %v52 = vld [vmem:[%s0 + $0x8] sm:$0xff]
    %v53 = vld [vmem:[%s0 + $0x10] sm:$0xff]
    %v54 = vld [vmem:[%s0 + $0x18] sm:$0xff]
    %v55 = vld [vmem:[%s0 + $0x20] sm:$0xff]
    %v56 = vld [vmem:[%s0 + $0x28] sm:$0xff]
    %v57 = vld [vmem:[%s0 + $0x30] sm:$0xff]
    %v58 = vpack.c.bf16 %v51, %v51
    %v59 = vpack.c.bf16 %v52, %v52
    %v60 = vpack.c.bf16 %v53, %v53
    %v61 = vpack.c.bf16 %v54, %v54
    %v62 = vpack.c.bf16 %v55, %v55
    %v63 = vpack.c.bf16 %v56, %v56
    %v64 = vpack.c.bf16 %v57, %v57
    %v65 = vld [vmem:[%s2] sm:$0xff]
    %v66 = vld [vmem:[%s2 + $0x8] sm:$0xff]
    %v67 = vld [vmem:[%s2 + $0x10] sm:$0xf]
    %v68 = vld [vmem:[%s2 + $0x14] sm:$0xff]
    %v69 = vld [vmem:[%s2 + $0x1c] sm:$0xff]
    %v70 = vld [vmem:[%s2 + $0x24] sm:$0xf]
    %v71 = vld [vmem:[%s2 + $0x28] sm:$0xff]
    %v72 = vld [vmem:[%s2 + $0x30] sm:$0xff]
    %v73 = vld [vmem:[%s2 + $0x38] sm:$0xf]
    %v74 = vld [vmem:[%s2 + $0x3c] sm:$0xff]
    %v75 = vld [vmem:[%s2 + $0x44] sm:$0xff]
    %v76 = vld [vmem:[%s2 + $0x4c] sm:$0xf]
    %v77 = vld [vmem:[%s2 + $0x50] sm:$0xff]
    %v78 = vld [vmem:[%s2 + $0x58] sm:$0xff]
    %v79 = vld [vmem:[%s2 + $0x60] sm:$0xf]
    %v80 = vld [vmem:[%s2 + $0x64] sm:$0xff]
    %v81 = vld [vmem:[%s2 + $0x6c] sm:$0xff]
    %v82 = vld [vmem:[%s2 + $0x74] sm:$0xf]
    %v83 = vld [vmem:[%s2 + $0x78] sm:$0xff]
    %v84 = vld [vmem:[%s2 + $0x80] sm:$0xff]
    %v85 = vld [vmem:[%s2 + $0x88] sm:$0xf]
    %v86 = vld [vmem:[%s2 + $0x8c] sm:$0xff]
    %v87 = vld [vmem:[%s2 + $0x94] sm:$0xff]
    %v88 = vld [vmem:[%s2 + $0x9c] sm:$0xf]
    %v89 = vld [vmem:[%s2 + $0xa0] sm:$0xff]
    %v90 = vld [vmem:[%s2 + $0xa8] sm:$0xff]
    %v91 = vld [vmem:[%s2 + $0xb0] sm:$0xf]
    %v92 = vld [vmem:[%s2 + $0xb4] sm:$0xff]
    %v93 = vld [vmem:[%s2 + $0xbc] sm:$0xff]
    %v94 = vld [vmem:[%s2 + $0xc4] sm:$0xf]
    %v95 = vld [vmem:[%s2 + $0xc8] sm:$0xff]
    %v96 = vld [vmem:[%s2 + $0xd0] sm:$0xff]
    %v97 = vld [vmem:[%s2 + $0xd8] sm:$0xf]
    %v98 = vld [vmem:[%s2 + $0xdc] sm:$0xff]
    %v99 = vld [vmem:[%s2 + $0xe4] sm:$0xff]
    %v100 = vld [vmem:[%s2 + $0xec] sm:$0xf]
    %v101 = vld [vmem:[%s2 + $0xf0] sm:$0xff]
    %v102 = vld [vmem:[%s2 + $0xf8] sm:$0xff]
    %v103 = vld [vmem:[%s2 + $0x100] sm:$0xf]
    %v104 = vld [vmem:[%s2 + $0x104] sm:$0xff]
    %v105 = vld [vmem:[%s2 + $0x10c] sm:$0xff]
    %v106 = vld [vmem:[%s2 + $0x114] sm:$0xf]
    %v107 = vld [vmem:[%s2 + $0x118] sm:$0xff]
    %v108 = vld [vmem:[%s2 + $0x120] sm:$0xff]
    %v109 = vld [vmem:[%s2 + $0x128] sm:$0xf]
    %v110 = vld [vmem:[%s2 + $0x12c] sm:$0xff]
    %v111 = vld [vmem:[%s2 + $0x134] sm:$0xff]
    %v112 = vld [vmem:[%s2 + $0x13c] sm:$0xf]
    %v113 = vld [vmem:[%s2 + $0x140] sm:$0xff]
    %v114 = vld [vmem:[%s2 + $0x148] sm:$0xff]
    %v115 = vld [vmem:[%s2 + $0x150] sm:$0xf]
    %v116 = vld [vmem:[%s2 + $0x154] sm:$0xff]
    %v117 = vld [vmem:[%s2 + $0x15c] sm:$0xff]
    %v118 = vld [vmem:[%s2 + $0x164] sm:$0xf]
    %v119 = vld [vmem:[%s2 + $0x168] sm:$0xff]
    %v120 = vld [vmem:[%s2 + $0x170] sm:$0xff]
    %v121 = vld [vmem:[%s2 + $0x178] sm:$0xf]
    %v122 = vld [vmem:[%s2 + $0x17c] sm:$0xff]
    %v123 = vld [vmem:[%s2 + $0x184] sm:$0xff]
    %v124 = vld [vmem:[%s2 + $0x18c] sm:$0xf]
    %v125 = vld [vmem:[%s2 + $0x190] sm:$0xff]
    %v126 = vld [vmem:[%s2 + $0x198] sm:$0xff]
    %v127 = vld [vmem:[%s2 + $0x1a0] sm:$0xf]
    %v128 = vld [vmem:[%s2 + $0x1a4] sm:$0xff]
    %v129 = vld [vmem:[%s2 + $0x1ac] sm:$0xff]
    %v130 = vld [vmem:[%s2 + $0x1b4] sm:$0xf]
    %v131 = vld [vmem:[%s2 + $0x1b8] sm:$0xff]
    %v132 = vld [vmem:[%s2 + $0x1c0] sm:$0xff]
    %v133 = vld [vmem:[%s2 + $0x1c8] sm:$0xf]
    %v134 = vld [vmem:[%s2 + $0x1cc] sm:$0xff]
    %v135 = vld [vmem:[%s2 + $0x1d4] sm:$0xff]
    %v136 = vld [vmem:[%s2 + $0x1dc] sm:$0xf]
    %v137 = vld [vmem:[%s2 + $0x1e0] sm:$0xff]
    %v138 = vld [vmem:[%s2 + $0x1e8] sm:$0xff]
    %v139 = vld [vmem:[%s2 + $0x1f0] sm:$0xf]
    %v140 = vld [vmem:[%s2 + $0x1f4] sm:$0xff]
    %v141 = vld [vmem:[%s2 + $0x1fc] sm:$0xff]
    %v142 = vld [vmem:[%s2 + $0x204] sm:$0xf]
    %v143 = vld [vmem:[%s2 + $0x208] sm:$0xff]
    %v144 = vld [vmem:[%s2 + $0x210] sm:$0xff]
    %v145 = vld [vmem:[%s2 + $0x218] sm:$0xf]
    %v146 = vld [vmem:[%s2 + $0x21c] sm:$0xff]
    %v147 = vld [vmem:[%s2 + $0x224] sm:$0xff]
    %v148 = vld [vmem:[%s2 + $0x22c] sm:$0xf]
    %v149 = vld [vmem:[%s2 + $0x230] sm:$0xff]
    %v150 = vld [vmem:[%s2 + $0x238] sm:$0xff]
    %v151 = vld [vmem:[%s2 + $0x240] sm:$0xf]
    %v152 = vld [vmem:[%s2 + $0x244] sm:$0xff]
    %v153 = vld [vmem:[%s2 + $0x24c] sm:$0xff]
    %v154 = vld [vmem:[%s2 + $0x254] sm:$0xf]
    %v155 = vld [vmem:[%s2 + $0x258] sm:$0xff]
    %v156 = vld [vmem:[%s2 + $0x260] sm:$0xff]
    %v157 = vld [vmem:[%s2 + $0x268] sm:$0xf]
    %v158 = vld [vmem:[%s2 + $0x26c] sm:$0xff]
    %v159 = vld [vmem:[%s2 + $0x274] sm:$0xff]
    %v160 = vld [vmem:[%s2 + $0x27c] sm:$0xf]
    %v161 = vld [vmem:[%s2 + $0x280] sm:$0xff]
    %v162 = vld [vmem:[%s2 + $0x288] sm:$0xff]
    %v163 = vld [vmem:[%s2 + $0x290] sm:$0xf]
    %v164 = vld [vmem:[%s2 + $0x294] sm:$0xff]
    %v165 = vld [vmem:[%s2 + $0x29c] sm:$0xff]
    %v166 = vld [vmem:[%s2 + $0x2a4] sm:$0xf]
    %v167 = vld [vmem:[%s2 + $0x2a8] sm:$0xff]
    %v168 = vld [vmem:[%s2 + $0x2b0] sm:$0xff]
    %v169 = vld [vmem:[%s2 + $0x2b8] sm:$0xf]
    %v170 = vld [vmem:[%s2 + $0x2bc] sm:$0xff]
    %v171 = vld [vmem:[%s2 + $0x2c4] sm:$0xff]
    %v172 = vld [vmem:[%s2 + $0x2cc] sm:$0xf]
    %v173 = vld [vmem:[%s2 + $0x2d0] sm:$0xff]
    %v174 = vld [vmem:[%s2 + $0x2d8] sm:$0xff]
    %v175 = vld [vmem:[%s2 + $0x2e0] sm:$0xf]
    %v176 = vld [vmem:[%s2 + $0x2e4] sm:$0xff]
    %v177 = vld [vmem:[%s2 + $0x2ec] sm:$0xff]
    %v178 = vld [vmem:[%s2 + $0x2f4] sm:$0xf]
    %v179 = vld [vmem:[%s2 + $0x2f8] sm:$0xff]
    %v180 = vld [vmem:[%s2 + $0x300] sm:$0xff]
    %v181 = vld [vmem:[%s2 + $0x308] sm:$0xf]
    %v182 = vld [vmem:[%s2 + $0x30c] sm:$0xff]
    %v183 = vld [vmem:[%s2 + $0x314] sm:$0xff]
    %v184 = vld [vmem:[%s2 + $0x31c] sm:$0xf]
    %v185 = vld [vmem:[%s2 + $0x320] sm:$0xff]
    %v186 = vld [vmem:[%s2 + $0x328] sm:$0xff]
    %v187 = vld [vmem:[%s2 + $0x330] sm:$0xf]
    %v188 = vld [vmem:[%s2 + $0x334] sm:$0xff]
    %v189 = vld [vmem:[%s2 + $0x33c] sm:$0xff]
    %v190 = vld [vmem:[%s2 + $0x344] sm:$0xf]
    %v191 = vld [vmem:[%s2 + $0x348] sm:$0xff]
    %v192 = vld [vmem:[%s2 + $0x350] sm:$0xff]
    %v193 = vld [vmem:[%s2 + $0x358] sm:$0xf]
    %v194 = vld [vmem:[%s2 + $0x35c] sm:$0xff]
    %v195 = vld [vmem:[%s2 + $0x364] sm:$0xff]
    %v196 = vld [vmem:[%s2 + $0x36c] sm:$0xf]
    %v197 = vld [vmem:[%s2 + $0x370] sm:$0xff]
    %v198 = vld [vmem:[%s2 + $0x378] sm:$0xff]
    %v199 = vld [vmem:[%s2 + $0x380] sm:$0xf]
    %v200 = vld [vmem:[%s2 + $0x384] sm:$0xff]
    %v201 = vld [vmem:[%s2 + $0x38c] sm:$0xff]
    %v202 = vld [vmem:[%s2 + $0x394] sm:$0xf]
    %v203 = vld [vmem:[%s2 + $0x398] sm:$0xff]
    %v204 = vld [vmem:[%s2 + $0x3a0] sm:$0xff]
    %v205 = vld [vmem:[%s2 + $0x3a8] sm:$0xf]
    %v206 = vld [vmem:[%s2 + $0x3ac] sm:$0xff]
    %v207 = vld [vmem:[%s2 + $0x3b4] sm:$0xff]
    %v208 = vld [vmem:[%s2 + $0x3bc] sm:$0xf]
    %v209 = vld [vmem:[%s2 + $0x3c0] sm:$0xff]
    %v210 = vld [vmem:[%s2 + $0x3c8] sm:$0xff]
    %v211 = vld [vmem:[%s2 + $0x3d0] sm:$0xf]
    %v212 = vld [vmem:[%s2 + $0x3d4] sm:$0xff]
    %v213 = vld [vmem:[%s2 + $0x3dc] sm:$0xff]
    %v214 = vld [vmem:[%s2 + $0x3e4] sm:$0xf]
    %v215 = vld [vmem:[%s2 + $0x3e8] sm:$0xff]
    %v216 = vld [vmem:[%s2 + $0x3f0] sm:$0xff]
    %v217 = vld [vmem:[%s2 + $0x3f8] sm:$0xf]
    %v218 = vld [vmem:[%s2 + $0x3fc] sm:$0xff]
    %v219 = vld [vmem:[%s2 + $0x404] sm:$0xff]
    %v220 = vld [vmem:[%s2 + $0x40c] sm:$0xf]
    %v221 = vld [vmem:[%s2 + $0x410] sm:$0xff]
    %v222 = vld [vmem:[%s2 + $0x418] sm:$0xff]
    %v223 = vld [vmem:[%s2 + $0x420] sm:$0xf]
    %v224 = vld [vmem:[%s2 + $0x424] sm:$0xff]
    %v225 = vld [vmem:[%s2 + $0x42c] sm:$0xff]
    %v226 = vld [vmem:[%s2 + $0x434] sm:$0xf]
    %v227 = vld [vmem:[%s2 + $0x438] sm:$0xff]
    %v228 = vld [vmem:[%s2 + $0x440] sm:$0xff]
    %v229 = vld [vmem:[%s2 + $0x448] sm:$0xf]
    %v230 = vld [vmem:[%s2 + $0x44c] sm:$0xff]
    %v231 = vld [vmem:[%s2 + $0x454] sm:$0xff]
    %v232 = vld [vmem:[%s2 + $0x45c] sm:$0xf]
    %v233 = vld [vmem:[%s2 + $0x460] sm:$0xff]
    %v234 = vld [vmem:[%s2 + $0x468] sm:$0xff]
    %v235 = vld [vmem:[%s2 + $0x470] sm:$0xf]
    %v236 = vld [vmem:[%s2 + $0x474] sm:$0xff]
    %v237 = vld [vmem:[%s2 + $0x47c] sm:$0xff]
    %v238 = vld [vmem:[%s2 + $0x484] sm:$0xf]
    %v239 = vld [vmem:[%s2 + $0x488] sm:$0xff]
    %v240 = vld [vmem:[%s2 + $0x490] sm:$0xff]
    %v241 = vld [vmem:[%s2 + $0x498] sm:$0xf]
    %v242 = vld [vmem:[%s2 + $0x49c] sm:$0xff]
    %v243 = vld [vmem:[%s2 + $0x4a4] sm:$0xff]
    %v244 = vld [vmem:[%s2 + $0x4ac] sm:$0xf]
    %v245 = vld [vmem:[%s2 + $0x4b0] sm:$0xff]
    %v246 = vld [vmem:[%s2 + $0x4b8] sm:$0xff]
    %v247 = vld [vmem:[%s2 + $0x4c0] sm:$0xf]
    %v248 = vld [vmem:[%s2 + $0x4c4] sm:$0xff]
    %v249 = vld [vmem:[%s2 + $0x4cc] sm:$0xff]
    %v250 = vld [vmem:[%s2 + $0x4d4] sm:$0xf]
    %v251 = vld [vmem:[%s2 + $0x4d8] sm:$0xff]
    %v252 = vld [vmem:[%s2 + $0x4e0] sm:$0xff]
    %v253 = vld [vmem:[%s2 + $0x4e8] sm:$0xf]
    %v254 = vld [vmem:[%s2 + $0x4ec] sm:$0xff]
    %v255 = vld [vmem:[%s2 + $0x4f4] sm:$0xff]
    %v256 = vld [vmem:[%s2 + $0x4fc] sm:$0xf]
    %v257 = vld [vmem:[%s2 + $0x500] sm:$0xff]
    %v258 = vld [vmem:[%s2 + $0x508] sm:$0xff]
    %v259 = vld [vmem:[%s2 + $0x510] sm:$0xf]
    %v260 = vld [vmem:[%s2 + $0x514] sm:$0xff]
    %v261 = vld [vmem:[%s2 + $0x51c] sm:$0xff]
    %v262 = vld [vmem:[%s2 + $0x524] sm:$0xf]
    %v263 = vld [vmem:[%s2 + $0x528] sm:$0xff]
    %v264 = vld [vmem:[%s2 + $0x530] sm:$0xff]
    %v265 = vld [vmem:[%s2 + $0x538] sm:$0xf]
    %v266 = vld [vmem:[%s2 + $0x53c] sm:$0xff]
    %v267 = vld [vmem:[%s2 + $0x544] sm:$0xff]
    %v268 = vld [vmem:[%s2 + $0x54c] sm:$0xf]
    %v269 = vld [vmem:[%s2 + $0x550] sm:$0xff]
    %v270 = vld [vmem:[%s2 + $0x558] sm:$0xff]
    %v271 = vld [vmem:[%s2 + $0x560] sm:$0xf]
    %v272 = vld [vmem:[%s2 + $0x564] sm:$0xff]
    %v273 = vld [vmem:[%s2 + $0x56c] sm:$0xff]
    %v274 = vld [vmem:[%s2 + $0x574] sm:$0xf]
    %v275 = vld [vmem:[%s2 + $0x578] sm:$0xff]
    %v276 = vld [vmem:[%s2 + $0x580] sm:$0xff]
    %v277 = vld [vmem:[%s2 + $0x588] sm:$0xf]
    %v278 = vld [vmem:[%s2 + $0x58c] sm:$0xff]
    %v279 = vld [vmem:[%s2 + $0x594] sm:$0xff]
    %v280 = vld [vmem:[%s2 + $0x59c] sm:$0xf]
    %v281 = vld [vmem:[%s2 + $0x5a0] sm:$0xff]
    %v282 = vld [vmem:[%s2 + $0x5a8] sm:$0xff]
    %v283 = vld [vmem:[%s2 + $0x5b0] sm:$0xf]
    %v284 = vld [vmem:[%s2 + $0x5b4] sm:$0xff]
    %v285 = vld [vmem:[%s2 + $0x5bc] sm:$0xff]
    %v286 = vld [vmem:[%s2 + $0x5c4] sm:$0xf]
    %v287 = vld [vmem:[%s2 + $0x5c8] sm:$0xff]
    %v288 = vld [vmem:[%s2 + $0x5d0] sm:$0xff]
    %v289 = vld [vmem:[%s2 + $0x5d8] sm:$0xf]
    %v290 = vld [vmem:[%s2 + $0x5dc] sm:$0xff]
    %v291 = vld [vmem:[%s2 + $0x5e4] sm:$0xff]
    %v292 = vld [vmem:[%s2 + $0x5ec] sm:$0xf]
    %v293 = vld [vmem:[%s2 + $0x5f0] sm:$0xff]
    %v294 = vld [vmem:[%s2 + $0x5f8] sm:$0xff]
    %v295 = vld [vmem:[%s2 + $0x600] sm:$0xf]
    %v296 = vld [vmem:[%s2 + $0x604] sm:$0xff]
    %v297 = vld [vmem:[%s2 + $0x60c] sm:$0xff]
    %v298 = vld [vmem:[%s2 + $0x614] sm:$0xf]
    %v299 = vld [vmem:[%s2 + $0x618] sm:$0xff]
    %v300 = vld [vmem:[%s2 + $0x620] sm:$0xff]
    %v301 = vld [vmem:[%s2 + $0x628] sm:$0xf]
    %v302 = vld [vmem:[%s2 + $0x62c] sm:$0xff]
    %v303 = vld [vmem:[%s2 + $0x634] sm:$0xff]
    %v304 = vld [vmem:[%s2 + $0x63c] sm:$0xf]
    %v305 = vld [vmem:[%s2 + $0x640] sm:$0xff]
    %v306 = vld [vmem:[%s2 + $0x648] sm:$0xff]
    %v307 = vld [vmem:[%s2 + $0x650] sm:$0xf]
    %v308 = vld [vmem:[%s2 + $0x654] sm:$0xff]
    %v309 = vld [vmem:[%s2 + $0x65c] sm:$0xff]
    %v310 = vld [vmem:[%s2 + $0x664] sm:$0xf]
    %v311 = vld [vmem:[%s2 + $0x668] sm:$0xff]
    %v312 = vld [vmem:[%s2 + $0x670] sm:$0xff]
    %v313 = vld [vmem:[%s2 + $0x678] sm:$0xf]
    %v314 = vld [vmem:[%s2 + $0x67c] sm:$0xff]
    %v315 = vld [vmem:[%s2 + $0x684] sm:$0xff]
    %v316 = vld [vmem:[%s2 + $0x68c] sm:$0xf]
    %v317 = vld [vmem:[%s2 + $0x690] sm:$0xff]
    %v318 = vld [vmem:[%s2 + $0x698] sm:$0xff]
    %v319 = vld [vmem:[%s2 + $0x6a0] sm:$0xf]
    %v320 = vld [vmem:[%s2 + $0x6a4] sm:$0xff]
    %v321 = vld [vmem:[%s2 + $0x6ac] sm:$0xff]
    %v322 = vld [vmem:[%s2 + $0x6b4] sm:$0xf]
    %v323 = vld [vmem:[%s2 + $0x6b8] sm:$0xff]
    %v324 = vld [vmem:[%s2 + $0x6c0] sm:$0xff]
    %v325 = vld [vmem:[%s2 + $0x6c8] sm:$0xf]
    %v326 = vld [vmem:[%s2 + $0x6cc] sm:$0xff]
    %v327 = vld [vmem:[%s2 + $0x6d4] sm:$0xff]
    %v328 = vld [vmem:[%s2 + $0x6dc] sm:$0xf]
    %v329 = vld [vmem:[%s2 + $0x6e0] sm:$0xff]
    %v330 = vld [vmem:[%s2 + $0x6e8] sm:$0xff]
    %v331 = vld [vmem:[%s2 + $0x6f0] sm:$0xf]
    %v332 = vld [vmem:[%s2 + $0x6f4] sm:$0xff]
    %v333 = vld [vmem:[%s2 + $0x6fc] sm:$0xff]
    %v334 = vld [vmem:[%s2 + $0x704] sm:$0xf]
    %v335 = vld [vmem:[%s2 + $0x708] sm:$0xff]
    %v336 = vld [vmem:[%s2 + $0x710] sm:$0xff]
    %v337 = vld [vmem:[%s2 + $0x718] sm:$0xf]
    %v338 = vld [vmem:[%s2 + $0x71c] sm:$0xff]
    %v339 = vld [vmem:[%s2 + $0x724] sm:$0xff]
    %v340 = vld [vmem:[%s2 + $0x72c] sm:$0xf]
    %v341 = vld [vmem:[%s2 + $0x730] sm:$0xff]
    %v342 = vld [vmem:[%s2 + $0x738] sm:$0xff]
    %v343 = vld [vmem:[%s2 + $0x740] sm:$0xf]
    %v344 = vld [vmem:[%s2 + $0x744] sm:$0xff]
    %v345 = vld [vmem:[%s2 + $0x74c] sm:$0xff]
    %v346 = vld [vmem:[%s2 + $0x754] sm:$0xf]
    %v347 = vld [vmem:[%s2 + $0x758] sm:$0xff]
    %v348 = vld [vmem:[%s2 + $0x760] sm:$0xff]
    %v349 = vld [vmem:[%s2 + $0x768] sm:$0xf]
    %v350 = vld [vmem:[%s2 + $0x76c] sm:$0xff]
    %v351 = vld [vmem:[%s2 + $0x774] sm:$0xff]
    %v352 = vld [vmem:[%s2 + $0x77c] sm:$0xf]
    %v353 = vld [vmem:[%s2 + $0x780] sm:$0xff]
    %v354 = vld [vmem:[%s2 + $0x788] sm:$0xff]
    %v355 = vld [vmem:[%s2 + $0x790] sm:$0xf]
    %v356 = vld [vmem:[%s2 + $0x794] sm:$0xff]
    %v357 = vld [vmem:[%s2 + $0x79c] sm:$0xff]
    %v358 = vld [vmem:[%s2 + $0x7a4] sm:$0xf]
    %v359 = vld [vmem:[%s3] sm:$0x1f]
    %v361 = vlaneseq
    %v362 = vshrl.u32 %v361, 7
    %v363 = vsub.s32 0, %v362
    %v364 = vrot.slane %v359, %v363
    %v365 = vlaneseq
    %v366 = vshrl.u32 %v365, 7
    %v367 = vsub.s32 1, %v366
    %v368 = vrot.slane %v359, %v367
    %v369 = vlaneseq
    %v370 = vshrl.u32 %v369, 7
    %v371 = vsub.s32 2, %v370
    %v372 = vrot.slane %v359, %v371
    %v373 = vlaneseq
    %v374 = vshrl.u32 %v373, 7
    %v375 = vsub.s32 3, %v374
    %v376 = vrot.slane %v359, %v375
    %v377 = vlaneseq
    %v378 = vshrl.u32 %v377, 7
    %v379 = vsub.s32 4, %v378
    %v380 = vrot.slane %v359, %v379
    %v680 = vunpack.c.l.b16 %v65
    %v681 = vunpack.c.h.b16 %v65
    %v682 = vunpack.c.l.b16 %v66
    %v683 = vunpack.c.h.b16 %v66
    %v684 = vunpack.c.l.b16 %v67
    %v685 = vunpack.c.l.b16 %v68
    %v686 = vunpack.c.h.b16 %v68
    %v687 = vunpack.c.l.b16 %v69
    %v688 = vunpack.c.h.b16 %v69
    %v689 = vunpack.c.l.b16 %v70
    %v690 = vunpack.c.l.b16 %v71
    %v691 = vunpack.c.h.b16 %v71
    %v692 = vunpack.c.l.b16 %v72
    %v693 = vunpack.c.h.b16 %v72
    %v694 = vunpack.c.l.b16 %v73
    %v695 = vunpack.c.l.b16 %v74
    %v696 = vunpack.c.h.b16 %v74
    %v697 = vunpack.c.l.b16 %v75
    %v698 = vunpack.c.h.b16 %v75
    %v699 = vunpack.c.l.b16 %v76
    %v700 = vunpack.c.l.b16 %v77
    %v701 = vunpack.c.h.b16 %v77
    %v702 = vunpack.c.l.b16 %v78
    %v703 = vunpack.c.h.b16 %v78
    %v704 = vunpack.c.l.b16 %v79
    %v705 = vunpack.c.l.b16 %v80
    %v706 = vunpack.c.h.b16 %v80
    %v707 = vunpack.c.l.b16 %v81
    %v708 = vunpack.c.h.b16 %v81
    %v709 = vunpack.c.l.b16 %v82
    %v710 = vunpack.c.l.b16 %v83
    %v711 = vunpack.c.h.b16 %v83
    %v712 = vunpack.c.l.b16 %v84
    %v713 = vunpack.c.h.b16 %v84
    %v714 = vunpack.c.l.b16 %v85
    %v715 = vunpack.c.l.b16 %v86
    %v716 = vunpack.c.h.b16 %v86
    %v717 = vunpack.c.l.b16 %v87
    %v718 = vunpack.c.h.b16 %v87
    %v719 = vunpack.c.l.b16 %v88
    %v720 = vunpack.c.l.b16 %v89
    %v721 = vunpack.c.h.b16 %v89
    %v722 = vunpack.c.l.b16 %v90
    %v723 = vunpack.c.h.b16 %v90
    %v724 = vunpack.c.l.b16 %v91
    %v725 = vunpack.c.l.b16 %v92
    %v726 = vunpack.c.h.b16 %v92
    %v727 = vunpack.c.l.b16 %v93
    %v728 = vunpack.c.h.b16 %v93
    %v729 = vunpack.c.l.b16 %v94
    %v730 = vunpack.c.l.b16 %v95
    %v731 = vunpack.c.h.b16 %v95
    %v732 = vunpack.c.l.b16 %v96
    %v733 = vunpack.c.h.b16 %v96
    %v734 = vunpack.c.l.b16 %v97
    %v735 = vunpack.c.l.b16 %v98
    %v736 = vunpack.c.h.b16 %v98
    %v737 = vunpack.c.l.b16 %v99
    %v738 = vunpack.c.h.b16 %v99
    %v739 = vunpack.c.l.b16 %v100
    %v740 = vunpack.c.l.b16 %v101
    %v741 = vunpack.c.h.b16 %v101
    %v742 = vunpack.c.l.b16 %v102
    %v743 = vunpack.c.h.b16 %v102
    %v744 = vunpack.c.l.b16 %v103
    %v745 = vunpack.c.l.b16 %v104
    %v746 = vunpack.c.h.b16 %v104
    %v747 = vunpack.c.l.b16 %v105
    %v748 = vunpack.c.h.b16 %v105
    %v749 = vunpack.c.l.b16 %v106
    %v750 = vunpack.c.l.b16 %v107
    %v751 = vunpack.c.h.b16 %v107
    %v752 = vunpack.c.l.b16 %v108
    %v753 = vunpack.c.h.b16 %v108
    %v754 = vunpack.c.l.b16 %v109
    %v755 = vunpack.c.l.b16 %v110
    %v756 = vunpack.c.h.b16 %v110
    %v757 = vunpack.c.l.b16 %v111
    %v758 = vunpack.c.h.b16 %v111
    %v759 = vunpack.c.l.b16 %v112
    %v760 = vunpack.c.l.b16 %v113
    %v761 = vunpack.c.h.b16 %v113
    %v762 = vunpack.c.l.b16 %v114
    %v763 = vunpack.c.h.b16 %v114
    %v764 = vunpack.c.l.b16 %v115
    %v765 = vunpack.c.l.b16 %v116
    %v766 = vunpack.c.h.b16 %v116
    %v767 = vunpack.c.l.b16 %v117
    %v768 = vunpack.c.h.b16 %v117
    %v769 = vunpack.c.l.b16 %v118
    %v770 = vunpack.c.l.b16 %v119
    %v771 = vunpack.c.h.b16 %v119
    %v772 = vunpack.c.l.b16 %v120
    %v773 = vunpack.c.h.b16 %v120
    %v774 = vunpack.c.l.b16 %v121
    %v775 = vunpack.c.l.b16 %v122
    %v776 = vunpack.c.h.b16 %v122
    %v777 = vunpack.c.l.b16 %v123
    %v778 = vunpack.c.h.b16 %v123
    %v779 = vunpack.c.l.b16 %v124
    %v780 = vunpack.c.l.b16 %v125
    %v781 = vunpack.c.h.b16 %v125
    %v782 = vunpack.c.l.b16 %v126
    %v783 = vunpack.c.h.b16 %v126
    %v784 = vunpack.c.l.b16 %v127
    %v785 = vunpack.c.l.b16 %v128
    %v786 = vunpack.c.h.b16 %v128
    %v787 = vunpack.c.l.b16 %v129
    %v788 = vunpack.c.h.b16 %v129
    %v789 = vunpack.c.l.b16 %v130
    %v790 = vunpack.c.l.b16 %v131
    %v791 = vunpack.c.h.b16 %v131
    %v792 = vunpack.c.l.b16 %v132
    %v793 = vunpack.c.h.b16 %v132
    %v794 = vunpack.c.l.b16 %v133
    %v795 = vunpack.c.l.b16 %v134
    %v796 = vunpack.c.h.b16 %v134
    %v797 = vunpack.c.l.b16 %v135
    %v798 = vunpack.c.h.b16 %v135
    %v799 = vunpack.c.l.b16 %v136
    %v800 = vunpack.c.l.b16 %v137
    %v801 = vunpack.c.h.b16 %v137
    %v802 = vunpack.c.l.b16 %v138
    %v803 = vunpack.c.h.b16 %v138
    %v804 = vunpack.c.l.b16 %v139
    %v805 = vunpack.c.l.b16 %v140
    %v806 = vunpack.c.h.b16 %v140
    %v807 = vunpack.c.l.b16 %v141
    %v808 = vunpack.c.h.b16 %v141
    %v809 = vunpack.c.l.b16 %v142
    %v810 = vunpack.c.l.b16 %v143
    %v811 = vunpack.c.h.b16 %v143
    %v812 = vunpack.c.l.b16 %v144
    %v813 = vunpack.c.h.b16 %v144
    %v814 = vunpack.c.l.b16 %v145
    %v815 = vunpack.c.l.b16 %v146
    %v816 = vunpack.c.h.b16 %v146
    %v817 = vunpack.c.l.b16 %v147
    %v818 = vunpack.c.h.b16 %v147
    %v819 = vunpack.c.l.b16 %v148
    %v820 = vunpack.c.l.b16 %v149
    %v821 = vunpack.c.h.b16 %v149
    %v822 = vunpack.c.l.b16 %v150
    %v823 = vunpack.c.h.b16 %v150
    %v824 = vunpack.c.l.b16 %v151
    %v825 = vunpack.c.l.b16 %v152
    %v826 = vunpack.c.h.b16 %v152
    %v827 = vunpack.c.l.b16 %v153
    %v828 = vunpack.c.h.b16 %v153
    %v829 = vunpack.c.l.b16 %v154
    %v830 = vunpack.c.l.b16 %v155
    %v831 = vunpack.c.h.b16 %v155
    %v832 = vunpack.c.l.b16 %v156
    %v833 = vunpack.c.h.b16 %v156
    %v834 = vunpack.c.l.b16 %v157
    %v835 = vunpack.c.l.b16 %v158
    %v836 = vunpack.c.h.b16 %v158
    %v837 = vunpack.c.l.b16 %v159
    %v838 = vunpack.c.h.b16 %v159
    %v839 = vunpack.c.l.b16 %v160
    %v840 = vunpack.c.l.b16 %v161
    %v841 = vunpack.c.h.b16 %v161
    %v842 = vunpack.c.l.b16 %v162
    %v843 = vunpack.c.h.b16 %v162
    %v844 = vunpack.c.l.b16 %v163
    %v845 = vunpack.c.l.b16 %v164
    %v846 = vunpack.c.h.b16 %v164
    %v847 = vunpack.c.l.b16 %v165
    %v848 = vunpack.c.h.b16 %v165
    %v849 = vunpack.c.l.b16 %v166
    %v850 = vunpack.c.l.b16 %v167
    %v851 = vunpack.c.h.b16 %v167
    %v852 = vunpack.c.l.b16 %v168
    %v853 = vunpack.c.h.b16 %v168
    %v854 = vunpack.c.l.b16 %v169
    %v855 = vunpack.c.l.b16 %v170
    %v856 = vunpack.c.h.b16 %v170
    %v857 = vunpack.c.l.b16 %v171
    %v858 = vunpack.c.h.b16 %v171
    %v859 = vunpack.c.l.b16 %v172
    %v860 = vunpack.c.l.b16 %v173
    %v861 = vunpack.c.h.b16 %v173
    %v862 = vunpack.c.l.b16 %v174
    %v863 = vunpack.c.h.b16 %v174
    %v864 = vunpack.c.l.b16 %v175
    %v865 = vunpack.c.l.b16 %v176
    %v866 = vunpack.c.h.b16 %v176
    %v867 = vunpack.c.l.b16 %v177
    %v868 = vunpack.c.h.b16 %v177
    %v869 = vunpack.c.l.b16 %v178
    %v870 = vunpack.c.l.b16 %v179
    %v871 = vunpack.c.h.b16 %v179
    %v872 = vunpack.c.l.b16 %v180
    %v873 = vunpack.c.h.b16 %v180
    %v874 = vunpack.c.l.b16 %v181
    %v875 = vunpack.c.l.b16 %v182
    %v876 = vunpack.c.h.b16 %v182
    %v877 = vunpack.c.l.b16 %v183
    %v878 = vunpack.c.h.b16 %v183
    %v879 = vunpack.c.l.b16 %v184
    %v880 = vunpack.c.l.b16 %v185
    %v881 = vunpack.c.h.b16 %v185
    %v882 = vunpack.c.l.b16 %v186
    %v883 = vunpack.c.h.b16 %v186
    %v884 = vunpack.c.l.b16 %v187
    %v885 = vunpack.c.l.b16 %v188
    %v886 = vunpack.c.h.b16 %v188
    %v887 = vunpack.c.l.b16 %v189
    %v888 = vunpack.c.h.b16 %v189
    %v889 = vunpack.c.l.b16 %v190
    %v890 = vunpack.c.l.b16 %v191
    %v891 = vunpack.c.h.b16 %v191
    %v892 = vunpack.c.l.b16 %v192
    %v893 = vunpack.c.h.b16 %v192
    %v894 = vunpack.c.l.b16 %v193
    %v895 = vunpack.c.l.b16 %v194
    %v896 = vunpack.c.h.b16 %v194
    %v897 = vunpack.c.l.b16 %v195
    %v898 = vunpack.c.h.b16 %v195
    %v899 = vunpack.c.l.b16 %v196
    %v900 = vunpack.c.l.b16 %v197
    %v901 = vunpack.c.h.b16 %v197
    %v902 = vunpack.c.l.b16 %v198
    %v903 = vunpack.c.h.b16 %v198
    %v904 = vunpack.c.l.b16 %v199
    %v905 = vunpack.c.l.b16 %v200
    %v906 = vunpack.c.h.b16 %v200
    %v907 = vunpack.c.l.b16 %v201
    %v908 = vunpack.c.h.b16 %v201
    %v909 = vunpack.c.l.b16 %v202
    %v910 = vunpack.c.l.b16 %v203
    %v911 = vunpack.c.h.b16 %v203
    %v912 = vunpack.c.l.b16 %v204
    %v913 = vunpack.c.h.b16 %v204
    %v914 = vunpack.c.l.b16 %v205
    %v915 = vunpack.c.l.b16 %v206
    %v916 = vunpack.c.h.b16 %v206
    %v917 = vunpack.c.l.b16 %v207
    %v918 = vunpack.c.h.b16 %v207
    %v919 = vunpack.c.l.b16 %v208
    %v920 = vunpack.c.l.b16 %v209
    %v921 = vunpack.c.h.b16 %v209
    %v922 = vunpack.c.l.b16 %v210
    %v923 = vunpack.c.h.b16 %v210
    %v924 = vunpack.c.l.b16 %v211
    %v925 = vunpack.c.l.b16 %v212
    %v926 = vunpack.c.h.b16 %v212
    %v927 = vunpack.c.l.b16 %v213
    %v928 = vunpack.c.h.b16 %v213
    %v929 = vunpack.c.l.b16 %v214
    %v930 = vunpack.c.l.b16 %v215
    %v931 = vunpack.c.h.b16 %v215
    %v932 = vunpack.c.l.b16 %v216
    %v933 = vunpack.c.h.b16 %v216
    %v934 = vunpack.c.l.b16 %v217
    %v935 = vunpack.c.l.b16 %v218
    %v936 = vunpack.c.h.b16 %v218
    %v937 = vunpack.c.l.b16 %v219
    %v938 = vunpack.c.h.b16 %v219
    %v939 = vunpack.c.l.b16 %v220
    %v940 = vunpack.c.l.b16 %v221
    %v941 = vunpack.c.h.b16 %v221
    %v942 = vunpack.c.l.b16 %v222
    %v943 = vunpack.c.h.b16 %v222
    %v944 = vunpack.c.l.b16 %v223
    %v945 = vunpack.c.l.b16 %v224
    %v946 = vunpack.c.h.b16 %v224
    %v947 = vunpack.c.l.b16 %v225
    %v948 = vunpack.c.h.b16 %v225
    %v949 = vunpack.c.l.b16 %v226
    %v950 = vunpack.c.l.b16 %v227
    %v951 = vunpack.c.h.b16 %v227
    %v952 = vunpack.c.l.b16 %v228
    %v953 = vunpack.c.h.b16 %v228
    %v954 = vunpack.c.l.b16 %v229
    %v955 = vunpack.c.l.b16 %v230
    %v956 = vunpack.c.h.b16 %v230
    %v957 = vunpack.c.l.b16 %v231
    %v958 = vunpack.c.h.b16 %v231
    %v959 = vunpack.c.l.b16 %v232
    %v960 = vunpack.c.l.b16 %v233
    %v961 = vunpack.c.h.b16 %v233
    %v962 = vunpack.c.l.b16 %v234
    %v963 = vunpack.c.h.b16 %v234
    %v964 = vunpack.c.l.b16 %v235
    %v965 = vunpack.c.l.b16 %v236
    %v966 = vunpack.c.h.b16 %v236
    %v967 = vunpack.c.l.b16 %v237
    %v968 = vunpack.c.h.b16 %v237
    %v969 = vunpack.c.l.b16 %v238
    %v970 = vunpack.c.l.b16 %v239
    %v971 = vunpack.c.h.b16 %v239
    %v972 = vunpack.c.l.b16 %v240
    %v973 = vunpack.c.h.b16 %v240
    %v974 = vunpack.c.l.b16 %v241
    %v975 = vunpack.c.l.b16 %v242
    %v976 = vunpack.c.h.b16 %v242
    %v977 = vunpack.c.l.b16 %v243
    %v978 = vunpack.c.h.b16 %v243
    %v979 = vunpack.c.l.b16 %v244
    %v980 = vunpack.c.l.b16 %v245
    %v981 = vunpack.c.h.b16 %v245
    %v982 = vunpack.c.l.b16 %v246
    %v983 = vunpack.c.h.b16 %v246
    %v984 = vunpack.c.l.b16 %v247
    %v985 = vunpack.c.l.b16 %v248
    %v986 = vunpack.c.h.b16 %v248
    %v987 = vunpack.c.l.b16 %v249
    %v988 = vunpack.c.h.b16 %v249
    %v989 = vunpack.c.l.b16 %v250
    %v990 = vunpack.c.l.b16 %v251
    %v991 = vunpack.c.h.b16 %v251
    %v992 = vunpack.c.l.b16 %v252
    %v993 = vunpack.c.h.b16 %v252
    %v994 = vunpack.c.l.b16 %v253
    %v995 = vunpack.c.l.b16 %v254
    %v996 = vunpack.c.h.b16 %v254
    %v997 = vunpack.c.l.b16 %v255
    %v998 = vunpack.c.h.b16 %v255
    %v999 = vunpack.c.l.b16 %v256
    %v1000 = vunpack.c.l.b16 %v257
    %v1001 = vunpack.c.h.b16 %v257
    %v1002 = vunpack.c.l.b16 %v258
    %v1003 = vunpack.c.h.b16 %v258
    %v1004 = vunpack.c.l.b16 %v259
    %v1005 = vunpack.c.l.b16 %v260
    %v1006 = vunpack.c.h.b16 %v260
    %v1007 = vunpack.c.l.b16 %v261
    %v1008 = vunpack.c.h.b16 %v261
    %v1009 = vunpack.c.l.b16 %v262
    %v1010 = vunpack.c.l.b16 %v263
    %v1011 = vunpack.c.h.b16 %v263
    %v1012 = vunpack.c.l.b16 %v264
    %v1013 = vunpack.c.h.b16 %v264
    %v1014 = vunpack.c.l.b16 %v265
    %v1015 = vunpack.c.l.b16 %v266
    %v1016 = vunpack.c.h.b16 %v266
    %v1017 = vunpack.c.l.b16 %v267
    %v1018 = vunpack.c.h.b16 %v267
    %v1019 = vunpack.c.l.b16 %v268
    %v1020 = vunpack.c.l.b16 %v269
    %v1021 = vunpack.c.h.b16 %v269
    %v1022 = vunpack.c.l.b16 %v270
    %v1023 = vunpack.c.h.b16 %v270
    %v1024 = vunpack.c.l.b16 %v271
    %v1025 = vunpack.c.l.b16 %v272
    %v1026 = vunpack.c.h.b16 %v272
    %v1027 = vunpack.c.l.b16 %v273
    %v1028 = vunpack.c.h.b16 %v273
    %v1029 = vunpack.c.l.b16 %v274
    %v1030 = vunpack.c.l.b16 %v275
    %v1031 = vunpack.c.h.b16 %v275
    %v1032 = vunpack.c.l.b16 %v276
    %v1033 = vunpack.c.h.b16 %v276
    %v1034 = vunpack.c.l.b16 %v277
    %v1035 = vunpack.c.l.b16 %v278
    %v1036 = vunpack.c.h.b16 %v278
    %v1037 = vunpack.c.l.b16 %v279
    %v1038 = vunpack.c.h.b16 %v279
    %v1039 = vunpack.c.l.b16 %v280
    %v1040 = vunpack.c.l.b16 %v281
    %v1041 = vunpack.c.h.b16 %v281
    %v1042 = vunpack.c.l.b16 %v282
    %v1043 = vunpack.c.h.b16 %v282
    %v1044 = vunpack.c.l.b16 %v283
    %v1045 = vunpack.c.l.b16 %v284
    %v1046 = vunpack.c.h.b16 %v284
    %v1047 = vunpack.c.l.b16 %v285
    %v1048 = vunpack.c.h.b16 %v285
    %v1049 = vunpack.c.l.b16 %v286
    %v1050 = vunpack.c.l.b16 %v287
    %v1051 = vunpack.c.h.b16 %v287
    %v1052 = vunpack.c.l.b16 %v288
    %v1053 = vunpack.c.h.b16 %v288
    %v1054 = vunpack.c.l.b16 %v289
    %v1055 = vunpack.c.l.b16 %v290
    %v1056 = vunpack.c.h.b16 %v290
    %v1057 = vunpack.c.l.b16 %v291
    %v1058 = vunpack.c.h.b16 %v291
    %v1059 = vunpack.c.l.b16 %v292
    %v1060 = vunpack.c.l.b16 %v293
    %v1061 = vunpack.c.h.b16 %v293
    %v1062 = vunpack.c.l.b16 %v294
    %v1063 = vunpack.c.h.b16 %v294
    %v1064 = vunpack.c.l.b16 %v295
    %v1065 = vunpack.c.l.b16 %v296
    %v1066 = vunpack.c.h.b16 %v296
    %v1067 = vunpack.c.l.b16 %v297
    %v1068 = vunpack.c.h.b16 %v297
    %v1069 = vunpack.c.l.b16 %v298
    %v1070 = vunpack.c.l.b16 %v299
    %v1071 = vunpack.c.h.b16 %v299
    %v1072 = vunpack.c.l.b16 %v300
    %v1073 = vunpack.c.h.b16 %v300
    %v1074 = vunpack.c.l.b16 %v301
    %v1075 = vunpack.c.l.b16 %v302
    %v1076 = vunpack.c.h.b16 %v302
    %v1077 = vunpack.c.l.b16 %v303
    %v1078 = vunpack.c.h.b16 %v303
    %v1079 = vunpack.c.l.b16 %v304
    %v1080 = vunpack.c.l.b16 %v305
    %v1081 = vunpack.c.h.b16 %v305
    %v1082 = vunpack.c.l.b16 %v306
    %v1083 = vunpack.c.h.b16 %v306
    %v1084 = vunpack.c.l.b16 %v307
    %v1085 = vunpack.c.l.b16 %v308
    %v1086 = vunpack.c.h.b16 %v308
    %v1087 = vunpack.c.l.b16 %v309
    %v1088 = vunpack.c.h.b16 %v309
    %v1089 = vunpack.c.l.b16 %v310
    %v1090 = vunpack.c.l.b16 %v311
    %v1091 = vunpack.c.h.b16 %v311
    %v1092 = vunpack.c.l.b16 %v312
    %v1093 = vunpack.c.h.b16 %v312
    %v1094 = vunpack.c.l.b16 %v313
    %v1095 = vunpack.c.l.b16 %v314
    %v1096 = vunpack.c.h.b16 %v314
    %v1097 = vunpack.c.l.b16 %v315
    %v1098 = vunpack.c.h.b16 %v315
    %v1099 = vunpack.c.l.b16 %v316
    %v1100 = vunpack.c.l.b16 %v317
    %v1101 = vunpack.c.h.b16 %v317
    %v1102 = vunpack.c.l.b16 %v318
    %v1103 = vunpack.c.h.b16 %v318
    %v1104 = vunpack.c.l.b16 %v319
    %v1105 = vunpack.c.l.b16 %v320
    %v1106 = vunpack.c.h.b16 %v320
    %v1107 = vunpack.c.l.b16 %v321
    %v1108 = vunpack.c.h.b16 %v321
    %v1109 = vunpack.c.l.b16 %v322
    %v1110 = vunpack.c.l.b16 %v323
    %v1111 = vunpack.c.h.b16 %v323
    %v1112 = vunpack.c.l.b16 %v324
    %v1113 = vunpack.c.h.b16 %v324
    %v1114 = vunpack.c.l.b16 %v325
    %v1115 = vunpack.c.l.b16 %v326
    %v1116 = vunpack.c.h.b16 %v326
    %v1117 = vunpack.c.l.b16 %v327
    %v1118 = vunpack.c.h.b16 %v327
    %v1119 = vunpack.c.l.b16 %v328
    %v1120 = vunpack.c.l.b16 %v329
    %v1121 = vunpack.c.h.b16 %v329
    %v1122 = vunpack.c.l.b16 %v330
    %v1123 = vunpack.c.h.b16 %v330
    %v1124 = vunpack.c.l.b16 %v331
    %v1125 = vunpack.c.l.b16 %v332
    %v1126 = vunpack.c.h.b16 %v332
    %v1127 = vunpack.c.l.b16 %v333
    %v1128 = vunpack.c.h.b16 %v333
    %v1129 = vunpack.c.l.b16 %v334
    %v1130 = vunpack.c.l.b16 %v335
    %v1131 = vunpack.c.h.b16 %v335
    %v1132 = vunpack.c.l.b16 %v336
    %v1133 = vunpack.c.h.b16 %v336
    %v1134 = vunpack.c.l.b16 %v337
    %v1135 = vunpack.c.l.b16 %v338
    %v1136 = vunpack.c.h.b16 %v338
    %v1137 = vunpack.c.l.b16 %v339
    %v1138 = vunpack.c.h.b16 %v339
    %v1139 = vunpack.c.l.b16 %v340
    %v1140 = vunpack.c.l.b16 %v341
    %v1141 = vunpack.c.h.b16 %v341
    %v1142 = vunpack.c.l.b16 %v342
    %v1143 = vunpack.c.h.b16 %v342
    %v1144 = vunpack.c.l.b16 %v343
    %v1145 = vunpack.c.l.b16 %v344
    %v1146 = vunpack.c.h.b16 %v344
    %v1147 = vunpack.c.l.b16 %v345
    %v1148 = vunpack.c.h.b16 %v345
    %v1149 = vunpack.c.l.b16 %v346
    %v1150 = vunpack.c.l.b16 %v347
    %v1151 = vunpack.c.h.b16 %v347
    %v1152 = vunpack.c.l.b16 %v348
    %v1153 = vunpack.c.h.b16 %v348
    %v1154 = vunpack.c.l.b16 %v349
    %v1155 = vunpack.c.l.b16 %v350
    %v1156 = vunpack.c.h.b16 %v350
    %v1157 = vunpack.c.l.b16 %v351
    %v1158 = vunpack.c.h.b16 %v351
    %v1159 = vunpack.c.l.b16 %v352
    %v1160 = vunpack.c.l.b16 %v353
    %v1161 = vunpack.c.h.b16 %v353
    %v1162 = vunpack.c.l.b16 %v354
    %v1163 = vunpack.c.h.b16 %v354
    %v1164 = vunpack.c.l.b16 %v355
    %v1165 = vunpack.c.l.b16 %v356
    %v1166 = vunpack.c.h.b16 %v356
    %v1167 = vunpack.c.l.b16 %v357
    %v1168 = vunpack.c.h.b16 %v357
    %v1169 = vunpack.c.l.b16 %v358
    %v1170 = vpack.c.b16 %v685, %v680
    %v1171 = vpack.c.b16 %v686, %v681
    %v1172 = vpack.c.b16 %v687, %v682
    %v1173 = vpack.c.b16 %v688, %v683
    %v1174 = vpack.c.b16 %v689, %v684
    %v1175 = vpack.c.b16 %v695, %v690
    %v1176 = vpack.c.b16 %v696, %v691
    %v1177 = vpack.c.b16 %v697, %v692
    %v1178 = vpack.c.b16 %v698, %v693
    %v1179 = vpack.c.b16 %v699, %v694
    %v1180 = vpack.c.b16 %v705, %v700
    %v1181 = vpack.c.b16 %v706, %v701
    %v1182 = vpack.c.b16 %v707, %v702
    %v1183 = vpack.c.b16 %v708, %v703
    %v1184 = vpack.c.b16 %v709, %v704
    %v1185 = vpack.c.b16 %v715, %v710
    %v1186 = vpack.c.b16 %v716, %v711
    %v1187 = vpack.c.b16 %v717, %v712
    %v1188 = vpack.c.b16 %v718, %v713
    %v1189 = vpack.c.b16 %v719, %v714
    %v1190 = vpack.c.b16 %v725, %v720
    %v1191 = vpack.c.b16 %v726, %v721
    %v1192 = vpack.c.b16 %v727, %v722
    %v1193 = vpack.c.b16 %v728, %v723
    %v1194 = vpack.c.b16 %v729, %v724
    %v1195 = vpack.c.b16 %v735, %v730
    %v1196 = vpack.c.b16 %v736, %v731
    %v1197 = vpack.c.b16 %v737, %v732
    %v1198 = vpack.c.b16 %v738, %v733
    %v1199 = vpack.c.b16 %v739, %v734
    %v1200 = vpack.c.b16 %v745, %v740
    %v1201 = vpack.c.b16 %v746, %v741
    %v1202 = vpack.c.b16 %v747, %v742
    %v1203 = vpack.c.b16 %v748, %v743
    %v1204 = vpack.c.b16 %v749, %v744
    %v1205 = vpack.c.b16 %v755, %v750
    %v1206 = vpack.c.b16 %v756, %v751
    %v1207 = vpack.c.b16 %v757, %v752
    %v1208 = vpack.c.b16 %v758, %v753
    %v1209 = vpack.c.b16 %v759, %v754
    %v1210 = vpack.c.b16 %v765, %v760
    %v1211 = vpack.c.b16 %v766, %v761
    %v1212 = vpack.c.b16 %v767, %v762
    %v1213 = vpack.c.b16 %v768, %v763
    %v1214 = vpack.c.b16 %v769, %v764
    %v1215 = vpack.c.b16 %v775, %v770
    %v1216 = vpack.c.b16 %v776, %v771
    %v1217 = vpack.c.b16 %v777, %v772
    %v1218 = vpack.c.b16 %v778, %v773
    %v1219 = vpack.c.b16 %v779, %v774
    %v1220 = vpack.c.b16 %v785, %v780
    %v1221 = vpack.c.b16 %v786, %v781
    %v1222 = vpack.c.b16 %v787, %v782
    %v1223 = vpack.c.b16 %v788, %v783
    %v1224 = vpack.c.b16 %v789, %v784
    %v1225 = vpack.c.b16 %v795, %v790
    %v1226 = vpack.c.b16 %v796, %v791
    %v1227 = vpack.c.b16 %v797, %v792
    %v1228 = vpack.c.b16 %v798, %v793
    %v1229 = vpack.c.b16 %v799, %v794
    %v1230 = vpack.c.b16 %v805, %v800
    %v1231 = vpack.c.b16 %v806, %v801
    %v1232 = vpack.c.b16 %v807, %v802
    %v1233 = vpack.c.b16 %v808, %v803
    %v1234 = vpack.c.b16 %v809, %v804
    %v1235 = vpack.c.b16 %v815, %v810
    %v1236 = vpack.c.b16 %v816, %v811
    %v1237 = vpack.c.b16 %v817, %v812
    %v1238 = vpack.c.b16 %v818, %v813
    %v1239 = vpack.c.b16 %v819, %v814
    %v1240 = vpack.c.b16 %v825, %v820
    %v1241 = vpack.c.b16 %v826, %v821
    %v1242 = vpack.c.b16 %v827, %v822
    %v1243 = vpack.c.b16 %v828, %v823
    %v1244 = vpack.c.b16 %v829, %v824
    %v1245 = vpack.c.b16 %v835, %v830
    %v1246 = vpack.c.b16 %v836, %v831
    %v1247 = vpack.c.b16 %v837, %v832
    %v1248 = vpack.c.b16 %v838, %v833
    %v1249 = vpack.c.b16 %v839, %v834
    %v1250 = vpack.c.b16 %v845, %v840
    %v1251 = vpack.c.b16 %v846, %v841
    %v1252 = vpack.c.b16 %v847, %v842
    %v1253 = vpack.c.b16 %v848, %v843
    %v1254 = vpack.c.b16 %v849, %v844
    %v1255 = vpack.c.b16 %v855, %v850
    %v1256 = vpack.c.b16 %v856, %v851
    %v1257 = vpack.c.b16 %v857, %v852
    %v1258 = vpack.c.b16 %v858, %v853
    %v1259 = vpack.c.b16 %v859, %v854
    %v1260 = vpack.c.b16 %v865, %v860
    %v1261 = vpack.c.b16 %v866, %v861
    %v1262 = vpack.c.b16 %v867, %v862
    %v1263 = vpack.c.b16 %v868, %v863
    %v1264 = vpack.c.b16 %v869, %v864
    %v1265 = vpack.c.b16 %v875, %v870
    %v1266 = vpack.c.b16 %v876, %v871
    %v1267 = vpack.c.b16 %v877, %v872
    %v1268 = vpack.c.b16 %v878, %v873
    %v1269 = vpack.c.b16 %v879, %v874
    %v1270 = vpack.c.b16 %v885, %v880
    %v1271 = vpack.c.b16 %v886, %v881
    %v1272 = vpack.c.b16 %v887, %v882
    %v1273 = vpack.c.b16 %v888, %v883
    %v1274 = vpack.c.b16 %v889, %v884
    %v1275 = vpack.c.b16 %v895, %v890
    %v1276 = vpack.c.b16 %v896, %v891
    %v1277 = vpack.c.b16 %v897, %v892
    %v1278 = vpack.c.b16 %v898, %v893
    %v1279 = vpack.c.b16 %v899, %v894
    %v1280 = vpack.c.b16 %v905, %v900
    %v1281 = vpack.c.b16 %v906, %v901
    %v1282 = vpack.c.b16 %v907, %v902
    %v1283 = vpack.c.b16 %v908, %v903
    %v1284 = vpack.c.b16 %v909, %v904
    %v1285 = vpack.c.b16 %v915, %v910
    %v1286 = vpack.c.b16 %v916, %v911
    %v1287 = vpack.c.b16 %v917, %v912
    %v1288 = vpack.c.b16 %v918, %v913
    %v1289 = vpack.c.b16 %v919, %v914
    %v1290 = vpack.c.b16 %v925, %v920
    %v1291 = vpack.c.b16 %v926, %v921
    %v1292 = vpack.c.b16 %v927, %v922
    %v1293 = vpack.c.b16 %v928, %v923
    %v1294 = vpack.c.b16 %v929, %v924
    %v1295 = vpack.c.b16 %v935, %v930
    %v1296 = vpack.c.b16 %v936, %v931
    %v1297 = vpack.c.b16 %v937, %v932
    %v1298 = vpack.c.b16 %v938, %v933
    %v1299 = vpack.c.b16 %v939, %v934
    %v1300 = vpack.c.b16 %v945, %v940
    %v1301 = vpack.c.b16 %v946, %v941
    %v1302 = vpack.c.b16 %v947, %v942
    %v1303 = vpack.c.b16 %v948, %v943
    %v1304 = vpack.c.b16 %v949, %v944
    %v1305 = vpack.c.b16 %v955, %v950
    %v1306 = vpack.c.b16 %v956, %v951
    %v1307 = vpack.c.b16 %v957, %v952
    %v1308 = vpack.c.b16 %v958, %v953
    %v1309 = vpack.c.b16 %v959, %v954
    %v1310 = vpack.c.b16 %v965, %v960
    %v1311 = vpack.c.b16 %v966, %v961
    %v1312 = vpack.c.b16 %v967, %v962
    %v1313 = vpack.c.b16 %v968, %v963
    %v1314 = vpack.c.b16 %v969, %v964
    %v1315 = vpack.c.b16 %v975, %v970
    %v1316 = vpack.c.b16 %v976, %v971
    %v1317 = vpack.c.b16 %v977, %v972
    %v1318 = vpack.c.b16 %v978, %v973
    %v1319 = vpack.c.b16 %v979, %v974
    %v1320 = vpack.c.b16 %v985, %v980
    %v1321 = vpack.c.b16 %v986, %v981
    %v1322 = vpack.c.b16 %v987, %v982
    %v1323 = vpack.c.b16 %v988, %v983
    %v1324 = vpack.c.b16 %v989, %v984
    %v1325 = vpack.c.b16 %v995, %v990
    %v1326 = vpack.c.b16 %v996, %v991
    %v1327 = vpack.c.b16 %v997, %v992
    %v1328 = vpack.c.b16 %v998, %v993
    %v1329 = vpack.c.b16 %v999, %v994
    %v1330 = vpack.c.b16 %v1005, %v1000
    %v1331 = vpack.c.b16 %v1006, %v1001
    %v1332 = vpack.c.b16 %v1007, %v1002
    %v1333 = vpack.c.b16 %v1008, %v1003
    %v1334 = vpack.c.b16 %v1009, %v1004
    %v1335 = vpack.c.b16 %v1015, %v1010
    %v1336 = vpack.c.b16 %v1016, %v1011
    %v1337 = vpack.c.b16 %v1017, %v1012
    %v1338 = vpack.c.b16 %v1018, %v1013
    %v1339 = vpack.c.b16 %v1019, %v1014
    %v1340 = vpack.c.b16 %v1025, %v1020
    %v1341 = vpack.c.b16 %v1026, %v1021
    %v1342 = vpack.c.b16 %v1027, %v1022
    %v1343 = vpack.c.b16 %v1028, %v1023
    %v1344 = vpack.c.b16 %v1029, %v1024
    %v1345 = vpack.c.b16 %v1035, %v1030
    %v1346 = vpack.c.b16 %v1036, %v1031
    %v1347 = vpack.c.b16 %v1037, %v1032
    %v1348 = vpack.c.b16 %v1038, %v1033
    %v1349 = vpack.c.b16 %v1039, %v1034
    %v1350 = vpack.c.b16 %v1045, %v1040
    %v1351 = vpack.c.b16 %v1046, %v1041
    %v1352 = vpack.c.b16 %v1047, %v1042
    %v1353 = vpack.c.b16 %v1048, %v1043
    %v1354 = vpack.c.b16 %v1049, %v1044
    %v1355 = vpack.c.b16 %v1055, %v1050
    %v1356 = vpack.c.b16 %v1056, %v1051
    %v1357 = vpack.c.b16 %v1057, %v1052
    %v1358 = vpack.c.b16 %v1058, %v1053
    %v1359 = vpack.c.b16 %v1059, %v1054
    %v1360 = vpack.c.b16 %v1065, %v1060
    %v1361 = vpack.c.b16 %v1066, %v1061
    %v1362 = vpack.c.b16 %v1067, %v1062
    %v1363 = vpack.c.b16 %v1068, %v1063
    %v1364 = vpack.c.b16 %v1069, %v1064
    %v1365 = vpack.c.b16 %v1075, %v1070
    %v1366 = vpack.c.b16 %v1076, %v1071
    %v1367 = vpack.c.b16 %v1077, %v1072
    %v1368 = vpack.c.b16 %v1078, %v1073
    %v1369 = vpack.c.b16 %v1079, %v1074
    %v1370 = vpack.c.b16 %v1085, %v1080
    %v1371 = vpack.c.b16 %v1086, %v1081
    %v1372 = vpack.c.b16 %v1087, %v1082
    %v1373 = vpack.c.b16 %v1088, %v1083
    %v1374 = vpack.c.b16 %v1089, %v1084
    %v1375 = vpack.c.b16 %v1095, %v1090
    %v1376 = vpack.c.b16 %v1096, %v1091
    %v1377 = vpack.c.b16 %v1097, %v1092
    %v1378 = vpack.c.b16 %v1098, %v1093
    %v1379 = vpack.c.b16 %v1099, %v1094
    %v1380 = vpack.c.b16 %v1105, %v1100
    %v1381 = vpack.c.b16 %v1106, %v1101
    %v1382 = vpack.c.b16 %v1107, %v1102
    %v1383 = vpack.c.b16 %v1108, %v1103
    %v1384 = vpack.c.b16 %v1109, %v1104
    %v1385 = vpack.c.b16 %v1115, %v1110
    %v1386 = vpack.c.b16 %v1116, %v1111
    %v1387 = vpack.c.b16 %v1117, %v1112
    %v1388 = vpack.c.b16 %v1118, %v1113
    %v1389 = vpack.c.b16 %v1119, %v1114
    %v1390 = vpack.c.b16 %v1125, %v1120
    %v1391 = vpack.c.b16 %v1126, %v1121
    %v1392 = vpack.c.b16 %v1127, %v1122
    %v1393 = vpack.c.b16 %v1128, %v1123
    %v1394 = vpack.c.b16 %v1129, %v1124
    %v1395 = vpack.c.b16 %v1135, %v1130
    %v1396 = vpack.c.b16 %v1136, %v1131
    %v1397 = vpack.c.b16 %v1137, %v1132
    %v1398 = vpack.c.b16 %v1138, %v1133
    %v1399 = vpack.c.b16 %v1139, %v1134
    %v1400 = vpack.c.b16 %v1145, %v1140
    %v1401 = vpack.c.b16 %v1146, %v1141
    %v1402 = vpack.c.b16 %v1147, %v1142
    %v1403 = vpack.c.b16 %v1148, %v1143
    %v1404 = vpack.c.b16 %v1149, %v1144
    %v1405 = vpack.c.b16 %v1155, %v1150
    %v1406 = vpack.c.b16 %v1156, %v1151
    %v1407 = vpack.c.b16 %v1157, %v1152
    %v1408 = vpack.c.b16 %v1158, %v1153
    %v1409 = vpack.c.b16 %v1159, %v1154
    %v1410 = vpack.c.b16 %v1165, %v1160
    %v1411 = vpack.c.b16 %v1166, %v1161
    %v1412 = vpack.c.b16 %v1167, %v1162
    %v1413 = vpack.c.b16 %v1168, %v1163
    %v1414 = vpack.c.b16 %v1169, %v1164
    %vm1660 = vcmask 130048
    %v1662 = vsel %vm1660, %v64, 0
    %1664 = vmatprep.subr.bf16.mxu0 %v1206
    %1665 = vmatpush1.bf16.msra.mxu0 %v1205
    %1666 = vmatprep.subr.bf16.mxu0 %v1201
    %1667 = vmatpush1.bf16.msra.mxu0 %v1200
    %1668 = vmatprep.subr.bf16.mxu0 %v1196
    %1669 = vmatpush1.bf16.msra.mxu0 %v1195
    %1670 = vmatprep.subr.bf16.mxu0 %v1191
    %1671 = vmatpush1.bf16.msra.mxu0 %v1190
    %1672 = vmatprep.subr.bf16.mxu0 %v1186
    %1673 = vmatpush1.bf16.msra.mxu0 %v1185
    %1674 = vmatprep.subr.bf16.mxu0 %v1181
    %1675 = vmatpush1.bf16.msra.mxu0 %v1180
    %1676 = vmatprep.subr.bf16.mxu0 %v1176
    %1677 = vmatpush1.bf16.msra.mxu0 %v1175
    %1678 = vmatprep.subr.bf16.mxu0 %v1171
    %1679 = vmatpush1.bf16.msra.mxu0 %v1170
    %1680 = vmatprep.subr.bf16.mxu0 %v1246
    %1681 = vmatpush2.bf16.msra.mxu0 %v1245
    %1682 = vmatprep.subr.bf16.mxu0 %v1241
    %1683 = vmatpush2.bf16.msra.mxu0 %v1240
    %1684 = vmatprep.subr.bf16.mxu0 %v1236
    %1685 = vmatpush2.bf16.msra.mxu0 %v1235
    %1686 = vmatprep.subr.bf16.mxu0 %v1231
    %1687 = vmatpush2.bf16.msra.mxu0 %v1230
    %1688 = vmatprep.subr.bf16.mxu0 %v1226
    %1689 = vmatpush2.bf16.msra.mxu0 %v1225
    %1690 = vmatprep.subr.bf16.mxu0 %v1221
    %1691 = vmatpush2.bf16.msra.mxu0 %v1220
    %1692 = vmatprep.subr.bf16.mxu0 %v1216
    %1693 = vmatpush2.bf16.msra.mxu0 %v1215
    %1694 = vmatprep.subr.bf16.mxu0 %v1211
    %1695 = vmatpush2.bf16.msra.mxu0 %v1210
    %1696 = vmatprep.mubr.bf16.mxu0 %v59
    %1697 = vmatmul.mubr.bf16.gmra.mxu0 %v58
    %v1698 = vpop.f32.mrf.mxu0
    %v1699 = vadd.f32 %v364, %v1698
    %v1700 = vpop.f32.mrf.mxu0
    %v1701 = vadd.f32 %v368, %v1700
    %v1702 = vpop.f32.mrf.mxu0
    %v1703 = vpop.f32.mrf.mxu0
    %1704 = vdwg.mxu0
    %1705 = vmatprep.subr.bf16.mxu0 %v1286
    %1706 = vmatpush1.bf16.msra.mxu0 %v1285
    %1707 = vmatprep.subr.bf16.mxu0 %v1281
    %1708 = vmatpush1.bf16.msra.mxu0 %v1280
    %1709 = vmatprep.subr.bf16.mxu0 %v1276
    %1710 = vmatpush1.bf16.msra.mxu0 %v1275
    %1711 = vmatprep.subr.bf16.mxu0 %v1271
    %1712 = vmatpush1.bf16.msra.mxu0 %v1270
    %1713 = vmatprep.subr.bf16.mxu0 %v1266
    %1714 = vmatpush1.bf16.msra.mxu0 %v1265
    %1715 = vmatprep.subr.bf16.mxu0 %v1261
    %1716 = vmatpush1.bf16.msra.mxu0 %v1260
    %1717 = vmatprep.subr.bf16.mxu0 %v1256
    %1718 = vmatpush1.bf16.msra.mxu0 %v1255
    %1719 = vmatprep.subr.bf16.mxu0 %v1251
    %1720 = vmatpush1.bf16.msra.mxu0 %v1250
    %1721 = vmatprep.subr.bf16.mxu0 %v1326
    %1722 = vmatpush2.bf16.msra.mxu0 %v1325
    %1723 = vmatprep.subr.bf16.mxu0 %v1321
    %1724 = vmatpush2.bf16.msra.mxu0 %v1320
    %1725 = vmatprep.subr.bf16.mxu0 %v1316
    %1726 = vmatpush2.bf16.msra.mxu0 %v1315
    %1727 = vmatprep.subr.bf16.mxu0 %v1311
    %1728 = vmatpush2.bf16.msra.mxu0 %v1310
    %1729 = vmatprep.subr.bf16.mxu0 %v1306
    %1730 = vmatpush2.bf16.msra.mxu0 %v1305
    %1731 = vmatprep.subr.bf16.mxu0 %v1301
    %1732 = vmatpush2.bf16.msra.mxu0 %v1300
    %1733 = vmatprep.subr.bf16.mxu0 %v1296
    %1734 = vmatpush2.bf16.msra.mxu0 %v1295
    %1735 = vmatprep.subr.bf16.mxu0 %v1291
    %1736 = vmatpush2.bf16.msra.mxu0 %v1290
    %1737 = vmatprep.mubr.bf16.mxu0 %v61
    %1738 = vmatmul.mubr.bf16.gmra.mxu0 %v60
    %v1739 = vpop.f32.mrf.mxu0
    %v1740 = vadd.f32 %v1699, %v1739
    %v1741 = vpop.f32.mrf.mxu0
    %v1742 = vadd.f32 %v1701, %v1741
    %v1743 = vpop.f32.mrf.mxu0
    %v1744 = vpop.f32.mrf.mxu0
    %1745 = vdwg.mxu0
    %1746 = vmatprep.subr.bf16.mxu0 %v1366
    %1747 = vmatpush1.bf16.msra.mxu0 %v1365
    %1748 = vmatprep.subr.bf16.mxu0 %v1361
    %1749 = vmatpush1.bf16.msra.mxu0 %v1360
    %1750 = vmatprep.subr.bf16.mxu0 %v1356
    %1751 = vmatpush1.bf16.msra.mxu0 %v1355
    %1752 = vmatprep.subr.bf16.mxu0 %v1351
    %1753 = vmatpush1.bf16.msra.mxu0 %v1350
    %1754 = vmatprep.subr.bf16.mxu0 %v1346
    %1755 = vmatpush1.bf16.msra.mxu0 %v1345
    %1756 = vmatprep.subr.bf16.mxu0 %v1341
    %1757 = vmatpush1.bf16.msra.mxu0 %v1340
    %1758 = vmatprep.subr.bf16.mxu0 %v1336
    %1759 = vmatpush1.bf16.msra.mxu0 %v1335
    %1760 = vmatprep.subr.bf16.mxu0 %v1331
    %1761 = vmatpush1.bf16.msra.mxu0 %v1330
    %1762 = vmatprep.subr.bf16.mxu0 %v1406
    %1763 = vmatpush2.bf16.msra.mxu0 %v1405
    %1764 = vmatprep.subr.bf16.mxu0 %v1401
    %1765 = vmatpush2.bf16.msra.mxu0 %v1400
    %1766 = vmatprep.subr.bf16.mxu0 %v1396
    %1767 = vmatpush2.bf16.msra.mxu0 %v1395
    %1768 = vmatprep.subr.bf16.mxu0 %v1391
    %1769 = vmatpush2.bf16.msra.mxu0 %v1390
    %1770 = vmatprep.subr.bf16.mxu0 %v1386
    %1771 = vmatpush2.bf16.msra.mxu0 %v1385
    %1772 = vmatprep.subr.bf16.mxu0 %v1381
    %1773 = vmatpush2.bf16.msra.mxu0 %v1380
    %1774 = vmatprep.subr.bf16.mxu0 %v1376
    %1775 = vmatpush2.bf16.msra.mxu0 %v1375
    %1776 = vmatprep.subr.bf16.mxu0 %v1371
    %1777 = vmatpush2.bf16.msra.mxu0 %v1370
    %1778 = vmatprep.mubr.bf16.mxu0 %v63
    %1779 = vmatmul.mubr.bf16.gmra.mxu0 %v62
    %v1780 = vpop.f32.mrf.mxu0
    %v1781 = vadd.f32 %v1740, %v1780
    %v1782 = vpop.f32.mrf.mxu0
    %v1783 = vadd.f32 %v1742, %v1782
    %v1784 = vpop.f32.mrf.mxu0
    %v1785 = vpop.f32.mrf.mxu0
    %1786 = vdwg.mxu0
    %1787 = vmatprep.subr.bf16.mxu0 0
    %1788 = vmatpush1.bf16.msra.mxu0 0
    %1789 = vmatprep.subr.bf16.mxu0 0
    %1790 = vmatpush1.bf16.msra.mxu0 0
    %1791 = vmatprep.subr.bf16.mxu0 0
    %1792 = vmatpush1.bf16.msra.mxu0 0
    %1793 = vmatprep.subr.bf16.mxu0 0
    %1794 = vmatpush1.bf16.msra.mxu0 0
    %1795 = vmatprep.subr.bf16.mxu0 0
    %1796 = vmatpush1.bf16.msra.mxu0 0
    %1797 = vmatprep.subr.bf16.mxu0 0
    %1798 = vmatpush1.bf16.msra.mxu0 0
    %1799 = vmatprep.subr.bf16.mxu0 0
    %1800 = vmatpush1.bf16.msra.mxu0 0
    %1801 = vmatprep.subr.bf16.mxu0 %v1411
    %1802 = vmatpush1.bf16.msra.mxu0 %v1410
    %1803 = vmatprep.subr.bf16.mxu0 0
    %1804 = vmatpush2.bf16.msra.mxu0 0
    %1805 = vmatprep.subr.bf16.mxu0 0
    %1806 = vmatpush2.bf16.msra.mxu0 0
    %1807 = vmatprep.subr.bf16.mxu0 0
    %1808 = vmatpush2.bf16.msra.mxu0 0
    %1809 = vmatprep.subr.bf16.mxu0 0
    %1810 = vmatpush2.bf16.msra.mxu0 0
    %1811 = vmatprep.subr.bf16.mxu0 0
    %1812 = vmatpush2.bf16.msra.mxu0 0
    %1813 = vmatprep.subr.bf16.mxu0 0
    %1814 = vmatpush2.bf16.msra.mxu0 0
    %1815 = vmatprep.subr.bf16.mxu0 0
    %1816 = vmatpush2.bf16.msra.mxu0 0
    %1817 = vmatprep.subr.bf16.mxu0 0
    %1818 = vmatpush2.bf16.msra.mxu0 0
    %1819 = vmatprep.mubr.bf16.mxu0 0
    %1820 = vmatmul.mubr.bf16.gmra.mxu0 %v1662
    %v1821 = vpop.f32.mrf.mxu0
    %v1822 = vadd.f32 %v1781, %v1821
    %v1823 = vpop.f32.mrf.mxu0
    %v1824 = vadd.f32 %v1783, %v1823
    %v1825 = vpop.f32.mrf.mxu0
    %v1826 = vpop.f32.mrf.mxu0
    %1827 = vdwg.mxu0
    %1828 = vmatprep.subr.bf16.mxu0 %v1208
    %1829 = vmatpush1.bf16.msra.mxu0 %v1207
    %1830 = vmatprep.subr.bf16.mxu0 %v1203
    %1831 = vmatpush1.bf16.msra.mxu0 %v1202
    %1832 = vmatprep.subr.bf16.mxu0 %v1198
    %1833 = vmatpush1.bf16.msra.mxu0 %v1197
    %1834 = vmatprep.subr.bf16.mxu0 %v1193
    %1835 = vmatpush1.bf16.msra.mxu0 %v1192
    %1836 = vmatprep.subr.bf16.mxu0 %v1188
    %1837 = vmatpush1.bf16.msra.mxu0 %v1187
    %1838 = vmatprep.subr.bf16.mxu0 %v1183
    %1839 = vmatpush1.bf16.msra.mxu0 %v1182
    %1840 = vmatprep.subr.bf16.mxu0 %v1178
    %1841 = vmatpush1.bf16.msra.mxu0 %v1177
    %1842 = vmatprep.subr.bf16.mxu0 %v1173
    %1843 = vmatpush1.bf16.msra.mxu0 %v1172
    %1844 = vmatprep.subr.bf16.mxu0 %v1248
    %1845 = vmatpush2.bf16.msra.mxu0 %v1247
    %1846 = vmatprep.subr.bf16.mxu0 %v1243
    %1847 = vmatpush2.bf16.msra.mxu0 %v1242
    %1848 = vmatprep.subr.bf16.mxu0 %v1238
    %1849 = vmatpush2.bf16.msra.mxu0 %v1237
    %1850 = vmatprep.subr.bf16.mxu0 %v1233
    %1851 = vmatpush2.bf16.msra.mxu0 %v1232
    %1852 = vmatprep.subr.bf16.mxu0 %v1228
    %1853 = vmatpush2.bf16.msra.mxu0 %v1227
    %1854 = vmatprep.subr.bf16.mxu0 %v1223
    %1855 = vmatpush2.bf16.msra.mxu0 %v1222
    %1856 = vmatprep.subr.bf16.mxu0 %v1218
    %1857 = vmatpush2.bf16.msra.mxu0 %v1217
    %1858 = vmatprep.subr.bf16.mxu0 %v1213
    %1859 = vmatpush2.bf16.msra.mxu0 %v1212
    %1860 = vmatprep.mubr.bf16.mxu0 %v59
    %1861 = vmatmul.mubr.bf16.gmra.mxu0 %v58
    %v1862 = vpop.f32.mrf.mxu0
    %v1863 = vadd.f32 %v372, %v1862
    %v1864 = vpop.f32.mrf.mxu0
    %v1865 = vadd.f32 %v376, %v1864
    %v1866 = vpop.f32.mrf.mxu0
    %v1867 = vpop.f32.mrf.mxu0
    %1868 = vdwg.mxu0
    %1869 = vmatprep.subr.bf16.mxu0 %v1288
    %1870 = vmatpush1.bf16.msra.mxu0 %v1287
    %1871 = vmatprep.subr.bf16.mxu0 %v1283
    %1872 = vmatpush1.bf16.msra.mxu0 %v1282
    %1873 = vmatprep.subr.bf16.mxu0 %v1278
    %1874 = vmatpush1.bf16.msra.mxu0 %v1277
    %1875 = vmatprep.subr.bf16.mxu0 %v1273
    %1876 = vmatpush1.bf16.msra.mxu0 %v1272
    %1877 = vmatprep.subr.bf16.mxu0 %v1268
    %1878 = vmatpush1.bf16.msra.mxu0 %v1267
    %1879 = vmatprep.subr.bf16.mxu0 %v1263
    %1880 = vmatpush1.bf16.msra.mxu0 %v1262
    %1881 = vmatprep.subr.bf16.mxu0 %v1258
    %1882 = vmatpush1.bf16.msra.mxu0 %v1257
    %1883 = vmatprep.subr.bf16.mxu0 %v1253
    %1884 = vmatpush1.bf16.msra.mxu0 %v1252
    %1885 = vmatprep.subr.bf16.mxu0 %v1328
    %1886 = vmatpush2.bf16.msra.mxu0 %v1327
    %1887 = vmatprep.subr.bf16.mxu0 %v1323
    %1888 = vmatpush2.bf16.msra.mxu0 %v1322
    %1889 = vmatprep.subr.bf16.mxu0 %v1318
    %1890 = vmatpush2.bf16.msra.mxu0 %v1317
    %1891 = vmatprep.subr.bf16.mxu0 %v1313
    %1892 = vmatpush2.bf16.msra.mxu0 %v1312
    %1893 = vmatprep.subr.bf16.mxu0 %v1308
    %1894 = vmatpush2.bf16.msra.mxu0 %v1307
    %1895 = vmatprep.subr.bf16.mxu0 %v1303
    %1896 = vmatpush2.bf16.msra.mxu0 %v1302
    %1897 = vmatprep.subr.bf16.mxu0 %v1298
    %1898 = vmatpush2.bf16.msra.mxu0 %v1297
    %1899 = vmatprep.subr.bf16.mxu0 %v1293
    %1900 = vmatpush2.bf16.msra.mxu0 %v1292
    %1901 = vmatprep.mubr.bf16.mxu0 %v61
    %1902 = vmatmul.mubr.bf16.gmra.mxu0 %v60
    %v1903 = vpop.f32.mrf.mxu0
    %v1904 = vadd.f32 %v1863, %v1903
    %v1905 = vpop.f32.mrf.mxu0
    %v1906 = vadd.f32 %v1865, %v1905
    %v1907 = vpop.f32.mrf.mxu0
    %v1908 = vpop.f32.mrf.mxu0
    %1909 = vdwg.mxu0
    %1910 = vmatprep.subr.bf16.mxu0 %v1368
    %1911 = vmatpush1.bf16.msra.mxu0 %v1367
    %1912 = vmatprep.subr.bf16.mxu0 %v1363
    %1913 = vmatpush1.bf16.msra.mxu0 %v1362
    %1914 = vmatprep.subr.bf16.mxu0 %v1358
    %1915 = vmatpush1.bf16.msra.mxu0 %v1357
    %1916 = vmatprep.subr.bf16.mxu0 %v1353
    %1917 = vmatpush1.bf16.msra.mxu0 %v1352
    %1918 = vmatprep.subr.bf16.mxu0 %v1348
    %1919 = vmatpush1.bf16.msra.mxu0 %v1347
    %1920 = vmatprep.subr.bf16.mxu0 %v1343
    %1921 = vmatpush1.bf16.msra.mxu0 %v1342
    %1922 = vmatprep.subr.bf16.mxu0 %v1338
    %1923 = vmatpush1.bf16.msra.mxu0 %v1337
    %1924 = vmatprep.subr.bf16.mxu0 %v1333
    %1925 = vmatpush1.bf16.msra.mxu0 %v1332
    %1926 = vmatprep.subr.bf16.mxu0 %v1408
    %1927 = vmatpush2.bf16.msra.mxu0 %v1407
    %1928 = vmatprep.subr.bf16.mxu0 %v1403
    %1929 = vmatpush2.bf16.msra.mxu0 %v1402
    %1930 = vmatprep.subr.bf16.mxu0 %v1398
    %1931 = vmatpush2.bf16.msra.mxu0 %v1397
    %1932 = vmatprep.subr.bf16.mxu0 %v1393
    %1933 = vmatpush2.bf16.msra.mxu0 %v1392
    %1934 = vmatprep.subr.bf16.mxu0 %v1388
    %1935 = vmatpush2.bf16.msra.mxu0 %v1387
    %1936 = vmatprep.subr.bf16.mxu0 %v1383
    %1937 = vmatpush2.bf16.msra.mxu0 %v1382
    %1938 = vmatprep.subr.bf16.mxu0 %v1378
    %1939 = vmatpush2.bf16.msra.mxu0 %v1377
    %1940 = vmatprep.subr.bf16.mxu0 %v1373
    %1941 = vmatpush2.bf16.msra.mxu0 %v1372
    %1942 = vmatprep.mubr.bf16.mxu0 %v63
    %1943 = vmatmul.mubr.bf16.gmra.mxu0 %v62
    %v1944 = vpop.f32.mrf.mxu0
    %v1945 = vadd.f32 %v1904, %v1944
    %v1946 = vpop.f32.mrf.mxu0
    %v1947 = vadd.f32 %v1906, %v1946
    %v1948 = vpop.f32.mrf.mxu0
    %v1949 = vpop.f32.mrf.mxu0
    %1950 = vdwg.mxu0
    %1951 = vmatprep.subr.bf16.mxu0 0
    %1952 = vmatpush1.bf16.msra.mxu0 0
    %1953 = vmatprep.subr.bf16.mxu0 0
    %1954 = vmatpush1.bf16.msra.mxu0 0
    %1955 = vmatprep.subr.bf16.mxu0 0
    %1956 = vmatpush1.bf16.msra.mxu0 0
    %1957 = vmatprep.subr.bf16.mxu0 0
    %1958 = vmatpush1.bf16.msra.mxu0 0
    %1959 = vmatprep.subr.bf16.mxu0 0
    %1960 = vmatpush1.bf16.msra.mxu0 0
    %1961 = vmatprep.subr.bf16.mxu0 0
    %1962 = vmatpush1.bf16.msra.mxu0 0
    %1963 = vmatprep.subr.bf16.mxu0 0
    %1964 = vmatpush1.bf16.msra.mxu0 0
    %1965 = vmatprep.subr.bf16.mxu0 %v1413
    %1966 = vmatpush1.bf16.msra.mxu0 %v1412
    %1967 = vmatprep.subr.bf16.mxu0 0
    %1968 = vmatpush2.bf16.msra.mxu0 0
    %1969 = vmatprep.subr.bf16.mxu0 0
    %1970 = vmatpush2.bf16.msra.mxu0 0
    %1971 = vmatprep.subr.bf16.mxu0 0
    %1972 = vmatpush2.bf16.msra.mxu0 0
    %1973 = vmatprep.subr.bf16.mxu0 0
    %1974 = vmatpush2.bf16.msra.mxu0 0
    %1975 = vmatprep.subr.bf16.mxu0 0
    %1976 = vmatpush2.bf16.msra.mxu0 0
    %1977 = vmatprep.subr.bf16.mxu0 0
    %1978 = vmatpush2.bf16.msra.mxu0 0
    %1979 = vmatprep.subr.bf16.mxu0 0
    %1980 = vmatpush2.bf16.msra.mxu0 0
    %1981 = vmatprep.subr.bf16.mxu0 0
    %1982 = vmatpush2.bf16.msra.mxu0 0
    %1983 = vmatprep.mubr.bf16.mxu0 0
    %1984 = vmatmul.mubr.bf16.gmra.mxu0 %v1662
    %v1985 = vpop.f32.mrf.mxu0
    %v1986 = vadd.f32 %v1945, %v1985
    %v1987 = vpop.f32.mrf.mxu0
    %v1988 = vadd.f32 %v1947, %v1987
    %v1989 = vpop.f32.mrf.mxu0
    %v1990 = vpop.f32.mrf.mxu0
    %1991 = vdwg.mxu0
    %1992 = vmatprep.subr.bf16.mxu0 0
    %1993 = vmatpush1.bf16.msra.mxu0 %v1209
    %1994 = vmatprep.subr.bf16.mxu0 0
    %1995 = vmatpush1.bf16.msra.mxu0 %v1204
    %1996 = vmatprep.subr.bf16.mxu0 0
    %1997 = vmatpush1.bf16.msra.mxu0 %v1199
    %1998 = vmatprep.subr.bf16.mxu0 0
    %1999 = vmatpush1.bf16.msra.mxu0 %v1194
    %2000 = vmatprep.subr.bf16.mxu0 0
    %2001 = vmatpush1.bf16.msra.mxu0 %v1189
    %2002 = vmatprep.subr.bf16.mxu0 0
    %2003 = vmatpush1.bf16.msra.mxu0 %v1184
    %2004 = vmatprep.subr.bf16.mxu0 0
    %2005 = vmatpush1.bf16.msra.mxu0 %v1179
    %2006 = vmatprep.subr.bf16.mxu0 0
    %2007 = vmatpush1.bf16.msra.mxu0 %v1174
    %2008 = vmatprep.subr.bf16.mxu0 0
    %2009 = vmatpush2.bf16.msra.mxu0 %v1249
    %2010 = vmatprep.subr.bf16.mxu0 0
    %2011 = vmatpush2.bf16.msra.mxu0 %v1244
    %2012 = vmatprep.subr.bf16.mxu0 0
    %2013 = vmatpush2.bf16.msra.mxu0 %v1239
    %2014 = vmatprep.subr.bf16.mxu0 0
    %2015 = vmatpush2.bf16.msra.mxu0 %v1234
    %2016 = vmatprep.subr.bf16.mxu0 0
    %2017 = vmatpush2.bf16.msra.mxu0 %v1229
    %2018 = vmatprep.subr.bf16.mxu0 0
    %2019 = vmatpush2.bf16.msra.mxu0 %v1224
    %2020 = vmatprep.subr.bf16.mxu0 0
    %2021 = vmatpush2.bf16.msra.mxu0 %v1219
    %2022 = vmatprep.subr.bf16.mxu0 0
    %2023 = vmatpush2.bf16.msra.mxu0 %v1214
    %2024 = vmatprep.mubr.bf16.mxu0 %v59
    %2025 = vmatmul.mubr.bf16.gmra.mxu0 %v58
    %v2026 = vpop.f32.mrf.mxu0
    %v2027 = vadd.f32 %v380, %v2026
    %v2028 = vpop.f32.mrf.mxu0
    %v2029 = vpop.f32.mrf.mxu0
    %v2030 = vpop.f32.mrf.mxu0
    %2031 = vdwg.mxu0
    %2032 = vmatprep.subr.bf16.mxu0 0
    %2033 = vmatpush1.bf16.msra.mxu0 %v1289
    %2034 = vmatprep.subr.bf16.mxu0 0
    %2035 = vmatpush1.bf16.msra.mxu0 %v1284
    %2036 = vmatprep.subr.bf16.mxu0 0
    %2037 = vmatpush1.bf16.msra.mxu0 %v1279
    %2038 = vmatprep.subr.bf16.mxu0 0
    %2039 = vmatpush1.bf16.msra.mxu0 %v1274
    %2040 = vmatprep.subr.bf16.mxu0 0
    %2041 = vmatpush1.bf16.msra.mxu0 %v1269
    %2042 = vmatprep.subr.bf16.mxu0 0
    %2043 = vmatpush1.bf16.msra.mxu0 %v1264
    %2044 = vmatprep.subr.bf16.mxu0 0
    %2045 = vmatpush1.bf16.msra.mxu0 %v1259
    %2046 = vmatprep.subr.bf16.mxu0 0
    %2047 = vmatpush1.bf16.msra.mxu0 %v1254
    %2048 = vmatprep.subr.bf16.mxu0 0
    %2049 = vmatpush2.bf16.msra.mxu0 %v1329
    %2050 = vmatprep.subr.bf16.mxu0 0
    %2051 = vmatpush2.bf16.msra.mxu0 %v1324
    %2052 = vmatprep.subr.bf16.mxu0 0
    %2053 = vmatpush2.bf16.msra.mxu0 %v1319
    %2054 = vmatprep.subr.bf16.mxu0 0
    %2055 = vmatpush2.bf16.msra.mxu0 %v1314
    %2056 = vmatprep.subr.bf16.mxu0 0
    %2057 = vmatpush2.bf16.msra.mxu0 %v1309
    %2058 = vmatprep.subr.bf16.mxu0 0
    %2059 = vmatpush2.bf16.msra.mxu0 %v1304
    %2060 = vmatprep.subr.bf16.mxu0 0
    %2061 = vmatpush2.bf16.msra.mxu0 %v1299
    %2062 = vmatprep.subr.bf16.mxu0 0
    %2063 = vmatpush2.bf16.msra.mxu0 %v1294
    %2064 = vmatprep.mubr.bf16.mxu0 %v61
    %2065 = vmatmul.mubr.bf16.gmra.mxu0 %v60
    %v2066 = vpop.f32.mrf.mxu0
    %v2067 = vadd.f32 %v2027, %v2066
    %v2068 = vpop.f32.mrf.mxu0
    %v2069 = vpop.f32.mrf.mxu0
    %v2070 = vpop.f32.mrf.mxu0
    %2071 = vdwg.mxu0
    %2072 = vmatprep.subr.bf16.mxu0 0
    %2073 = vmatpush1.bf16.msra.mxu0 %v1369
    %2074 = vmatprep.subr.bf16.mxu0 0
    %2075 = vmatpush1.bf16.msra.mxu0 %v1364
    %2076 = vmatprep.subr.bf16.mxu0 0
    %2077 = vmatpush1.bf16.msra.mxu0 %v1359
    %2078 = vmatprep.subr.bf16.mxu0 0
    %2079 = vmatpush1.bf16.msra.mxu0 %v1354
    %2080 = vmatprep.subr.bf16.mxu0 0
    %2081 = vmatpush1.bf16.msra.mxu0 %v1349
    %2082 = vmatprep.subr.bf16.mxu0 0
    %2083 = vmatpush1.bf16.msra.mxu0 %v1344
    %2084 = vmatprep.subr.bf16.mxu0 0
    %2085 = vmatpush1.bf16.msra.mxu0 %v1339
    %2086 = vmatprep.subr.bf16.mxu0 0
    %2087 = vmatpush1.bf16.msra.mxu0 %v1334
    %2088 = vmatprep.subr.bf16.mxu0 0
    %2089 = vmatpush2.bf16.msra.mxu0 %v1409
    %2090 = vmatprep.subr.bf16.mxu0 0
    %2091 = vmatpush2.bf16.msra.mxu0 %v1404
    %2092 = vmatprep.subr.bf16.mxu0 0
    %2093 = vmatpush2.bf16.msra.mxu0 %v1399
    %2094 = vmatprep.subr.bf16.mxu0 0
    %2095 = vmatpush2.bf16.msra.mxu0 %v1394
    %2096 = vmatprep.subr.bf16.mxu0 0
    %2097 = vmatpush2.bf16.msra.mxu0 %v1389
    %2098 = vmatprep.subr.bf16.mxu0 0
    %2099 = vmatpush2.bf16.msra.mxu0 %v1384
    %2100 = vmatprep.subr.bf16.mxu0 0
    %2101 = vmatpush2.bf16.msra.mxu0 %v1379
    %2102 = vmatprep.subr.bf16.mxu0 0
    %2103 = vmatpush2.bf16.msra.mxu0 %v1374
    %2104 = vmatprep.mubr.bf16.mxu0 %v63
    %2105 = vmatmul.mubr.bf16.gmra.mxu0 %v62
    %v2106 = vpop.f32.mrf.mxu0
    %v2107 = vadd.f32 %v2067, %v2106
    %v2108 = vpop.f32.mrf.mxu0
    %v2109 = vpop.f32.mrf.mxu0
    %v2110 = vpop.f32.mrf.mxu0
    %2111 = vdwg.mxu0
    %2112 = vmatprep.subr.bf16.mxu0 0
    %2113 = vmatpush1.bf16.msra.mxu0 0
    %2114 = vmatprep.subr.bf16.mxu0 0
    %2115 = vmatpush1.bf16.msra.mxu0 0
    %2116 = vmatprep.subr.bf16.mxu0 0
    %2117 = vmatpush1.bf16.msra.mxu0 0
    %2118 = vmatprep.subr.bf16.mxu0 0
    %2119 = vmatpush1.bf16.msra.mxu0 0
    %2120 = vmatprep.subr.bf16.mxu0 0
    %2121 = vmatpush1.bf16.msra.mxu0 0
    %2122 = vmatprep.subr.bf16.mxu0 0
    %2123 = vmatpush1.bf16.msra.mxu0 0
    %2124 = vmatprep.subr.bf16.mxu0 0
    %2125 = vmatpush1.bf16.msra.mxu0 0
    %2126 = vmatprep.subr.bf16.mxu0 0
    %2127 = vmatpush1.bf16.msra.mxu0 %v1414
    %2128 = vmatprep.subr.bf16.mxu0 0
    %2129 = vmatpush2.bf16.msra.mxu0 0
    %2130 = vmatprep.subr.bf16.mxu0 0
    %2131 = vmatpush2.bf16.msra.mxu0 0
    %2132 = vmatprep.subr.bf16.mxu0 0
    %2133 = vmatpush2.bf16.msra.mxu0 0
    %2134 = vmatprep.subr.bf16.mxu0 0
    %2135 = vmatpush2.bf16.msra.mxu0 0
    %2136 = vmatprep.subr.bf16.mxu0 0
    %2137 = vmatpush2.bf16.msra.mxu0 0
    %2138 = vmatprep.subr.bf16.mxu0 0
    %2139 = vmatpush2.bf16.msra.mxu0 0
    %2140 = vmatprep.subr.bf16.mxu0 0
    %2141 = vmatpush2.bf16.msra.mxu0 0
    %2142 = vmatprep.subr.bf16.mxu0 0
    %2143 = vmatpush2.bf16.msra.mxu0 0
    %2144 = vmatprep.mubr.bf16.mxu0 0
    %2145 = vmatmul.mubr.bf16.gmra.mxu0 %v1662
    %v2146 = vpop.f32.mrf.mxu0
    %v2147 = vadd.f32 %v2107, %v2146
    %v2148 = vpop.f32.mrf.mxu0
    %v2149 = vpop.f32.mrf.mxu0
    %v2150 = vpop.f32.mrf.mxu0
    %2151 = vdwg.mxu0
    %v2152 = vmax.f32 %v1822, 0.0
    %v2153 = vmax.f32 %v1824, 0.0
    %v2154 = vmax.f32 %v1986, 0.0
    %v2155 = vmax.f32 %v1988, 0.0
    %v2156 = vmax.f32 %v2147, 0.0
    %v2157 = vpack.c.bf16 %v2152, %v2152
    %v2158 = vpack.c.bf16 %v2153, %v2153
    %v2159 = vpack.c.bf16 %v2154, %v2154
    %v2160 = vpack.c.bf16 %v2155, %v2155
    %v2161 = vpack.c.bf16 %v2156, %v2156
    %v2162 = vld [vmem:[%s4] sm:$0xff]
    %v2163 = vld [vmem:[%s4 + $0x8] sm:$0xf]
    %v2164 = vld [vmem:[%s4 + $0xc] sm:$0xff]
    %v2165 = vld [vmem:[%s4 + $0x14] sm:$0xf]
    %v2166 = vld [vmem:[%s4 + $0x18] sm:$0xff]
    %v2167 = vld [vmem:[%s4 + $0x20] sm:$0xf]
    %v2168 = vld [vmem:[%s4 + $0x24] sm:$0xff]
    %v2169 = vld [vmem:[%s4 + $0x2c] sm:$0xf]
    %v2170 = vld [vmem:[%s4 + $0x30] sm:$0xff]
    %v2171 = vld [vmem:[%s4 + $0x38] sm:$0xf]
    %v2172 = vld [vmem:[%s4 + $0x3c] sm:$0xff]
    %v2173 = vld [vmem:[%s4 + $0x44] sm:$0xf]
    %v2174 = vld [vmem:[%s4 + $0x48] sm:$0xff]
    %v2175 = vld [vmem:[%s4 + $0x50] sm:$0xf]
    %v2176 = vld [vmem:[%s4 + $0x54] sm:$0xff]
    %v2177 = vld [vmem:[%s4 + $0x5c] sm:$0xf]
    %v2178 = vld [vmem:[%s4 + $0x60] sm:$0xff]
    %v2179 = vld [vmem:[%s4 + $0x68] sm:$0xf]
    %v2180 = vld [vmem:[%s4 + $0x6c] sm:$0xff]
    %v2181 = vld [vmem:[%s4 + $0x74] sm:$0xf]
    %v2182 = vld [vmem:[%s4 + $0x78] sm:$0xff]
    %v2183 = vld [vmem:[%s4 + $0x80] sm:$0xf]
    %v2184 = vld [vmem:[%s4 + $0x84] sm:$0xff]
    %v2185 = vld [vmem:[%s4 + $0x8c] sm:$0xf]
    %v2186 = vld [vmem:[%s4 + $0x90] sm:$0xff]
    %v2187 = vld [vmem:[%s4 + $0x98] sm:$0xf]
    %v2188 = vld [vmem:[%s4 + $0x9c] sm:$0xff]
    %v2189 = vld [vmem:[%s4 + $0xa4] sm:$0xf]
    %v2190 = vld [vmem:[%s4 + $0xa8] sm:$0xff]
    %v2191 = vld [vmem:[%s4 + $0xb0] sm:$0xf]
    %v2192 = vld [vmem:[%s4 + $0xb4] sm:$0xff]
    %v2193 = vld [vmem:[%s4 + $0xbc] sm:$0xf]
    %v2194 = vld [vmem:[%s4 + $0xc0] sm:$0xff]
    %v2195 = vld [vmem:[%s4 + $0xc8] sm:$0xf]
    %v2196 = vld [vmem:[%s4 + $0xcc] sm:$0xff]
    %v2197 = vld [vmem:[%s4 + $0xd4] sm:$0xf]
    %v2198 = vld [vmem:[%s4 + $0xd8] sm:$0xff]
    %v2199 = vld [vmem:[%s4 + $0xe0] sm:$0xf]
    %v2200 = vld [vmem:[%s4 + $0xe4] sm:$0xff]
    %v2201 = vld [vmem:[%s4 + $0xec] sm:$0xf]
    %v2202 = vld [vmem:[%s4 + $0xf0] sm:$0xff]
    %v2203 = vld [vmem:[%s4 + $0xf8] sm:$0xf]
    %v2204 = vld [vmem:[%s4 + $0xfc] sm:$0xff]
    %v2205 = vld [vmem:[%s4 + $0x104] sm:$0xf]
    %v2206 = vld [vmem:[%s4 + $0x108] sm:$0xff]
    %v2207 = vld [vmem:[%s4 + $0x110] sm:$0xf]
    %v2208 = vld [vmem:[%s4 + $0x114] sm:$0xff]
    %v2209 = vld [vmem:[%s4 + $0x11c] sm:$0xf]
    %v2210 = vld [vmem:[%s4 + $0x120] sm:$0xff]
    %v2211 = vld [vmem:[%s4 + $0x128] sm:$0xf]
    %v2212 = vld [vmem:[%s4 + $0x12c] sm:$0xff]
    %v2213 = vld [vmem:[%s4 + $0x134] sm:$0xf]
    %v2214 = vld [vmem:[%s4 + $0x138] sm:$0xff]
    %v2215 = vld [vmem:[%s4 + $0x140] sm:$0xf]
    %v2216 = vld [vmem:[%s4 + $0x144] sm:$0xff]
    %v2217 = vld [vmem:[%s4 + $0x14c] sm:$0xf]
    %v2218 = vld [vmem:[%s4 + $0x150] sm:$0xff]
    %v2219 = vld [vmem:[%s4 + $0x158] sm:$0xf]
    %v2220 = vld [vmem:[%s4 + $0x15c] sm:$0xff]
    %v2221 = vld [vmem:[%s4 + $0x164] sm:$0xf]
    %v2222 = vld [vmem:[%s4 + $0x168] sm:$0xff]
    %v2223 = vld [vmem:[%s4 + $0x170] sm:$0xf]
    %v2224 = vld [vmem:[%s4 + $0x174] sm:$0xff]
    %v2225 = vld [vmem:[%s4 + $0x17c] sm:$0xf]
    %v2226 = vld [vmem:[%s4 + $0x180] sm:$0xff]
    %v2227 = vld [vmem:[%s4 + $0x188] sm:$0xf]
    %v2228 = vld [vmem:[%s4 + $0x18c] sm:$0xff]
    %v2229 = vld [vmem:[%s4 + $0x194] sm:$0xf]
    %v2230 = vld [vmem:[%s4 + $0x198] sm:$0xff]
    %v2231 = vld [vmem:[%s4 + $0x1a0] sm:$0xf]
    %v2232 = vld [vmem:[%s4 + $0x1a4] sm:$0xff]
    %v2233 = vld [vmem:[%s4 + $0x1ac] sm:$0xf]
    %v2234 = vld [vmem:[%s4 + $0x1b0] sm:$0xff]
    %v2235 = vld [vmem:[%s4 + $0x1b8] sm:$0xf]
    %v2236 = vld [vmem:[%s4 + $0x1bc] sm:$0xff]
    %v2237 = vld [vmem:[%s4 + $0x1c4] sm:$0xf]
    %v2238 = vld [vmem:[%s4 + $0x1c8] sm:$0xff]
    %v2239 = vld [vmem:[%s4 + $0x1d0] sm:$0xf]
    %v2240 = vld [vmem:[%s4 + $0x1d4] sm:$0xff]
    %v2241 = vld [vmem:[%s4 + $0x1dc] sm:$0xf]
    %v2242 = vld [vmem:[%s4 + $0x1e0] sm:$0xff]
    %v2243 = vld [vmem:[%s4 + $0x1e8] sm:$0xf]
    %v2244 = vld [vmem:[%s4 + $0x1ec] sm:$0xff]
    %v2245 = vld [vmem:[%s4 + $0x1f4] sm:$0xf]
    %v2246 = vld [vmem:[%s4 + $0x1f8] sm:$0xff]
    %v2247 = vld [vmem:[%s4 + $0x200] sm:$0xf]
    %v2248 = vld [vmem:[%s4 + $0x204] sm:$0xff]
    %v2249 = vld [vmem:[%s4 + $0x20c] sm:$0xf]
    %v2250 = vld [vmem:[%s4 + $0x210] sm:$0xff]
    %v2251 = vld [vmem:[%s4 + $0x218] sm:$0xf]
    %v2252 = vld [vmem:[%s4 + $0x21c] sm:$0xff]
    %v2253 = vld [vmem:[%s4 + $0x224] sm:$0xf]
    %v2254 = vld [vmem:[%s4 + $0x228] sm:$0xff]
    %v2255 = vld [vmem:[%s4 + $0x230] sm:$0xf]
    %v2256 = vld [vmem:[%s4 + $0x234] sm:$0xff]
    %v2257 = vld [vmem:[%s4 + $0x23c] sm:$0xf]
    %v2258 = vld [vmem:[%s4 + $0x240] sm:$0xff]
    %v2259 = vld [vmem:[%s4 + $0x248] sm:$0xf]
    %v2260 = vld [vmem:[%s4 + $0x24c] sm:$0xff]
    %v2261 = vld [vmem:[%s4 + $0x254] sm:$0xf]
    %v2262 = vld [vmem:[%s4 + $0x258] sm:$0xff]
    %v2263 = vld [vmem:[%s4 + $0x260] sm:$0xf]
    %v2264 = vld [vmem:[%s4 + $0x264] sm:$0xff]
    %v2265 = vld [vmem:[%s4 + $0x26c] sm:$0xf]
    %v2266 = vld [vmem:[%s4 + $0x270] sm:$0xff]
    %v2267 = vld [vmem:[%s4 + $0x278] sm:$0xf]
    %v2268 = vld [vmem:[%s4 + $0x27c] sm:$0xff]
    %v2269 = vld [vmem:[%s4 + $0x284] sm:$0xf]
    %v2270 = vld [vmem:[%s4 + $0x288] sm:$0xff]
    %v2271 = vld [vmem:[%s4 + $0x290] sm:$0xf]
    %v2272 = vld [vmem:[%s4 + $0x294] sm:$0xff]
    %v2273 = vld [vmem:[%s4 + $0x29c] sm:$0xf]
    %v2274 = vld [vmem:[%s4 + $0x2a0] sm:$0xff]
    %v2275 = vld [vmem:[%s4 + $0x2a8] sm:$0xf]
    %v2276 = vld [vmem:[%s4 + $0x2ac] sm:$0xff]
    %v2277 = vld [vmem:[%s4 + $0x2b4] sm:$0xf]
    %v2278 = vld [vmem:[%s4 + $0x2b8] sm:$0xff]
    %v2279 = vld [vmem:[%s4 + $0x2c0] sm:$0xf]
    %v2280 = vld [vmem:[%s4 + $0x2c4] sm:$0xff]
    %v2281 = vld [vmem:[%s4 + $0x2cc] sm:$0xf]
    %v2282 = vld [vmem:[%s4 + $0x2d0] sm:$0xff]
    %v2283 = vld [vmem:[%s4 + $0x2d8] sm:$0xf]
    %v2284 = vld [vmem:[%s4 + $0x2dc] sm:$0xff]
    %v2285 = vld [vmem:[%s4 + $0x2e4] sm:$0xf]
    %v2286 = vld [vmem:[%s4 + $0x2e8] sm:$0xff]
    %v2287 = vld [vmem:[%s4 + $0x2f0] sm:$0xf]
    %v2288 = vld [vmem:[%s4 + $0x2f4] sm:$0xff]
    %v2289 = vld [vmem:[%s4 + $0x2fc] sm:$0xf]
    %v2290 = vld [vmem:[%s4 + $0x300] sm:$0xff]
    %v2291 = vld [vmem:[%s4 + $0x308] sm:$0xf]
    %v2292 = vld [vmem:[%s4 + $0x30c] sm:$0xff]
    %v2293 = vld [vmem:[%s4 + $0x314] sm:$0xf]
    %v2294 = vld [vmem:[%s4 + $0x318] sm:$0xff]
    %v2295 = vld [vmem:[%s4 + $0x320] sm:$0xf]
    %v2296 = vld [vmem:[%s4 + $0x324] sm:$0xff]
    %v2297 = vld [vmem:[%s4 + $0x32c] sm:$0xf]
    %v2298 = vld [vmem:[%s4 + $0x330] sm:$0xff]
    %v2299 = vld [vmem:[%s4 + $0x338] sm:$0xf]
    %v2300 = vld [vmem:[%s4 + $0x33c] sm:$0xff]
    %v2301 = vld [vmem:[%s4 + $0x344] sm:$0xf]
    %v2302 = vld [vmem:[%s4 + $0x348] sm:$0xff]
    %v2303 = vld [vmem:[%s4 + $0x350] sm:$0xf]
    %v2304 = vld [vmem:[%s4 + $0x354] sm:$0xff]
    %v2305 = vld [vmem:[%s4 + $0x35c] sm:$0xf]
    %v2306 = vld [vmem:[%s4 + $0x360] sm:$0xff]
    %v2307 = vld [vmem:[%s4 + $0x368] sm:$0xf]
    %v2308 = vld [vmem:[%s4 + $0x36c] sm:$0xff]
    %v2309 = vld [vmem:[%s4 + $0x374] sm:$0xf]
    %v2310 = vld [vmem:[%s4 + $0x378] sm:$0xff]
    %v2311 = vld [vmem:[%s4 + $0x380] sm:$0xf]
    %v2312 = vld [vmem:[%s4 + $0x384] sm:$0xff]
    %v2313 = vld [vmem:[%s4 + $0x38c] sm:$0xf]
    %v2314 = vld [vmem:[%s4 + $0x390] sm:$0xff]
    %v2315 = vld [vmem:[%s4 + $0x398] sm:$0xf]
    %v2316 = vld [vmem:[%s4 + $0x39c] sm:$0xff]
    %v2317 = vld [vmem:[%s4 + $0x3a4] sm:$0xf]
    %v2318 = vld [vmem:[%s4 + $0x3a8] sm:$0xff]
    %v2319 = vld [vmem:[%s4 + $0x3b0] sm:$0xf]
    %v2320 = vld [vmem:[%s4 + $0x3b4] sm:$0xff]
    %v2321 = vld [vmem:[%s4 + $0x3bc] sm:$0xf]
    %v2322 = vld [vmem:[%s5] sm:$0x7]
    %v2324 = vlaneseq
    %v2325 = vshrl.u32 %v2324, 7
    %v2326 = vsub.s32 0, %v2325
    %v2327 = vrot.slane %v2322, %v2326
    %v2328 = vlaneseq
    %v2329 = vshrl.u32 %v2328, 7
    %v2330 = vsub.s32 1, %v2329
    %v2331 = vrot.slane %v2322, %v2330
    %v2332 = vlaneseq
    %v2333 = vshrl.u32 %v2332, 7
    %v2334 = vsub.s32 2, %v2333
    %v2335 = vrot.slane %v2322, %v2334
    %v2499 = vunpack.c.l.b16 %v2162
    %v2500 = vunpack.c.h.b16 %v2162
    %v2501 = vunpack.c.l.b16 %v2163
    %v2502 = vunpack.c.l.b16 %v2164
    %v2503 = vunpack.c.h.b16 %v2164
    %v2504 = vunpack.c.l.b16 %v2165
    %v2505 = vunpack.c.l.b16 %v2166
    %v2506 = vunpack.c.h.b16 %v2166
    %v2507 = vunpack.c.l.b16 %v2167
    %v2508 = vunpack.c.l.b16 %v2168
    %v2509 = vunpack.c.h.b16 %v2168
    %v2510 = vunpack.c.l.b16 %v2169
    %v2511 = vunpack.c.l.b16 %v2170
    %v2512 = vunpack.c.h.b16 %v2170
    %v2513 = vunpack.c.l.b16 %v2171
    %v2514 = vunpack.c.l.b16 %v2172
    %v2515 = vunpack.c.h.b16 %v2172
    %v2516 = vunpack.c.l.b16 %v2173
    %v2517 = vunpack.c.l.b16 %v2174
    %v2518 = vunpack.c.h.b16 %v2174
    %v2519 = vunpack.c.l.b16 %v2175
    %v2520 = vunpack.c.l.b16 %v2176
    %v2521 = vunpack.c.h.b16 %v2176
    %v2522 = vunpack.c.l.b16 %v2177
    %v2523 = vunpack.c.l.b16 %v2178
    %v2524 = vunpack.c.h.b16 %v2178
    %v2525 = vunpack.c.l.b16 %v2179
    %v2526 = vunpack.c.l.b16 %v2180
    %v2527 = vunpack.c.h.b16 %v2180
    %v2528 = vunpack.c.l.b16 %v2181
    %v2529 = vunpack.c.l.b16 %v2182
    %v2530 = vunpack.c.h.b16 %v2182
    %v2531 = vunpack.c.l.b16 %v2183
    %v2532 = vunpack.c.l.b16 %v2184
    %v2533 = vunpack.c.h.b16 %v2184
    %v2534 = vunpack.c.l.b16 %v2185
    %v2535 = vunpack.c.l.b16 %v2186
    %v2536 = vunpack.c.h.b16 %v2186
    %v2537 = vunpack.c.l.b16 %v2187
    %v2538 = vunpack.c.l.b16 %v2188
    %v2539 = vunpack.c.h.b16 %v2188
    %v2540 = vunpack.c.l.b16 %v2189
    %v2541 = vunpack.c.l.b16 %v2190
    %v2542 = vunpack.c.h.b16 %v2190
    %v2543 = vunpack.c.l.b16 %v2191
    %v2544 = vunpack.c.l.b16 %v2192
    %v2545 = vunpack.c.h.b16 %v2192
    %v2546 = vunpack.c.l.b16 %v2193
    %v2547 = vunpack.c.l.b16 %v2194
    %v2548 = vunpack.c.h.b16 %v2194
    %v2549 = vunpack.c.l.b16 %v2195
    %v2550 = vunpack.c.l.b16 %v2196
    %v2551 = vunpack.c.h.b16 %v2196
    %v2552 = vunpack.c.l.b16 %v2197
    %v2553 = vunpack.c.l.b16 %v2198
    %v2554 = vunpack.c.h.b16 %v2198
    %v2555 = vunpack.c.l.b16 %v2199
    %v2556 = vunpack.c.l.b16 %v2200
    %v2557 = vunpack.c.h.b16 %v2200
    %v2558 = vunpack.c.l.b16 %v2201
    %v2559 = vunpack.c.l.b16 %v2202
    %v2560 = vunpack.c.h.b16 %v2202
    %v2561 = vunpack.c.l.b16 %v2203
    %v2562 = vunpack.c.l.b16 %v2204
    %v2563 = vunpack.c.h.b16 %v2204
    %v2564 = vunpack.c.l.b16 %v2205
    %v2565 = vunpack.c.l.b16 %v2206
    %v2566 = vunpack.c.h.b16 %v2206
    %v2567 = vunpack.c.l.b16 %v2207
    %v2568 = vunpack.c.l.b16 %v2208
    %v2569 = vunpack.c.h.b16 %v2208
    %v2570 = vunpack.c.l.b16 %v2209
    %v2571 = vunpack.c.l.b16 %v2210
    %v2572 = vunpack.c.h.b16 %v2210
    %v2573 = vunpack.c.l.b16 %v2211
    %v2574 = vunpack.c.l.b16 %v2212
    %v2575 = vunpack.c.h.b16 %v2212
    %v2576 = vunpack.c.l.b16 %v2213
    %v2577 = vunpack.c.l.b16 %v2214
    %v2578 = vunpack.c.h.b16 %v2214
    %v2579 = vunpack.c.l.b16 %v2215
    %v2580 = vunpack.c.l.b16 %v2216
    %v2581 = vunpack.c.h.b16 %v2216
    %v2582 = vunpack.c.l.b16 %v2217
    %v2583 = vunpack.c.l.b16 %v2218
    %v2584 = vunpack.c.h.b16 %v2218
    %v2585 = vunpack.c.l.b16 %v2219
    %v2586 = vunpack.c.l.b16 %v2220
    %v2587 = vunpack.c.h.b16 %v2220
    %v2588 = vunpack.c.l.b16 %v2221
    %v2589 = vunpack.c.l.b16 %v2222
    %v2590 = vunpack.c.h.b16 %v2222
    %v2591 = vunpack.c.l.b16 %v2223
    %v2592 = vunpack.c.l.b16 %v2224
    %v2593 = vunpack.c.h.b16 %v2224
    %v2594 = vunpack.c.l.b16 %v2225
    %v2595 = vunpack.c.l.b16 %v2226
    %v2596 = vunpack.c.h.b16 %v2226
    %v2597 = vunpack.c.l.b16 %v2227
    %v2598 = vunpack.c.l.b16 %v2228
    %v2599 = vunpack.c.h.b16 %v2228
    %v2600 = vunpack.c.l.b16 %v2229
    %v2601 = vunpack.c.l.b16 %v2230
    %v2602 = vunpack.c.h.b16 %v2230
    %v2603 = vunpack.c.l.b16 %v2231
    %v2604 = vunpack.c.l.b16 %v2232
    %v2605 = vunpack.c.h.b16 %v2232
    %v2606 = vunpack.c.l.b16 %v2233
    %v2607 = vunpack.c.l.b16 %v2234
    %v2608 = vunpack.c.h.b16 %v2234
    %v2609 = vunpack.c.l.b16 %v2235
    %v2610 = vunpack.c.l.b16 %v2236
    %v2611 = vunpack.c.h.b16 %v2236
    %v2612 = vunpack.c.l.b16 %v2237
    %v2613 = vunpack.c.l.b16 %v2238
    %v2614 = vunpack.c.h.b16 %v2238
    %v2615 = vunpack.c.l.b16 %v2239
    %v2616 = vunpack.c.l.b16 %v2240
    %v2617 = vunpack.c.h.b16 %v2240
    %v2618 = vunpack.c.l.b16 %v2241
    %v2619 = vunpack.c.l.b16 %v2242
    %v2620 = vunpack.c.h.b16 %v2242
    %v2621 = vunpack.c.l.b16 %v2243
    %v2622 = vunpack.c.l.b16 %v2244
    %v2623 = vunpack.c.h.b16 %v2244
    %v2624 = vunpack.c.l.b16 %v2245
    %v2625 = vunpack.c.l.b16 %v2246
    %v2626 = vunpack.c.h.b16 %v2246
    %v2627 = vunpack.c.l.b16 %v2247
    %v2628 = vunpack.c.l.b16 %v2248
    %v2629 = vunpack.c.h.b16 %v2248
    %v2630 = vunpack.c.l.b16 %v2249
    %v2631 = vunpack.c.l.b16 %v2250
    %v2632 = vunpack.c.h.b16 %v2250
    %v2633 = vunpack.c.l.b16 %v2251
    %v2634 = vunpack.c.l.b16 %v2252
    %v2635 = vunpack.c.h.b16 %v2252
    %v2636 = vunpack.c.l.b16 %v2253
    %v2637 = vunpack.c.l.b16 %v2254
    %v2638 = vunpack.c.h.b16 %v2254
    %v2639 = vunpack.c.l.b16 %v2255
    %v2640 = vunpack.c.l.b16 %v2256
    %v2641 = vunpack.c.h.b16 %v2256
    %v2642 = vunpack.c.l.b16 %v2257
    %v2643 = vunpack.c.l.b16 %v2258
    %v2644 = vunpack.c.h.b16 %v2258
    %v2645 = vunpack.c.l.b16 %v2259
    %v2646 = vunpack.c.l.b16 %v2260
    %v2647 = vunpack.c.h.b16 %v2260
    %v2648 = vunpack.c.l.b16 %v2261
    %v2649 = vunpack.c.l.b16 %v2262
    %v2650 = vunpack.c.h.b16 %v2262
    %v2651 = vunpack.c.l.b16 %v2263
    %v2652 = vunpack.c.l.b16 %v2264
    %v2653 = vunpack.c.h.b16 %v2264
    %v2654 = vunpack.c.l.b16 %v2265
    %v2655 = vunpack.c.l.b16 %v2266
    %v2656 = vunpack.c.h.b16 %v2266
    %v2657 = vunpack.c.l.b16 %v2267
    %v2658 = vunpack.c.l.b16 %v2268
    %v2659 = vunpack.c.h.b16 %v2268
    %v2660 = vunpack.c.l.b16 %v2269
    %v2661 = vunpack.c.l.b16 %v2270
    %v2662 = vunpack.c.h.b16 %v2270
    %v2663 = vunpack.c.l.b16 %v2271
    %v2664 = vunpack.c.l.b16 %v2272
    %v2665 = vunpack.c.h.b16 %v2272
    %v2666 = vunpack.c.l.b16 %v2273
    %v2667 = vunpack.c.l.b16 %v2274
    %v2668 = vunpack.c.h.b16 %v2274
    %v2669 = vunpack.c.l.b16 %v2275
    %v2670 = vunpack.c.l.b16 %v2276
    %v2671 = vunpack.c.h.b16 %v2276
    %v2672 = vunpack.c.l.b16 %v2277
    %v2673 = vunpack.c.l.b16 %v2278
    %v2674 = vunpack.c.h.b16 %v2278
    %v2675 = vunpack.c.l.b16 %v2279
    %v2676 = vunpack.c.l.b16 %v2280
    %v2677 = vunpack.c.h.b16 %v2280
    %v2678 = vunpack.c.l.b16 %v2281
    %v2679 = vunpack.c.l.b16 %v2282
    %v2680 = vunpack.c.h.b16 %v2282
    %v2681 = vunpack.c.l.b16 %v2283
    %v2682 = vunpack.c.l.b16 %v2284
    %v2683 = vunpack.c.h.b16 %v2284
    %v2684 = vunpack.c.l.b16 %v2285
    %v2685 = vunpack.c.l.b16 %v2286
    %v2686 = vunpack.c.h.b16 %v2286
    %v2687 = vunpack.c.l.b16 %v2287
    %v2688 = vunpack.c.l.b16 %v2288
    %v2689 = vunpack.c.h.b16 %v2288
    %v2690 = vunpack.c.l.b16 %v2289
    %v2691 = vunpack.c.l.b16 %v2290
    %v2692 = vunpack.c.h.b16 %v2290
    %v2693 = vunpack.c.l.b16 %v2291
    %v2694 = vunpack.c.l.b16 %v2292
    %v2695 = vunpack.c.h.b16 %v2292
    %v2696 = vunpack.c.l.b16 %v2293
    %v2697 = vunpack.c.l.b16 %v2294
    %v2698 = vunpack.c.h.b16 %v2294
    %v2699 = vunpack.c.l.b16 %v2295
    %v2700 = vunpack.c.l.b16 %v2296
    %v2701 = vunpack.c.h.b16 %v2296
    %v2702 = vunpack.c.l.b16 %v2297
    %v2703 = vunpack.c.l.b16 %v2298
    %v2704 = vunpack.c.h.b16 %v2298
    %v2705 = vunpack.c.l.b16 %v2299
    %v2706 = vunpack.c.l.b16 %v2300
    %v2707 = vunpack.c.h.b16 %v2300
    %v2708 = vunpack.c.l.b16 %v2301
    %v2709 = vunpack.c.l.b16 %v2302
    %v2710 = vunpack.c.h.b16 %v2302
    %v2711 = vunpack.c.l.b16 %v2303
    %v2712 = vunpack.c.l.b16 %v2304
    %v2713 = vunpack.c.h.b16 %v2304
    %v2714 = vunpack.c.l.b16 %v2305
    %v2715 = vunpack.c.l.b16 %v2306
    %v2716 = vunpack.c.h.b16 %v2306
    %v2717 = vunpack.c.l.b16 %v2307
    %v2718 = vunpack.c.l.b16 %v2308
    %v2719 = vunpack.c.h.b16 %v2308
    %v2720 = vunpack.c.l.b16 %v2309
    %v2721 = vunpack.c.l.b16 %v2310
    %v2722 = vunpack.c.h.b16 %v2310
    %v2723 = vunpack.c.l.b16 %v2311
    %v2724 = vunpack.c.l.b16 %v2312
    %v2725 = vunpack.c.h.b16 %v2312
    %v2726 = vunpack.c.l.b16 %v2313
    %v2727 = vunpack.c.l.b16 %v2314
    %v2728 = vunpack.c.h.b16 %v2314
    %v2729 = vunpack.c.l.b16 %v2315
    %v2730 = vunpack.c.l.b16 %v2316
    %v2731 = vunpack.c.h.b16 %v2316
    %v2732 = vunpack.c.l.b16 %v2317
    %v2733 = vunpack.c.l.b16 %v2318
    %v2734 = vunpack.c.h.b16 %v2318
    %v2735 = vunpack.c.l.b16 %v2319
    %v2736 = vunpack.c.l.b16 %v2320
    %v2737 = vunpack.c.h.b16 %v2320
    %v2738 = vunpack.c.l.b16 %v2321
    %v2739 = vpack.c.b16 %v2502, %v2499
    %v2740 = vpack.c.b16 %v2503, %v2500
    %v2741 = vpack.c.b16 %v2504, %v2501
    %v2742 = vpack.c.b16 %v2508, %v2505
    %v2743 = vpack.c.b16 %v2509, %v2506
    %v2744 = vpack.c.b16 %v2510, %v2507
    %v2745 = vpack.c.b16 %v2514, %v2511
    %v2746 = vpack.c.b16 %v2515, %v2512
    %v2747 = vpack.c.b16 %v2516, %v2513
    %v2748 = vpack.c.b16 %v2520, %v2517
    %v2749 = vpack.c.b16 %v2521, %v2518
    %v2750 = vpack.c.b16 %v2522, %v2519
    %v2751 = vpack.c.b16 %v2526, %v2523
    %v2752 = vpack.c.b16 %v2527, %v2524
    %v2753 = vpack.c.b16 %v2528, %v2525
    %v2754 = vpack.c.b16 %v2532, %v2529
    %v2755 = vpack.c.b16 %v2533, %v2530
    %v2756 = vpack.c.b16 %v2534, %v2531
    %v2757 = vpack.c.b16 %v2538, %v2535
    %v2758 = vpack.c.b16 %v2539, %v2536
    %v2759 = vpack.c.b16 %v2540, %v2537
    %v2760 = vpack.c.b16 %v2544, %v2541
    %v2761 = vpack.c.b16 %v2545, %v2542
    %v2762 = vpack.c.b16 %v2546, %v2543
    %v2763 = vpack.c.b16 %v2550, %v2547
    %v2764 = vpack.c.b16 %v2551, %v2548
    %v2765 = vpack.c.b16 %v2552, %v2549
    %v2766 = vpack.c.b16 %v2556, %v2553
    %v2767 = vpack.c.b16 %v2557, %v2554
    %v2768 = vpack.c.b16 %v2558, %v2555
    %v2769 = vpack.c.b16 %v2562, %v2559
    %v2770 = vpack.c.b16 %v2563, %v2560
    %v2771 = vpack.c.b16 %v2564, %v2561
    %v2772 = vpack.c.b16 %v2568, %v2565
    %v2773 = vpack.c.b16 %v2569, %v2566
    %v2774 = vpack.c.b16 %v2570, %v2567
    %v2775 = vpack.c.b16 %v2574, %v2571
    %v2776 = vpack.c.b16 %v2575, %v2572
    %v2777 = vpack.c.b16 %v2576, %v2573
    %v2778 = vpack.c.b16 %v2580, %v2577
    %v2779 = vpack.c.b16 %v2581, %v2578
    %v2780 = vpack.c.b16 %v2582, %v2579
    %v2781 = vpack.c.b16 %v2586, %v2583
    %v2782 = vpack.c.b16 %v2587, %v2584
    %v2783 = vpack.c.b16 %v2588, %v2585
    %v2784 = vpack.c.b16 %v2592, %v2589
    %v2785 = vpack.c.b16 %v2593, %v2590
    %v2786 = vpack.c.b16 %v2594, %v2591
    %v2787 = vpack.c.b16 %v2598, %v2595
    %v2788 = vpack.c.b16 %v2599, %v2596
    %v2789 = vpack.c.b16 %v2600, %v2597
    %v2790 = vpack.c.b16 %v2604, %v2601
    %v2791 = vpack.c.b16 %v2605, %v2602
    %v2792 = vpack.c.b16 %v2606, %v2603
    %v2793 = vpack.c.b16 %v2610, %v2607
    %v2794 = vpack.c.b16 %v2611, %v2608
    %v2795 = vpack.c.b16 %v2612, %v2609
    %v2796 = vpack.c.b16 %v2616, %v2613
    %v2797 = vpack.c.b16 %v2617, %v2614
    %v2798 = vpack.c.b16 %v2618, %v2615
    %v2799 = vpack.c.b16 %v2622, %v2619
    %v2800 = vpack.c.b16 %v2623, %v2620
    %v2801 = vpack.c.b16 %v2624, %v2621
    %v2802 = vpack.c.b16 %v2628, %v2625
    %v2803 = vpack.c.b16 %v2629, %v2626
    %v2804 = vpack.c.b16 %v2630, %v2627
    %v2805 = vpack.c.b16 %v2634, %v2631
    %v2806 = vpack.c.b16 %v2635, %v2632
    %v2807 = vpack.c.b16 %v2636, %v2633
    %v2808 = vpack.c.b16 %v2640, %v2637
    %v2809 = vpack.c.b16 %v2641, %v2638
    %v2810 = vpack.c.b16 %v2642, %v2639
    %v2811 = vpack.c.b16 %v2646, %v2643
    %v2812 = vpack.c.b16 %v2647, %v2644
    %v2813 = vpack.c.b16 %v2648, %v2645
    %v2814 = vpack.c.b16 %v2652, %v2649
    %v2815 = vpack.c.b16 %v2653, %v2650
    %v2816 = vpack.c.b16 %v2654, %v2651
    %v2817 = vpack.c.b16 %v2658, %v2655
    %v2818 = vpack.c.b16 %v2659, %v2656
    %v2819 = vpack.c.b16 %v2660, %v2657
    %v2820 = vpack.c.b16 %v2664, %v2661
    %v2821 = vpack.c.b16 %v2665, %v2662
    %v2822 = vpack.c.b16 %v2666, %v2663
    %v2823 = vpack.c.b16 %v2670, %v2667
    %v2824 = vpack.c.b16 %v2671, %v2668
    %v2825 = vpack.c.b16 %v2672, %v2669
    %v2826 = vpack.c.b16 %v2676, %v2673
    %v2827 = vpack.c.b16 %v2677, %v2674
    %v2828 = vpack.c.b16 %v2678, %v2675
    %v2829 = vpack.c.b16 %v2682, %v2679
    %v2830 = vpack.c.b16 %v2683, %v2680
    %v2831 = vpack.c.b16 %v2684, %v2681
    %v2832 = vpack.c.b16 %v2688, %v2685
    %v2833 = vpack.c.b16 %v2689, %v2686
    %v2834 = vpack.c.b16 %v2690, %v2687
    %v2835 = vpack.c.b16 %v2694, %v2691
    %v2836 = vpack.c.b16 %v2695, %v2692
    %v2837 = vpack.c.b16 %v2696, %v2693
    %v2838 = vpack.c.b16 %v2700, %v2697
    %v2839 = vpack.c.b16 %v2701, %v2698
    %v2840 = vpack.c.b16 %v2702, %v2699
    %v2841 = vpack.c.b16 %v2706, %v2703
    %v2842 = vpack.c.b16 %v2707, %v2704
    %v2843 = vpack.c.b16 %v2708, %v2705
    %v2844 = vpack.c.b16 %v2712, %v2709
    %v2845 = vpack.c.b16 %v2713, %v2710
    %v2846 = vpack.c.b16 %v2714, %v2711
    %v2847 = vpack.c.b16 %v2718, %v2715
    %v2848 = vpack.c.b16 %v2719, %v2716
    %v2849 = vpack.c.b16 %v2720, %v2717
    %v2850 = vpack.c.b16 %v2724, %v2721
    %v2851 = vpack.c.b16 %v2725, %v2722
    %v2852 = vpack.c.b16 %v2726, %v2723
    %v2853 = vpack.c.b16 %v2730, %v2727
    %v2854 = vpack.c.b16 %v2731, %v2728
    %v2855 = vpack.c.b16 %v2732, %v2729
    %v2856 = vpack.c.b16 %v2736, %v2733
    %v2857 = vpack.c.b16 %v2737, %v2734
    %v2858 = vpack.c.b16 %v2738, %v2735
    %2979 = vmatprep.subr.bf16.mxu0 %v2761
    %2980 = vmatpush1.bf16.msra.mxu0 %v2760
    %2981 = vmatprep.subr.bf16.mxu0 %v2758
    %2982 = vmatpush1.bf16.msra.mxu0 %v2757
    %2983 = vmatprep.subr.bf16.mxu0 %v2755
    %2984 = vmatpush1.bf16.msra.mxu0 %v2754
    %2985 = vmatprep.subr.bf16.mxu0 %v2752
    %2986 = vmatpush1.bf16.msra.mxu0 %v2751
    %2987 = vmatprep.subr.bf16.mxu0 %v2749
    %2988 = vmatpush1.bf16.msra.mxu0 %v2748
    %2989 = vmatprep.subr.bf16.mxu0 %v2746
    %2990 = vmatpush1.bf16.msra.mxu0 %v2745
    %2991 = vmatprep.subr.bf16.mxu0 %v2743
    %2992 = vmatpush1.bf16.msra.mxu0 %v2742
    %2993 = vmatprep.subr.bf16.mxu0 %v2740
    %2994 = vmatpush1.bf16.msra.mxu0 %v2739
    %2995 = vmatprep.subr.bf16.mxu0 %v2785
    %2996 = vmatpush2.bf16.msra.mxu0 %v2784
    %2997 = vmatprep.subr.bf16.mxu0 %v2782
    %2998 = vmatpush2.bf16.msra.mxu0 %v2781
    %2999 = vmatprep.subr.bf16.mxu0 %v2779
    %3000 = vmatpush2.bf16.msra.mxu0 %v2778
    %3001 = vmatprep.subr.bf16.mxu0 %v2776
    %3002 = vmatpush2.bf16.msra.mxu0 %v2775
    %3003 = vmatprep.subr.bf16.mxu0 %v2773
    %3004 = vmatpush2.bf16.msra.mxu0 %v2772
    %3005 = vmatprep.subr.bf16.mxu0 %v2770
    %3006 = vmatpush2.bf16.msra.mxu0 %v2769
    %3007 = vmatprep.subr.bf16.mxu0 %v2767
    %3008 = vmatpush2.bf16.msra.mxu0 %v2766
    %3009 = vmatprep.subr.bf16.mxu0 %v2764
    %3010 = vmatpush2.bf16.msra.mxu0 %v2763
    %3011 = vmatprep.mubr.bf16.mxu0 %v2158
    %3012 = vmatmul.mubr.bf16.gmra.mxu0 %v2157
    %v3013 = vpop.f32.mrf.mxu0
    %v3014 = vadd.f32 %v2327, %v3013
    %v3015 = vpop.f32.mrf.mxu0
    %v3016 = vadd.f32 %v2331, %v3015
    %v3017 = vpop.f32.mrf.mxu0
    %v3018 = vpop.f32.mrf.mxu0
    %3019 = vdwg.mxu0
    %3020 = vmatprep.subr.bf16.mxu0 %v2809
    %3021 = vmatpush1.bf16.msra.mxu0 %v2808
    %3022 = vmatprep.subr.bf16.mxu0 %v2806
    %3023 = vmatpush1.bf16.msra.mxu0 %v2805
    %3024 = vmatprep.subr.bf16.mxu0 %v2803
    %3025 = vmatpush1.bf16.msra.mxu0 %v2802
    %3026 = vmatprep.subr.bf16.mxu0 %v2800
    %3027 = vmatpush1.bf16.msra.mxu0 %v2799
    %3028 = vmatprep.subr.bf16.mxu0 %v2797
    %3029 = vmatpush1.bf16.msra.mxu0 %v2796
    %3030 = vmatprep.subr.bf16.mxu0 %v2794
    %3031 = vmatpush1.bf16.msra.mxu0 %v2793
    %3032 = vmatprep.subr.bf16.mxu0 %v2791
    %3033 = vmatpush1.bf16.msra.mxu0 %v2790
    %3034 = vmatprep.subr.bf16.mxu0 %v2788
    %3035 = vmatpush1.bf16.msra.mxu0 %v2787
    %3036 = vmatprep.subr.bf16.mxu0 %v2833
    %3037 = vmatpush2.bf16.msra.mxu0 %v2832
    %3038 = vmatprep.subr.bf16.mxu0 %v2830
    %3039 = vmatpush2.bf16.msra.mxu0 %v2829
    %3040 = vmatprep.subr.bf16.mxu0 %v2827
    %3041 = vmatpush2.bf16.msra.mxu0 %v2826
    %3042 = vmatprep.subr.bf16.mxu0 %v2824
    %3043 = vmatpush2.bf16.msra.mxu0 %v2823
    %3044 = vmatprep.subr.bf16.mxu0 %v2821
    %3045 = vmatpush2.bf16.msra.mxu0 %v2820
    %3046 = vmatprep.subr.bf16.mxu0 %v2818
    %3047 = vmatpush2.bf16.msra.mxu0 %v2817
    %3048 = vmatprep.subr.bf16.mxu0 %v2815
    %3049 = vmatpush2.bf16.msra.mxu0 %v2814
    %3050 = vmatprep.subr.bf16.mxu0 %v2812
    %3051 = vmatpush2.bf16.msra.mxu0 %v2811
    %3052 = vmatprep.mubr.bf16.mxu0 %v2160
    %3053 = vmatmul.mubr.bf16.gmra.mxu0 %v2159
    %v3054 = vpop.f32.mrf.mxu0
    %v3055 = vadd.f32 %v3014, %v3054
    %v3056 = vpop.f32.mrf.mxu0
    %v3057 = vadd.f32 %v3016, %v3056
    %v3058 = vpop.f32.mrf.mxu0
    %v3059 = vpop.f32.mrf.mxu0
    %3060 = vdwg.mxu0
    %3061 = vmatprep.subr.bf16.mxu0 %v2857
    %3062 = vmatpush1.bf16.msra.mxu0 %v2856
    %3063 = vmatprep.subr.bf16.mxu0 %v2854
    %3064 = vmatpush1.bf16.msra.mxu0 %v2853
    %3065 = vmatprep.subr.bf16.mxu0 %v2851
    %3066 = vmatpush1.bf16.msra.mxu0 %v2850
    %3067 = vmatprep.subr.bf16.mxu0 %v2848
    %3068 = vmatpush1.bf16.msra.mxu0 %v2847
    %3069 = vmatprep.subr.bf16.mxu0 %v2845
    %3070 = vmatpush1.bf16.msra.mxu0 %v2844
    %3071 = vmatprep.subr.bf16.mxu0 %v2842
    %3072 = vmatpush1.bf16.msra.mxu0 %v2841
    %3073 = vmatprep.subr.bf16.mxu0 %v2839
    %3074 = vmatpush1.bf16.msra.mxu0 %v2838
    %3075 = vmatprep.subr.bf16.mxu0 %v2836
    %3076 = vmatpush1.bf16.msra.mxu0 %v2835
    %3077 = vmatprep.subr.bf16.mxu0 0
    %3078 = vmatpush2.bf16.msra.mxu0 0
    %3079 = vmatprep.subr.bf16.mxu0 0
    %3080 = vmatpush2.bf16.msra.mxu0 0
    %3081 = vmatprep.subr.bf16.mxu0 0
    %3082 = vmatpush2.bf16.msra.mxu0 0
    %3083 = vmatprep.subr.bf16.mxu0 0
    %3084 = vmatpush2.bf16.msra.mxu0 0
    %3085 = vmatprep.subr.bf16.mxu0 0
    %3086 = vmatpush2.bf16.msra.mxu0 0
    %3087 = vmatprep.subr.bf16.mxu0 0
    %3088 = vmatpush2.bf16.msra.mxu0 0
    %3089 = vmatprep.subr.bf16.mxu0 0
    %3090 = vmatpush2.bf16.msra.mxu0 0
    %3091 = vmatprep.subr.bf16.mxu0 0
    %3092 = vmatpush2.bf16.msra.mxu0 0
    %3093 = vmatprep.mubr.bf16.mxu0 0
    %3094 = vmatmul.mubr.bf16.gmra.mxu0 %v2161
    %v3095 = vpop.f32.mrf.mxu0
    %v3096 = vadd.f32 %v3055, %v3095
    %v3097 = vpop.f32.mrf.mxu0
    %v3098 = vadd.f32 %v3057, %v3097
    %v3099 = vpop.f32.mrf.mxu0
    %v3100 = vpop.f32.mrf.mxu0
    %3101 = vdwg.mxu0
    %3102 = vmatprep.subr.bf16.mxu0 0
    %3103 = vmatpush1.bf16.msra.mxu0 %v2762
    %3104 = vmatprep.subr.bf16.mxu0 0
    %3105 = vmatpush1.bf16.msra.mxu0 %v2759
    %3106 = vmatprep.subr.bf16.mxu0 0
    %3107 = vmatpush1.bf16.msra.mxu0 %v2756
    %3108 = vmatprep.subr.bf16.mxu0 0
    %3109 = vmatpush1.bf16.msra.mxu0 %v2753
    %3110 = vmatprep.subr.bf16.mxu0 0
    %3111 = vmatpush1.bf16.msra.mxu0 %v2750
    %3112 = vmatprep.subr.bf16.mxu0 0
    %3113 = vmatpush1.bf16.msra.mxu0 %v2747
    %3114 = vmatprep.subr.bf16.mxu0 0
    %3115 = vmatpush1.bf16.msra.mxu0 %v2744
    %3116 = vmatprep.subr.bf16.mxu0 0
    %3117 = vmatpush1.bf16.msra.mxu0 %v2741
    %3118 = vmatprep.subr.bf16.mxu0 0
    %3119 = vmatpush2.bf16.msra.mxu0 %v2786
    %3120 = vmatprep.subr.bf16.mxu0 0
    %3121 = vmatpush2.bf16.msra.mxu0 %v2783
    %3122 = vmatprep.subr.bf16.mxu0 0
    %3123 = vmatpush2.bf16.msra.mxu0 %v2780
    %3124 = vmatprep.subr.bf16.mxu0 0
    %3125 = vmatpush2.bf16.msra.mxu0 %v2777
    %3126 = vmatprep.subr.bf16.mxu0 0
    %3127 = vmatpush2.bf16.msra.mxu0 %v2774
    %3128 = vmatprep.subr.bf16.mxu0 0
    %3129 = vmatpush2.bf16.msra.mxu0 %v2771
    %3130 = vmatprep.subr.bf16.mxu0 0
    %3131 = vmatpush2.bf16.msra.mxu0 %v2768
    %3132 = vmatprep.subr.bf16.mxu0 0
    %3133 = vmatpush2.bf16.msra.mxu0 %v2765
    %3134 = vmatprep.mubr.bf16.mxu0 %v2158
    %3135 = vmatmul.mubr.bf16.gmra.mxu0 %v2157
    %v3136 = vpop.f32.mrf.mxu0
    %v3137 = vadd.f32 %v2335, %v3136
    %v3138 = vpop.f32.mrf.mxu0
    %v3139 = vpop.f32.mrf.mxu0
    %v3140 = vpop.f32.mrf.mxu0
    %3141 = vdwg.mxu0
    %3142 = vmatprep.subr.bf16.mxu0 0
    %3143 = vmatpush1.bf16.msra.mxu0 %v2810
    %3144 = vmatprep.subr.bf16.mxu0 0
    %3145 = vmatpush1.bf16.msra.mxu0 %v2807
    %3146 = vmatprep.subr.bf16.mxu0 0
    %3147 = vmatpush1.bf16.msra.mxu0 %v2804
    %3148 = vmatprep.subr.bf16.mxu0 0
    %3149 = vmatpush1.bf16.msra.mxu0 %v2801
    %3150 = vmatprep.subr.bf16.mxu0 0
    %3151 = vmatpush1.bf16.msra.mxu0 %v2798
    %3152 = vmatprep.subr.bf16.mxu0 0
    %3153 = vmatpush1.bf16.msra.mxu0 %v2795
    %3154 = vmatprep.subr.bf16.mxu0 0
    %3155 = vmatpush1.bf16.msra.mxu0 %v2792
    %3156 = vmatprep.subr.bf16.mxu0 0
    %3157 = vmatpush1.bf16.msra.mxu0 %v2789
    %3158 = vmatprep.subr.bf16.mxu0 0
    %3159 = vmatpush2.bf16.msra.mxu0 %v2834
    %3160 = vmatprep.subr.bf16.mxu0 0
    %3161 = vmatpush2.bf16.msra.mxu0 %v2831
    %3162 = vmatprep.subr.bf16.mxu0 0
    %3163 = vmatpush2.bf16.msra.mxu0 %v2828
    %3164 = vmatprep.subr.bf16.mxu0 0
    %3165 = vmatpush2.bf16.msra.mxu0 %v2825
    %3166 = vmatprep.subr.bf16.mxu0 0
    %3167 = vmatpush2.bf16.msra.mxu0 %v2822
    %3168 = vmatprep.subr.bf16.mxu0 0
    %3169 = vmatpush2.bf16.msra.mxu0 %v2819
    %3170 = vmatprep.subr.bf16.mxu0 0
    %3171 = vmatpush2.bf16.msra.mxu0 %v2816
    %3172 = vmatprep.subr.bf16.mxu0 0
    %3173 = vmatpush2.bf16.msra.mxu0 %v2813
    %3174 = vmatprep.mubr.bf16.mxu0 %v2160
    %3175 = vmatmul.mubr.bf16.gmra.mxu0 %v2159
    %v3176 = vpop.f32.mrf.mxu0
    %v3177 = vadd.f32 %v3137, %v3176
    %v3178 = vpop.f32.mrf.mxu0
    %v3179 = vpop.f32.mrf.mxu0
    %v3180 = vpop.f32.mrf.mxu0
    %3181 = vdwg.mxu0
    %3182 = vmatprep.subr.bf16.mxu0 0
    %3183 = vmatpush1.bf16.msra.mxu0 %v2858
    %3184 = vmatprep.subr.bf16.mxu0 0
    %3185 = vmatpush1.bf16.msra.mxu0 %v2855
    %3186 = vmatprep.subr.bf16.mxu0 0
    %3187 = vmatpush1.bf16.msra.mxu0 %v2852
    %3188 = vmatprep.subr.bf16.mxu0 0
    %3189 = vmatpush1.bf16.msra.mxu0 %v2849
    %3190 = vmatprep.subr.bf16.mxu0 0
    %3191 = vmatpush1.bf16.msra.mxu0 %v2846
    %3192 = vmatprep.subr.bf16.mxu0 0
    %3193 = vmatpush1.bf16.msra.mxu0 %v2843
    %3194 = vmatprep.subr.bf16.mxu0 0
    %3195 = vmatpush1.bf16.msra.mxu0 %v2840
    %3196 = vmatprep.subr.bf16.mxu0 0
    %3197 = vmatpush1.bf16.msra.mxu0 %v2837
    %3198 = vmatprep.subr.bf16.mxu0 0
    %3199 = vmatpush2.bf16.msra.mxu0 0
    %3200 = vmatprep.subr.bf16.mxu0 0
    %3201 = vmatpush2.bf16.msra.mxu0 0
    %3202 = vmatprep.subr.bf16.mxu0 0
    %3203 = vmatpush2.bf16.msra.mxu0 0
    %3204 = vmatprep.subr.bf16.mxu0 0
    %3205 = vmatpush2.bf16.msra.mxu0 0
    %3206 = vmatprep.subr.bf16.mxu0 0
    %3207 = vmatpush2.bf16.msra.mxu0 0
    %3208 = vmatprep.subr.bf16.mxu0 0
    %3209 = vmatpush2.bf16.msra.mxu0 0
    %3210 = vmatprep.subr.bf16.mxu0 0
    %3211 = vmatpush2.bf16.msra.mxu0 0
    %3212 = vmatprep.subr.bf16.mxu0 0
    %3213 = vmatpush2.bf16.msra.mxu0 0
    %3214 = vmatprep.mubr.bf16.mxu0 0
    %3215 = vmatmul.mubr.bf16.gmra.mxu0 %v2161
    %v3216 = vpop.f32.mrf.mxu0
    %v3217 = vadd.f32 %v3177, %v3216
    %v3218 = vpop.f32.mrf.mxu0
    %v3219 = vpop.f32.mrf.mxu0
    %v3220 = vpop.f32.mrf.mxu0
    %3221 = vdwg.mxu0
    %v3222 = vmax.f32 %v3096, 0.0
    %v3223 = vmax.f32 %v3098, 0.0
    %v3224 = vmax.f32 %v3217, 0.0
    %v3225 = vpack.c.bf16 %v3222, %v3222
    %v3226 = vpack.c.bf16 %v3223, %v3223
    %v3227 = vpack.c.bf16 %v3224, %v3224
    %v3228 = vld [vmem:[%s6] sm:$0xf]
    %v3229 = vld [vmem:[%s6 + $0x4] sm:$0xf]
    %v3230 = vld [vmem:[%s6 + $0x8] sm:$0xf]
    %v3231 = vld [vmem:[%s6 + $0xc] sm:$0xf]
    %v3232 = vld [vmem:[%s6 + $0x10] sm:$0xf]
    %v3233 = vld [vmem:[%s6 + $0x14] sm:$0xf]
    %v3234 = vld [vmem:[%s6 + $0x18] sm:$0xf]
    %v3235 = vld [vmem:[%s6 + $0x1c] sm:$0xf]
    %v3236 = vld [vmem:[%s6 + $0x20] sm:$0xf]
    %v3237 = vld [vmem:[%s6 + $0x24] sm:$0xf]
    %v3238 = vld [vmem:[%s6 + $0x28] sm:$0xf]
    %v3239 = vld [vmem:[%s6 + $0x2c] sm:$0xf]
    %v3240 = vld [vmem:[%s6 + $0x30] sm:$0xf]
    %v3241 = vld [vmem:[%s6 + $0x34] sm:$0xf]
    %v3242 = vld [vmem:[%s6 + $0x38] sm:$0xf]
    %v3243 = vld [vmem:[%s6 + $0x3c] sm:$0xf]
    %v3244 = vld [vmem:[%s6 + $0x40] sm:$0xf]
    %v3245 = vld [vmem:[%s6 + $0x44] sm:$0xf]
    %v3246 = vld [vmem:[%s6 + $0x48] sm:$0xf]
    %v3247 = vld [vmem:[%s6 + $0x4c] sm:$0xf]
    %v3248 = vld [vmem:[%s6 + $0x50] sm:$0xf]
    %v3249 = vld [vmem:[%s6 + $0x54] sm:$0xf]
    %v3250 = vld [vmem:[%s6 + $0x58] sm:$0xf]
    %v3251 = vld [vmem:[%s6 + $0x5c] sm:$0xf]
    %v3252 = vld [vmem:[%s6 + $0x60] sm:$0xf]
    %v3253 = vld [vmem:[%s6 + $0x64] sm:$0xf]
    %v3254 = vld [vmem:[%s6 + $0x68] sm:$0xf]
    %v3255 = vld [vmem:[%s6 + $0x6c] sm:$0xf]
    %v3256 = vld [vmem:[%s6 + $0x70] sm:$0xf]
    %v3257 = vld [vmem:[%s6 + $0x74] sm:$0xf]
    %v3258 = vld [vmem:[%s6 + $0x78] sm:$0xf]
    %v3259 = vld [vmem:[%s6 + $0x7c] sm:$0xf]
    %v3260 = vld [vmem:[%s6 + $0x80] sm:$0xf]
    %v3261 = vld [vmem:[%s6 + $0x84] sm:$0xf]
    %v3262 = vld [vmem:[%s6 + $0x88] sm:$0xf]
    %v3263 = vld [vmem:[%s6 + $0x8c] sm:$0xf]
    %v3264 = vld [vmem:[%s6 + $0x90] sm:$0xf]
    %v3265 = vld [vmem:[%s6 + $0x94] sm:$0xf]
    %v3266 = vld [vmem:[%s6 + $0x98] sm:$0xf]
    %v3267 = vld [vmem:[%s6 + $0x9c] sm:$0xf]
    %v3268 = vld [vmem:[%s6 + $0xa0] sm:$0xf]
    %v3269 = vld [vmem:[%s6 + $0xa4] sm:$0xf]
    %v3270 = vld [vmem:[%s6 + $0xa8] sm:$0xf]
    %v3271 = vld [vmem:[%s6 + $0xac] sm:$0xf]
    %v3272 = vld [vmem:[%s6 + $0xb0] sm:$0xf]
    %v3273 = vld [vmem:[%s6 + $0xb4] sm:$0xf]
    %v3274 = vld [vmem:[%s6 + $0xb8] sm:$0xf]
    %v3275 = vld [vmem:[%s6 + $0xbc] sm:$0xf]
    %v3276 = vld [vmem:[%s7] sm:$0x1]
    %v3278 = vlaneseq
    %v3279 = vshrl.u32 %v3278, 7
    %v3280 = vsub.s32 0, %v3279
    %v3281 = vrot.slane %v3276, %v3280
    %v3331 = vunpack.c.l.b16 %v3228
    %v3332 = vunpack.c.l.b16 %v3229
    %v3333 = vunpack.c.l.b16 %v3230
    %v3334 = vunpack.c.l.b16 %v3231
    %v3335 = vunpack.c.l.b16 %v3232
    %v3336 = vunpack.c.l.b16 %v3233
    %v3337 = vunpack.c.l.b16 %v3234
    %v3338 = vunpack.c.l.b16 %v3235
    %v3339 = vunpack.c.l.b16 %v3236
    %v3340 = vunpack.c.l.b16 %v3237
    %v3341 = vunpack.c.l.b16 %v3238
    %v3342 = vunpack.c.l.b16 %v3239
    %v3343 = vunpack.c.l.b16 %v3240
    %v3344 = vunpack.c.l.b16 %v3241
    %v3345 = vunpack.c.l.b16 %v3242
    %v3346 = vunpack.c.l.b16 %v3243
    %v3347 = vunpack.c.l.b16 %v3244
    %v3348 = vunpack.c.l.b16 %v3245
    %v3349 = vunpack.c.l.b16 %v3246
    %v3350 = vunpack.c.l.b16 %v3247
    %v3351 = vunpack.c.l.b16 %v3248
    %v3352 = vunpack.c.l.b16 %v3249
    %v3353 = vunpack.c.l.b16 %v3250
    %v3354 = vunpack.c.l.b16 %v3251
    %v3355 = vunpack.c.l.b16 %v3252
    %v3356 = vunpack.c.l.b16 %v3253
    %v3357 = vunpack.c.l.b16 %v3254
    %v3358 = vunpack.c.l.b16 %v3255
    %v3359 = vunpack.c.l.b16 %v3256
    %v3360 = vunpack.c.l.b16 %v3257
    %v3361 = vunpack.c.l.b16 %v3258
    %v3362 = vunpack.c.l.b16 %v3259
    %v3363 = vunpack.c.l.b16 %v3260
    %v3364 = vunpack.c.l.b16 %v3261
    %v3365 = vunpack.c.l.b16 %v3262
    %v3366 = vunpack.c.l.b16 %v3263
    %v3367 = vunpack.c.l.b16 %v3264
    %v3368 = vunpack.c.l.b16 %v3265
    %v3369 = vunpack.c.l.b16 %v3266
    %v3370 = vunpack.c.l.b16 %v3267
    %v3371 = vunpack.c.l.b16 %v3268
    %v3372 = vunpack.c.l.b16 %v3269
    %v3373 = vunpack.c.l.b16 %v3270
    %v3374 = vunpack.c.l.b16 %v3271
    %v3375 = vunpack.c.l.b16 %v3272
    %v3376 = vunpack.c.l.b16 %v3273
    %v3377 = vunpack.c.l.b16 %v3274
    %v3378 = vunpack.c.l.b16 %v3275
    %v3379 = vpack.c.b16 %v3332, %v3331
    %v3380 = vpack.c.b16 %v3334, %v3333
    %v3381 = vpack.c.b16 %v3336, %v3335
    %v3382 = vpack.c.b16 %v3338, %v3337
    %v3383 = vpack.c.b16 %v3340, %v3339
    %v3384 = vpack.c.b16 %v3342, %v3341
    %v3385 = vpack.c.b16 %v3344, %v3343
    %v3386 = vpack.c.b16 %v3346, %v3345
    %v3387 = vpack.c.b16 %v3348, %v3347
    %v3388 = vpack.c.b16 %v3350, %v3349
    %v3389 = vpack.c.b16 %v3352, %v3351
    %v3390 = vpack.c.b16 %v3354, %v3353
    %v3391 = vpack.c.b16 %v3356, %v3355
    %v3392 = vpack.c.b16 %v3358, %v3357
    %v3393 = vpack.c.b16 %v3360, %v3359
    %v3394 = vpack.c.b16 %v3362, %v3361
    %v3395 = vpack.c.b16 %v3364, %v3363
    %v3396 = vpack.c.b16 %v3366, %v3365
    %v3397 = vpack.c.b16 %v3368, %v3367
    %v3398 = vpack.c.b16 %v3370, %v3369
    %v3399 = vpack.c.b16 %v3372, %v3371
    %v3400 = vpack.c.b16 %v3374, %v3373
    %v3401 = vpack.c.b16 %v3376, %v3375
    %v3402 = vpack.c.b16 %v3378, %v3377
    %3427 = vmatprep.subr.bf16.mxu0 0
    %3428 = vmatpush1.bf16.msra.mxu0 %v3386
    %3429 = vmatprep.subr.bf16.mxu0 0
    %3430 = vmatpush1.bf16.msra.mxu0 %v3385
    %3431 = vmatprep.subr.bf16.mxu0 0
    %3432 = vmatpush1.bf16.msra.mxu0 %v3384
    %3433 = vmatprep.subr.bf16.mxu0 0
    %3434 = vmatpush1.bf16.msra.mxu0 %v3383
    %3435 = vmatprep.subr.bf16.mxu0 0
    %3436 = vmatpush1.bf16.msra.mxu0 %v3382
    %3437 = vmatprep.subr.bf16.mxu0 0
    %3438 = vmatpush1.bf16.msra.mxu0 %v3381
    %3439 = vmatprep.subr.bf16.mxu0 0
    %3440 = vmatpush1.bf16.msra.mxu0 %v3380
    %3441 = vmatprep.subr.bf16.mxu0 0
    %3442 = vmatpush1.bf16.msra.mxu0 %v3379
    %3443 = vmatprep.subr.bf16.mxu0 0
    %3444 = vmatpush2.bf16.msra.mxu0 %v3394
    %3445 = vmatprep.subr.bf16.mxu0 0
    %3446 = vmatpush2.bf16.msra.mxu0 %v3393
    %3447 = vmatprep.subr.bf16.mxu0 0
    %3448 = vmatpush2.bf16.msra.mxu0 %v3392
    %3449 = vmatprep.subr.bf16.mxu0 0
    %3450 = vmatpush2.bf16.msra.mxu0 %v3391
    %3451 = vmatprep.subr.bf16.mxu0 0
    %3452 = vmatpush2.bf16.msra.mxu0 %v3390
    %3453 = vmatprep.subr.bf16.mxu0 0
    %3454 = vmatpush2.bf16.msra.mxu0 %v3389
    %3455 = vmatprep.subr.bf16.mxu0 0
    %3456 = vmatpush2.bf16.msra.mxu0 %v3388
    %3457 = vmatprep.subr.bf16.mxu0 0
    %3458 = vmatpush2.bf16.msra.mxu0 %v3387
    %3459 = vmatprep.mubr.bf16.mxu0 %v3226
    %3460 = vmatmul.mubr.bf16.gmra.mxu0 %v3225
    %v3461 = vpop.f32.mrf.mxu0
    %v3462 = vadd.f32 %v3281, %v3461
    %v3463 = vpop.f32.mrf.mxu0
    %v3464 = vpop.f32.mrf.mxu0
    %v3465 = vpop.f32.mrf.mxu0
    %3466 = vdwg.mxu0
    %3467 = vmatprep.subr.bf16.mxu0 0
    %3468 = vmatpush1.bf16.msra.mxu0 %v3402
    %3469 = vmatprep.subr.bf16.mxu0 0
    %3470 = vmatpush1.bf16.msra.mxu0 %v3401
    %3471 = vmatprep.subr.bf16.mxu0 0
    %3472 = vmatpush1.bf16.msra.mxu0 %v3400
    %3473 = vmatprep.subr.bf16.mxu0 0
    %3474 = vmatpush1.bf16.msra.mxu0 %v3399
    %3475 = vmatprep.subr.bf16.mxu0 0
    %3476 = vmatpush1.bf16.msra.mxu0 %v3398
    %3477 = vmatprep.subr.bf16.mxu0 0
    %3478 = vmatpush1.bf16.msra.mxu0 %v3397
    %3479 = vmatprep.subr.bf16.mxu0 0
    %3480 = vmatpush1.bf16.msra.mxu0 %v3396
    %3481 = vmatprep.subr.bf16.mxu0 0
    %3482 = vmatpush1.bf16.msra.mxu0 %v3395
    %3483 = vmatprep.subr.bf16.mxu0 0
    %3484 = vmatpush2.bf16.msra.mxu0 0
    %3485 = vmatprep.subr.bf16.mxu0 0
    %3486 = vmatpush2.bf16.msra.mxu0 0
    %3487 = vmatprep.subr.bf16.mxu0 0
    %3488 = vmatpush2.bf16.msra.mxu0 0
    %3489 = vmatprep.subr.bf16.mxu0 0
    %3490 = vmatpush2.bf16.msra.mxu0 0
    %3491 = vmatprep.subr.bf16.mxu0 0
    %3492 = vmatpush2.bf16.msra.mxu0 0
    %3493 = vmatprep.subr.bf16.mxu0 0
    %3494 = vmatpush2.bf16.msra.mxu0 0
    %3495 = vmatprep.subr.bf16.mxu0 0
    %3496 = vmatpush2.bf16.msra.mxu0 0
    %3497 = vmatprep.subr.bf16.mxu0 0
    %3498 = vmatpush2.bf16.msra.mxu0 0
    %3499 = vmatprep.mubr.bf16.mxu0 0
    %3500 = vmatmul.mubr.bf16.gmra.mxu0 %v3227
    %v3501 = vpop.f32.mrf.mxu0
    %v3502 = vadd.f32 %v3462, %v3501
    %v3503 = vpop.f32.mrf.mxu0
    %v3504 = vpop.f32.mrf.mxu0
    %v3505 = vpop.f32.mrf.mxu0
    %3506 = vdwg.mxu0
    %v3507 = vmul.f32 %v3502, 0.5
    %v3508 = vmul.f32 %v3507, 1.442695
    %v3509 = vpow.pop %v3508
    %v3510 = vld [vmem:[%s1] sm:$0xff]
    %3512 = vrot.lane.b32.xlu0 %v3510, 2
    %v3513 = vpop.permute.xlu0 %3512
    %v3515 = vmul.f32 %v3509, %v3513
    %3517 = vrot.lane.b32.xlu0 %v3515, 126
    %v3518 = vpop.permute.xlu0 %3517
    %v3520 = vadd.f32 %v3502, %v3518
    %v3521 = vld [vmem:[%s8] sm:$0x7]
    %v3522 = vunpack.c.l.bf16 %v3521
    %v3523 = vld [vmem:[%s9] sm:$0x7]
    %3525 = vset.pattern.permute.xlu0 0
    %3526 = vperm.xlu0 %3525, %v3520
    %v3527 = vpop.permute.xlu0 %3526
    %v3530 = vlaneseq
    %v3531 = vshrl.u32 %v3530, 7
    %v3532 = vsub.s32 0, %v3531
    %v3533 = vrot.slane %v3522, %v3532
    %v3534 = vlaneseq
    %v3535 = vshrl.u32 %v3534, 7
    %v3536 = vsub.s32 2, %v3535
    %v3537 = vrot.slane %v3522, %v3536
    %v3538 = vlaneseq
    %v3539 = vshrl.u32 %v3538, 7
    %v3540 = vsub.s32 4, %v3539
    %v3541 = vrot.slane %v3522, %v3540
    %v3545 = vlaneseq
    %v3546 = vshrl.u32 %v3545, 7
    %v3547 = vsub.s32 0, %v3546
    %v3548 = vrot.slane %v3533, %v3547
    %v3549 = vlaneseq
    %v3550 = vshrl.u32 %v3549, 7
    %v3551 = vsub.s32 0, %v3550
    %v3552 = vrot.slane %v3537, %v3551
    %v3553 = vlaneseq
    %v3554 = vshrl.u32 %v3553, 7
    %v3555 = vsub.s32 0, %v3554
    %v3556 = vrot.slane %v3541, %v3555
    %v3557 = vmul.f32 %v3527, %v3548
    %v3558 = vmul.f32 %v3527, %v3552
    %v3559 = vmul.f32 %v3527, %v3556
    %v3561 = vlaneseq
    %v3562 = vshrl.u32 %v3561, 7
    %v3563 = vsub.s32 0, %v3562
    %v3564 = vrot.slane %v3523, %v3563
    %v3565 = vlaneseq
    %v3566 = vshrl.u32 %v3565, 7
    %v3567 = vsub.s32 1, %v3566
    %v3568 = vrot.slane %v3523, %v3567
    %v3569 = vlaneseq
    %v3570 = vshrl.u32 %v3569, 7
    %v3571 = vsub.s32 2, %v3570
    %v3572 = vrot.slane %v3523, %v3571
    %v3576 = vadd.f32 %v3564, %v3557
    %v3577 = vadd.f32 %v3568, %v3558
    %v3578 = vadd.f32 %v3572, %v3559
    %3579 = vset.pattern.permute.xlu0 1
    %3580 = vperm.xlu0 %3579, %v3520
    %v3581 = vpop.permute.xlu0 %3580
    %v3583 = vlaneseq
    %v3584 = vshrl.u32 %v3583, 7
    %v3585 = vsub.s32 1, %v3584
    %v3586 = vrot.slane %v3522, %v3585
    %v3587 = vlaneseq
    %v3588 = vshrl.u32 %v3587, 7
    %v3589 = vsub.s32 3, %v3588
    %v3590 = vrot.slane %v3522, %v3589
    %v3591 = vlaneseq
    %v3592 = vshrl.u32 %v3591, 7
    %v3593 = vsub.s32 5, %v3592
    %v3594 = vrot.slane %v3522, %v3593
    %v3598 = vlaneseq
    %v3599 = vshrl.u32 %v3598, 7
    %v3600 = vsub.s32 1, %v3599
    %v3601 = vrot.slane %v3586, %v3600
    %v3602 = vlaneseq
    %v3603 = vshrl.u32 %v3602, 7
    %v3604 = vsub.s32 1, %v3603
    %v3605 = vrot.slane %v3590, %v3604
    %v3606 = vlaneseq
    %v3607 = vshrl.u32 %v3606, 7
    %v3608 = vsub.s32 1, %v3607
    %v3609 = vrot.slane %v3594, %v3608
    %v3610 = vmul.f32 %v3581, %v3601
    %v3611 = vmul.f32 %v3581, %v3605
    %v3612 = vmul.f32 %v3581, %v3609
    %v3613 = vadd.f32 %v3576, %v3610
    %v3614 = vadd.f32 %v3577, %v3611
    %v3615 = vadd.f32 %v3578, %v3612
    %v3616 = vmax.f32 %v3613, 0.0
    %v3617 = vmax.f32 %v3614, 0.0
    %v3618 = vmax.f32 %v3615, 0.0
    %v3619 = vpack.c.bf16 %v3616, %v3616
    %v3620 = vpack.c.bf16 %v3617, %v3617
    %v3621 = vpack.c.bf16 %v3618, %v3618
    %v3622 = vld [vmem:[%s10] sm:$0xff]
    %v3623 = vld [vmem:[%s10 + $0x8] sm:$0xff]
    %v3624 = vld [vmem:[%s10 + $0x10] sm:$0xf]
    %v3625 = vld [vmem:[%s10 + $0x14] sm:$0xff]
    %v3626 = vld [vmem:[%s10 + $0x1c] sm:$0xff]
    %v3627 = vld [vmem:[%s10 + $0x24] sm:$0xf]
    %v3628 = vld [vmem:[%s10 + $0x28] sm:$0xff]
    %v3629 = vld [vmem:[%s10 + $0x30] sm:$0xff]
    %v3630 = vld [vmem:[%s10 + $0x38] sm:$0xf]
    %v3631 = vld [vmem:[%s10 + $0x3c] sm:$0xff]
    %v3632 = vld [vmem:[%s10 + $0x44] sm:$0xff]
    %v3633 = vld [vmem:[%s10 + $0x4c] sm:$0xf]
    %v3634 = vld [vmem:[%s10 + $0x50] sm:$0xff]
    %v3635 = vld [vmem:[%s10 + $0x58] sm:$0xff]
    %v3636 = vld [vmem:[%s10 + $0x60] sm:$0xf]
    %v3637 = vld [vmem:[%s10 + $0x64] sm:$0xff]
    %v3638 = vld [vmem:[%s10 + $0x6c] sm:$0xff]
    %v3639 = vld [vmem:[%s10 + $0x74] sm:$0xf]
    %v3640 = vld [vmem:[%s10 + $0x78] sm:$0xff]
    %v3641 = vld [vmem:[%s10 + $0x80] sm:$0xff]
    %v3642 = vld [vmem:[%s10 + $0x88] sm:$0xf]
    %v3643 = vld [vmem:[%s10 + $0x8c] sm:$0xff]
    %v3644 = vld [vmem:[%s10 + $0x94] sm:$0xff]
    %v3645 = vld [vmem:[%s10 + $0x9c] sm:$0xf]
    %v3646 = vld [vmem:[%s10 + $0xa0] sm:$0xff]
    %v3647 = vld [vmem:[%s10 + $0xa8] sm:$0xff]
    %v3648 = vld [vmem:[%s10 + $0xb0] sm:$0xf]
    %v3649 = vld [vmem:[%s10 + $0xb4] sm:$0xff]
    %v3650 = vld [vmem:[%s10 + $0xbc] sm:$0xff]
    %v3651 = vld [vmem:[%s10 + $0xc4] sm:$0xf]
    %v3652 = vld [vmem:[%s10 + $0xc8] sm:$0xff]
    %v3653 = vld [vmem:[%s10 + $0xd0] sm:$0xff]
    %v3654 = vld [vmem:[%s10 + $0xd8] sm:$0xf]
    %v3655 = vld [vmem:[%s10 + $0xdc] sm:$0xff]
    %v3656 = vld [vmem:[%s10 + $0xe4] sm:$0xff]
    %v3657 = vld [vmem:[%s10 + $0xec] sm:$0xf]
    %v3658 = vld [vmem:[%s10 + $0xf0] sm:$0xff]
    %v3659 = vld [vmem:[%s10 + $0xf8] sm:$0xff]
    %v3660 = vld [vmem:[%s10 + $0x100] sm:$0xf]
    %v3661 = vld [vmem:[%s10 + $0x104] sm:$0xff]
    %v3662 = vld [vmem:[%s10 + $0x10c] sm:$0xff]
    %v3663 = vld [vmem:[%s10 + $0x114] sm:$0xf]
    %v3664 = vld [vmem:[%s10 + $0x118] sm:$0xff]
    %v3665 = vld [vmem:[%s10 + $0x120] sm:$0xff]
    %v3666 = vld [vmem:[%s10 + $0x128] sm:$0xf]
    %v3667 = vld [vmem:[%s10 + $0x12c] sm:$0xff]
    %v3668 = vld [vmem:[%s10 + $0x134] sm:$0xff]
    %v3669 = vld [vmem:[%s10 + $0x13c] sm:$0xf]
    %v3670 = vld [vmem:[%s10 + $0x140] sm:$0xff]
    %v3671 = vld [vmem:[%s10 + $0x148] sm:$0xff]
    %v3672 = vld [vmem:[%s10 + $0x150] sm:$0xf]
    %v3673 = vld [vmem:[%s10 + $0x154] sm:$0xff]
    %v3674 = vld [vmem:[%s10 + $0x15c] sm:$0xff]
    %v3675 = vld [vmem:[%s10 + $0x164] sm:$0xf]
    %v3676 = vld [vmem:[%s10 + $0x168] sm:$0xff]
    %v3677 = vld [vmem:[%s10 + $0x170] sm:$0xff]
    %v3678 = vld [vmem:[%s10 + $0x178] sm:$0xf]
    %v3679 = vld [vmem:[%s10 + $0x17c] sm:$0xff]
    %v3680 = vld [vmem:[%s10 + $0x184] sm:$0xff]
    %v3681 = vld [vmem:[%s10 + $0x18c] sm:$0xf]
    %v3682 = vld [vmem:[%s10 + $0x190] sm:$0xff]
    %v3683 = vld [vmem:[%s10 + $0x198] sm:$0xff]
    %v3684 = vld [vmem:[%s10 + $0x1a0] sm:$0xf]
    %v3685 = vld [vmem:[%s10 + $0x1a4] sm:$0xff]
    %v3686 = vld [vmem:[%s10 + $0x1ac] sm:$0xff]
    %v3687 = vld [vmem:[%s10 + $0x1b4] sm:$0xf]
    %v3688 = vld [vmem:[%s10 + $0x1b8] sm:$0xff]
    %v3689 = vld [vmem:[%s10 + $0x1c0] sm:$0xff]
    %v3690 = vld [vmem:[%s10 + $0x1c8] sm:$0xf]
    %v3691 = vld [vmem:[%s10 + $0x1cc] sm:$0xff]
    %v3692 = vld [vmem:[%s10 + $0x1d4] sm:$0xff]
    %v3693 = vld [vmem:[%s10 + $0x1dc] sm:$0xf]
    %v3694 = vld [vmem:[%s10 + $0x1e0] sm:$0xff]
    %v3695 = vld [vmem:[%s10 + $0x1e8] sm:$0xff]
    %v3696 = vld [vmem:[%s10 + $0x1f0] sm:$0xf]
    %v3697 = vld [vmem:[%s10 + $0x1f4] sm:$0xff]
    %v3698 = vld [vmem:[%s10 + $0x1fc] sm:$0xff]
    %v3699 = vld [vmem:[%s10 + $0x204] sm:$0xf]
    %v3700 = vld [vmem:[%s10 + $0x208] sm:$0xff]
    %v3701 = vld [vmem:[%s10 + $0x210] sm:$0xff]
    %v3702 = vld [vmem:[%s10 + $0x218] sm:$0xf]
    %v3703 = vld [vmem:[%s10 + $0x21c] sm:$0xff]
    %v3704 = vld [vmem:[%s10 + $0x224] sm:$0xff]
    %v3705 = vld [vmem:[%s10 + $0x22c] sm:$0xf]
    %v3706 = vld [vmem:[%s10 + $0x230] sm:$0xff]
    %v3707 = vld [vmem:[%s10 + $0x238] sm:$0xff]
    %v3708 = vld [vmem:[%s10 + $0x240] sm:$0xf]
    %v3709 = vld [vmem:[%s10 + $0x244] sm:$0xff]
    %v3710 = vld [vmem:[%s10 + $0x24c] sm:$0xff]
    %v3711 = vld [vmem:[%s10 + $0x254] sm:$0xf]
    %v3712 = vld [vmem:[%s10 + $0x258] sm:$0xff]
    %v3713 = vld [vmem:[%s10 + $0x260] sm:$0xff]
    %v3714 = vld [vmem:[%s10 + $0x268] sm:$0xf]
    %v3715 = vld [vmem:[%s10 + $0x26c] sm:$0xff]
    %v3716 = vld [vmem:[%s10 + $0x274] sm:$0xff]
    %v3717 = vld [vmem:[%s10 + $0x27c] sm:$0xf]
    %v3718 = vld [vmem:[%s10 + $0x280] sm:$0xff]
    %v3719 = vld [vmem:[%s10 + $0x288] sm:$0xff]
    %v3720 = vld [vmem:[%s10 + $0x290] sm:$0xf]
    %v3721 = vld [vmem:[%s10 + $0x294] sm:$0xff]
    %v3722 = vld [vmem:[%s10 + $0x29c] sm:$0xff]
    %v3723 = vld [vmem:[%s10 + $0x2a4] sm:$0xf]
    %v3724 = vld [vmem:[%s10 + $0x2a8] sm:$0xff]
    %v3725 = vld [vmem:[%s10 + $0x2b0] sm:$0xff]
    %v3726 = vld [vmem:[%s10 + $0x2b8] sm:$0xf]
    %v3727 = vld [vmem:[%s10 + $0x2bc] sm:$0xff]
    %v3728 = vld [vmem:[%s10 + $0x2c4] sm:$0xff]
    %v3729 = vld [vmem:[%s10 + $0x2cc] sm:$0xf]
    %v3730 = vld [vmem:[%s10 + $0x2d0] sm:$0xff]
    %v3731 = vld [vmem:[%s10 + $0x2d8] sm:$0xff]
    %v3732 = vld [vmem:[%s10 + $0x2e0] sm:$0xf]
    %v3733 = vld [vmem:[%s10 + $0x2e4] sm:$0xff]
    %v3734 = vld [vmem:[%s10 + $0x2ec] sm:$0xff]
    %v3735 = vld [vmem:[%s10 + $0x2f4] sm:$0xf]
    %v3736 = vld [vmem:[%s10 + $0x2f8] sm:$0xff]
    %v3737 = vld [vmem:[%s10 + $0x300] sm:$0xff]
    %v3738 = vld [vmem:[%s10 + $0x308] sm:$0xf]
    %v3739 = vld [vmem:[%s10 + $0x30c] sm:$0xff]
    %v3740 = vld [vmem:[%s10 + $0x314] sm:$0xff]
    %v3741 = vld [vmem:[%s10 + $0x31c] sm:$0xf]
    %v3742 = vld [vmem:[%s10 + $0x320] sm:$0xff]
    %v3743 = vld [vmem:[%s10 + $0x328] sm:$0xff]
    %v3744 = vld [vmem:[%s10 + $0x330] sm:$0xf]
    %v3745 = vld [vmem:[%s10 + $0x334] sm:$0xff]
    %v3746 = vld [vmem:[%s10 + $0x33c] sm:$0xff]
    %v3747 = vld [vmem:[%s10 + $0x344] sm:$0xf]
    %v3748 = vld [vmem:[%s10 + $0x348] sm:$0xff]
    %v3749 = vld [vmem:[%s10 + $0x350] sm:$0xff]
    %v3750 = vld [vmem:[%s10 + $0x358] sm:$0xf]
    %v3751 = vld [vmem:[%s10 + $0x35c] sm:$0xff]
    %v3752 = vld [vmem:[%s10 + $0x364] sm:$0xff]
    %v3753 = vld [vmem:[%s10 + $0x36c] sm:$0xf]
    %v3754 = vld [vmem:[%s10 + $0x370] sm:$0xff]
    %v3755 = vld [vmem:[%s10 + $0x378] sm:$0xff]
    %v3756 = vld [vmem:[%s10 + $0x380] sm:$0xf]
    %v3757 = vld [vmem:[%s10 + $0x384] sm:$0xff]
    %v3758 = vld [vmem:[%s10 + $0x38c] sm:$0xff]
    %v3759 = vld [vmem:[%s10 + $0x394] sm:$0xf]
    %v3760 = vld [vmem:[%s10 + $0x398] sm:$0xff]
    %v3761 = vld [vmem:[%s10 + $0x3a0] sm:$0xff]
    %v3762 = vld [vmem:[%s10 + $0x3a8] sm:$0xf]
    %v3763 = vld [vmem:[%s10 + $0x3ac] sm:$0xff]
    %v3764 = vld [vmem:[%s10 + $0x3b4] sm:$0xff]
    %v3765 = vld [vmem:[%s10 + $0x3bc] sm:$0xf]
    %v3766 = vld [vmem:[%s11] sm:$0x1f]
    %v3768 = vlaneseq
    %v3769 = vshrl.u32 %v3768, 7
    %v3770 = vsub.s32 0, %v3769
    %v3771 = vrot.slane %v3766, %v3770
    %v3772 = vlaneseq
    %v3773 = vshrl.u32 %v3772, 7
    %v3774 = vsub.s32 1, %v3773
    %v3775 = vrot.slane %v3766, %v3774
    %v3776 = vlaneseq
    %v3777 = vshrl.u32 %v3776, 7
    %v3778 = vsub.s32 2, %v3777
    %v3779 = vrot.slane %v3766, %v3778
    %v3780 = vlaneseq
    %v3781 = vshrl.u32 %v3780, 7
    %v3782 = vsub.s32 3, %v3781
    %v3783 = vrot.slane %v3766, %v3782
    %v3784 = vlaneseq
    %v3785 = vshrl.u32 %v3784, 7
    %v3786 = vsub.s32 4, %v3785
    %v3787 = vrot.slane %v3766, %v3786
    %v3937 = vunpack.c.l.b16 %v3622
    %v3938 = vunpack.c.h.b16 %v3622
    %v3939 = vunpack.c.l.b16 %v3623
    %v3940 = vunpack.c.h.b16 %v3623
    %v3941 = vunpack.c.l.b16 %v3624
    %v3942 = vunpack.c.l.b16 %v3625
    %v3943 = vunpack.c.h.b16 %v3625
    %v3944 = vunpack.c.l.b16 %v3626
    %v3945 = vunpack.c.h.b16 %v3626
    %v3946 = vunpack.c.l.b16 %v3627
    %v3947 = vunpack.c.l.b16 %v3628
    %v3948 = vunpack.c.h.b16 %v3628
    %v3949 = vunpack.c.l.b16 %v3629
    %v3950 = vunpack.c.h.b16 %v3629
    %v3951 = vunpack.c.l.b16 %v3630
    %v3952 = vunpack.c.l.b16 %v3631
    %v3953 = vunpack.c.h.b16 %v3631
    %v3954 = vunpack.c.l.b16 %v3632
    %v3955 = vunpack.c.h.b16 %v3632
    %v3956 = vunpack.c.l.b16 %v3633
    %v3957 = vunpack.c.l.b16 %v3634
    %v3958 = vunpack.c.h.b16 %v3634
    %v3959 = vunpack.c.l.b16 %v3635
    %v3960 = vunpack.c.h.b16 %v3635
    %v3961 = vunpack.c.l.b16 %v3636
    %v3962 = vunpack.c.l.b16 %v3637
    %v3963 = vunpack.c.h.b16 %v3637
    %v3964 = vunpack.c.l.b16 %v3638
    %v3965 = vunpack.c.h.b16 %v3638
    %v3966 = vunpack.c.l.b16 %v3639
    %v3967 = vunpack.c.l.b16 %v3640
    %v3968 = vunpack.c.h.b16 %v3640
    %v3969 = vunpack.c.l.b16 %v3641
    %v3970 = vunpack.c.h.b16 %v3641
    %v3971 = vunpack.c.l.b16 %v3642
    %v3972 = vunpack.c.l.b16 %v3643
    %v3973 = vunpack.c.h.b16 %v3643
    %v3974 = vunpack.c.l.b16 %v3644
    %v3975 = vunpack.c.h.b16 %v3644
    %v3976 = vunpack.c.l.b16 %v3645
    %v3977 = vunpack.c.l.b16 %v3646
    %v3978 = vunpack.c.h.b16 %v3646
    %v3979 = vunpack.c.l.b16 %v3647
    %v3980 = vunpack.c.h.b16 %v3647
    %v3981 = vunpack.c.l.b16 %v3648
    %v3982 = vunpack.c.l.b16 %v3649
    %v3983 = vunpack.c.h.b16 %v3649
    %v3984 = vunpack.c.l.b16 %v3650
    %v3985 = vunpack.c.h.b16 %v3650
    %v3986 = vunpack.c.l.b16 %v3651
    %v3987 = vunpack.c.l.b16 %v3652
    %v3988 = vunpack.c.h.b16 %v3652
    %v3989 = vunpack.c.l.b16 %v3653
    %v3990 = vunpack.c.h.b16 %v3653
    %v3991 = vunpack.c.l.b16 %v3654
    %v3992 = vunpack.c.l.b16 %v3655
    %v3993 = vunpack.c.h.b16 %v3655
    %v3994 = vunpack.c.l.b16 %v3656
    %v3995 = vunpack.c.h.b16 %v3656
    %v3996 = vunpack.c.l.b16 %v3657
    %v3997 = vunpack.c.l.b16 %v3658
    %v3998 = vunpack.c.h.b16 %v3658
    %v3999 = vunpack.c.l.b16 %v3659
    %v4000 = vunpack.c.h.b16 %v3659
    %v4001 = vunpack.c.l.b16 %v3660
    %v4002 = vunpack.c.l.b16 %v3661
    %v4003 = vunpack.c.h.b16 %v3661
    %v4004 = vunpack.c.l.b16 %v3662
    %v4005 = vunpack.c.h.b16 %v3662
    %v4006 = vunpack.c.l.b16 %v3663
    %v4007 = vunpack.c.l.b16 %v3664
    %v4008 = vunpack.c.h.b16 %v3664
    %v4009 = vunpack.c.l.b16 %v3665
    %v4010 = vunpack.c.h.b16 %v3665
    %v4011 = vunpack.c.l.b16 %v3666
    %v4012 = vunpack.c.l.b16 %v3667
    %v4013 = vunpack.c.h.b16 %v3667
    %v4014 = vunpack.c.l.b16 %v3668
    %v4015 = vunpack.c.h.b16 %v3668
    %v4016 = vunpack.c.l.b16 %v3669
    %v4017 = vunpack.c.l.b16 %v3670
    %v4018 = vunpack.c.h.b16 %v3670
    %v4019 = vunpack.c.l.b16 %v3671
    %v4020 = vunpack.c.h.b16 %v3671
    %v4021 = vunpack.c.l.b16 %v3672
    %v4022 = vunpack.c.l.b16 %v3673
    %v4023 = vunpack.c.h.b16 %v3673
    %v4024 = vunpack.c.l.b16 %v3674
    %v4025 = vunpack.c.h.b16 %v3674
    %v4026 = vunpack.c.l.b16 %v3675
    %v4027 = vunpack.c.l.b16 %v3676
    %v4028 = vunpack.c.h.b16 %v3676
    %v4029 = vunpack.c.l.b16 %v3677
    %v4030 = vunpack.c.h.b16 %v3677
    %v4031 = vunpack.c.l.b16 %v3678
    %v4032 = vunpack.c.l.b16 %v3679
    %v4033 = vunpack.c.h.b16 %v3679
    %v4034 = vunpack.c.l.b16 %v3680
    %v4035 = vunpack.c.h.b16 %v3680
    %v4036 = vunpack.c.l.b16 %v3681
    %v4037 = vunpack.c.l.b16 %v3682
    %v4038 = vunpack.c.h.b16 %v3682
    %v4039 = vunpack.c.l.b16 %v3683
    %v4040 = vunpack.c.h.b16 %v3683
    %v4041 = vunpack.c.l.b16 %v3684
    %v4042 = vunpack.c.l.b16 %v3685
    %v4043 = vunpack.c.h.b16 %v3685
    %v4044 = vunpack.c.l.b16 %v3686
    %v4045 = vunpack.c.h.b16 %v3686
    %v4046 = vunpack.c.l.b16 %v3687
    %v4047 = vunpack.c.l.b16 %v3688
    %v4048 = vunpack.c.h.b16 %v3688
    %v4049 = vunpack.c.l.b16 %v3689
    %v4050 = vunpack.c.h.b16 %v3689
    %v4051 = vunpack.c.l.b16 %v3690
    %v4052 = vunpack.c.l.b16 %v3691
    %v4053 = vunpack.c.h.b16 %v3691
    %v4054 = vunpack.c.l.b16 %v3692
    %v4055 = vunpack.c.h.b16 %v3692
    %v4056 = vunpack.c.l.b16 %v3693
    %v4057 = vunpack.c.l.b16 %v3694
    %v4058 = vunpack.c.h.b16 %v3694
    %v4059 = vunpack.c.l.b16 %v3695
    %v4060 = vunpack.c.h.b16 %v3695
    %v4061 = vunpack.c.l.b16 %v3696
    %v4062 = vunpack.c.l.b16 %v3697
    %v4063 = vunpack.c.h.b16 %v3697
    %v4064 = vunpack.c.l.b16 %v3698
    %v4065 = vunpack.c.h.b16 %v3698
    %v4066 = vunpack.c.l.b16 %v3699
    %v4067 = vunpack.c.l.b16 %v3700
    %v4068 = vunpack.c.h.b16 %v3700
    %v4069 = vunpack.c.l.b16 %v3701
    %v4070 = vunpack.c.h.b16 %v3701
    %v4071 = vunpack.c.l.b16 %v3702
    %v4072 = vunpack.c.l.b16 %v3703
    %v4073 = vunpack.c.h.b16 %v3703
    %v4074 = vunpack.c.l.b16 %v3704
    %v4075 = vunpack.c.h.b16 %v3704
    %v4076 = vunpack.c.l.b16 %v3705
    %v4077 = vunpack.c.l.b16 %v3706
    %v4078 = vunpack.c.h.b16 %v3706
    %v4079 = vunpack.c.l.b16 %v3707
    %v4080 = vunpack.c.h.b16 %v3707
    %v4081 = vunpack.c.l.b16 %v3708
    %v4082 = vunpack.c.l.b16 %v3709
    %v4083 = vunpack.c.h.b16 %v3709
    %v4084 = vunpack.c.l.b16 %v3710
    %v4085 = vunpack.c.h.b16 %v3710
    %v4086 = vunpack.c.l.b16 %v3711
    %v4087 = vunpack.c.l.b16 %v3712
    %v4088 = vunpack.c.h.b16 %v3712
    %v4089 = vunpack.c.l.b16 %v3713
    %v4090 = vunpack.c.h.b16 %v3713
    %v4091 = vunpack.c.l.b16 %v3714
    %v4092 = vunpack.c.l.b16 %v3715
    %v4093 = vunpack.c.h.b16 %v3715
    %v4094 = vunpack.c.l.b16 %v3716
    %v4095 = vunpack.c.h.b16 %v3716
    %v4096 = vunpack.c.l.b16 %v3717
    %v4097 = vunpack.c.l.b16 %v3718
    %v4098 = vunpack.c.h.b16 %v3718
    %v4099 = vunpack.c.l.b16 %v3719
    %v4100 = vunpack.c.h.b16 %v3719
    %v4101 = vunpack.c.l.b16 %v3720
    %v4102 = vunpack.c.l.b16 %v3721
    %v4103 = vunpack.c.h.b16 %v3721
    %v4104 = vunpack.c.l.b16 %v3722
    %v4105 = vunpack.c.h.b16 %v3722
    %v4106 = vunpack.c.l.b16 %v3723
    %v4107 = vunpack.c.l.b16 %v3724
    %v4108 = vunpack.c.h.b16 %v3724
    %v4109 = vunpack.c.l.b16 %v3725
    %v4110 = vunpack.c.h.b16 %v3725
    %v4111 = vunpack.c.l.b16 %v3726
    %v4112 = vunpack.c.l.b16 %v3727
    %v4113 = vunpack.c.h.b16 %v3727
    %v4114 = vunpack.c.l.b16 %v3728
    %v4115 = vunpack.c.h.b16 %v3728
    %v4116 = vunpack.c.l.b16 %v3729
    %v4117 = vunpack.c.l.b16 %v3730
    %v4118 = vunpack.c.h.b16 %v3730
    %v4119 = vunpack.c.l.b16 %v3731
    %v4120 = vunpack.c.h.b16 %v3731
    %v4121 = vunpack.c.l.b16 %v3732
    %v4122 = vunpack.c.l.b16 %v3733
    %v4123 = vunpack.c.h.b16 %v3733
    %v4124 = vunpack.c.l.b16 %v3734
    %v4125 = vunpack.c.h.b16 %v3734
    %v4126 = vunpack.c.l.b16 %v3735
    %v4127 = vunpack.c.l.b16 %v3736
    %v4128 = vunpack.c.h.b16 %v3736
    %v4129 = vunpack.c.l.b16 %v3737
    %v4130 = vunpack.c.h.b16 %v3737
    %v4131 = vunpack.c.l.b16 %v3738
    %v4132 = vunpack.c.l.b16 %v3739
    %v4133 = vunpack.c.h.b16 %v3739
    %v4134 = vunpack.c.l.b16 %v3740
    %v4135 = vunpack.c.h.b16 %v3740
    %v4136 = vunpack.c.l.b16 %v3741
    %v4137 = vunpack.c.l.b16 %v3742
    %v4138 = vunpack.c.h.b16 %v3742
    %v4139 = vunpack.c.l.b16 %v3743
    %v4140 = vunpack.c.h.b16 %v3743
    %v4141 = vunpack.c.l.b16 %v3744
    %v4142 = vunpack.c.l.b16 %v3745
    %v4143 = vunpack.c.h.b16 %v3745
    %v4144 = vunpack.c.l.b16 %v3746
    %v4145 = vunpack.c.h.b16 %v3746
    %v4146 = vunpack.c.l.b16 %v3747
    %v4147 = vunpack.c.l.b16 %v3748
    %v4148 = vunpack.c.h.b16 %v3748
    %v4149 = vunpack.c.l.b16 %v3749
    %v4150 = vunpack.c.h.b16 %v3749
    %v4151 = vunpack.c.l.b16 %v3750
    %v4152 = vunpack.c.l.b16 %v3751
    %v4153 = vunpack.c.h.b16 %v3751
    %v4154 = vunpack.c.l.b16 %v3752
    %v4155 = vunpack.c.h.b16 %v3752
    %v4156 = vunpack.c.l.b16 %v3753
    %v4157 = vunpack.c.l.b16 %v3754
    %v4158 = vunpack.c.h.b16 %v3754
    %v4159 = vunpack.c.l.b16 %v3755
    %v4160 = vunpack.c.h.b16 %v3755
    %v4161 = vunpack.c.l.b16 %v3756
    %v4162 = vunpack.c.l.b16 %v3757
    %v4163 = vunpack.c.h.b16 %v3757
    %v4164 = vunpack.c.l.b16 %v3758
    %v4165 = vunpack.c.h.b16 %v3758
    %v4166 = vunpack.c.l.b16 %v3759
    %v4167 = vunpack.c.l.b16 %v3760
    %v4168 = vunpack.c.h.b16 %v3760
    %v4169 = vunpack.c.l.b16 %v3761
    %v4170 = vunpack.c.h.b16 %v3761
    %v4171 = vunpack.c.l.b16 %v3762
    %v4172 = vunpack.c.l.b16 %v3763
    %v4173 = vunpack.c.h.b16 %v3763
    %v4174 = vunpack.c.l.b16 %v3764
    %v4175 = vunpack.c.h.b16 %v3764
    %v4176 = vunpack.c.l.b16 %v3765
    %v4177 = vpack.c.b16 %v3942, %v3937
    %v4178 = vpack.c.b16 %v3943, %v3938
    %v4179 = vpack.c.b16 %v3944, %v3939
    %v4180 = vpack.c.b16 %v3945, %v3940
    %v4181 = vpack.c.b16 %v3946, %v3941
    %v4182 = vpack.c.b16 %v3952, %v3947
    %v4183 = vpack.c.b16 %v3953, %v3948
    %v4184 = vpack.c.b16 %v3954, %v3949
    %v4185 = vpack.c.b16 %v3955, %v3950
    %v4186 = vpack.c.b16 %v3956, %v3951
    %v4187 = vpack.c.b16 %v3962, %v3957
    %v4188 = vpack.c.b16 %v3963, %v3958
    %v4189 = vpack.c.b16 %v3964, %v3959
    %v4190 = vpack.c.b16 %v3965, %v3960
    %v4191 = vpack.c.b16 %v3966, %v3961
    %v4192 = vpack.c.b16 %v3972, %v3967
    %v4193 = vpack.c.b16 %v3973, %v3968
    %v4194 = vpack.c.b16 %v3974, %v3969
    %v4195 = vpack.c.b16 %v3975, %v3970
    %v4196 = vpack.c.b16 %v3976, %v3971
    %v4197 = vpack.c.b16 %v3982, %v3977
    %v4198 = vpack.c.b16 %v3983, %v3978
    %v4199 = vpack.c.b16 %v3984, %v3979
    %v4200 = vpack.c.b16 %v3985, %v3980
    %v4201 = vpack.c.b16 %v3986, %v3981
    %v4202 = vpack.c.b16 %v3992, %v3987
    %v4203 = vpack.c.b16 %v3993, %v3988
    %v4204 = vpack.c.b16 %v3994, %v3989
    %v4205 = vpack.c.b16 %v3995, %v3990
    %v4206 = vpack.c.b16 %v3996, %v3991
    %v4207 = vpack.c.b16 %v4002, %v3997
    %v4208 = vpack.c.b16 %v4003, %v3998
    %v4209 = vpack.c.b16 %v4004, %v3999
    %v4210 = vpack.c.b16 %v4005, %v4000
    %v4211 = vpack.c.b16 %v4006, %v4001
    %v4212 = vpack.c.b16 %v4012, %v4007
    %v4213 = vpack.c.b16 %v4013, %v4008
    %v4214 = vpack.c.b16 %v4014, %v4009
    %v4215 = vpack.c.b16 %v4015, %v4010
    %v4216 = vpack.c.b16 %v4016, %v4011
    %v4217 = vpack.c.b16 %v4022, %v4017
    %v4218 = vpack.c.b16 %v4023, %v4018
    %v4219 = vpack.c.b16 %v4024, %v4019
    %v4220 = vpack.c.b16 %v4025, %v4020
    %v4221 = vpack.c.b16 %v4026, %v4021
    %v4222 = vpack.c.b16 %v4032, %v4027
    %v4223 = vpack.c.b16 %v4033, %v4028
    %v4224 = vpack.c.b16 %v4034, %v4029
    %v4225 = vpack.c.b16 %v4035, %v4030
    %v4226 = vpack.c.b16 %v4036, %v4031
    %v4227 = vpack.c.b16 %v4042, %v4037
    %v4228 = vpack.c.b16 %v4043, %v4038
    %v4229 = vpack.c.b16 %v4044, %v4039
    %v4230 = vpack.c.b16 %v4045, %v4040
    %v4231 = vpack.c.b16 %v4046, %v4041
    %v4232 = vpack.c.b16 %v4052, %v4047
    %v4233 = vpack.c.b16 %v4053, %v4048
    %v4234 = vpack.c.b16 %v4054, %v4049
    %v4235 = vpack.c.b16 %v4055, %v4050
    %v4236 = vpack.c.b16 %v4056, %v4051
    %v4237 = vpack.c.b16 %v4062, %v4057
    %v4238 = vpack.c.b16 %v4063, %v4058
    %v4239 = vpack.c.b16 %v4064, %v4059
    %v4240 = vpack.c.b16 %v4065, %v4060
    %v4241 = vpack.c.b16 %v4066, %v4061
    %v4242 = vpack.c.b16 %v4072, %v4067
    %v4243 = vpack.c.b16 %v4073, %v4068
    %v4244 = vpack.c.b16 %v4074, %v4069
    %v4245 = vpack.c.b16 %v4075, %v4070
    %v4246 = vpack.c.b16 %v4076, %v4071
    %v4247 = vpack.c.b16 %v4082, %v4077
    %v4248 = vpack.c.b16 %v4083, %v4078
    %v4249 = vpack.c.b16 %v4084, %v4079
    %v4250 = vpack.c.b16 %v4085, %v4080
    %v4251 = vpack.c.b16 %v4086, %v4081
    %v4252 = vpack.c.b16 %v4092, %v4087
    %v4253 = vpack.c.b16 %v4093, %v4088
    %v4254 = vpack.c.b16 %v4094, %v4089
    %v4255 = vpack.c.b16 %v4095, %v4090
    %v4256 = vpack.c.b16 %v4096, %v4091
    %v4257 = vpack.c.b16 %v4102, %v4097
    %v4258 = vpack.c.b16 %v4103, %v4098
    %v4259 = vpack.c.b16 %v4104, %v4099
    %v4260 = vpack.c.b16 %v4105, %v4100
    %v4261 = vpack.c.b16 %v4106, %v4101
    %v4262 = vpack.c.b16 %v4112, %v4107
    %v4263 = vpack.c.b16 %v4113, %v4108
    %v4264 = vpack.c.b16 %v4114, %v4109
    %v4265 = vpack.c.b16 %v4115, %v4110
    %v4266 = vpack.c.b16 %v4116, %v4111
    %v4267 = vpack.c.b16 %v4122, %v4117
    %v4268 = vpack.c.b16 %v4123, %v4118
    %v4269 = vpack.c.b16 %v4124, %v4119
    %v4270 = vpack.c.b16 %v4125, %v4120
    %v4271 = vpack.c.b16 %v4126, %v4121
    %v4272 = vpack.c.b16 %v4132, %v4127
    %v4273 = vpack.c.b16 %v4133, %v4128
    %v4274 = vpack.c.b16 %v4134, %v4129
    %v4275 = vpack.c.b16 %v4135, %v4130
    %v4276 = vpack.c.b16 %v4136, %v4131
    %v4277 = vpack.c.b16 %v4142, %v4137
    %v4278 = vpack.c.b16 %v4143, %v4138
    %v4279 = vpack.c.b16 %v4144, %v4139
    %v4280 = vpack.c.b16 %v4145, %v4140
    %v4281 = vpack.c.b16 %v4146, %v4141
    %v4282 = vpack.c.b16 %v4152, %v4147
    %v4283 = vpack.c.b16 %v4153, %v4148
    %v4284 = vpack.c.b16 %v4154, %v4149
    %v4285 = vpack.c.b16 %v4155, %v4150
    %v4286 = vpack.c.b16 %v4156, %v4151
    %v4287 = vpack.c.b16 %v4162, %v4157
    %v4288 = vpack.c.b16 %v4163, %v4158
    %v4289 = vpack.c.b16 %v4164, %v4159
    %v4290 = vpack.c.b16 %v4165, %v4160
    %v4291 = vpack.c.b16 %v4166, %v4161
    %v4292 = vpack.c.b16 %v4172, %v4167
    %v4293 = vpack.c.b16 %v4173, %v4168
    %v4294 = vpack.c.b16 %v4174, %v4169
    %v4295 = vpack.c.b16 %v4175, %v4170
    %v4296 = vpack.c.b16 %v4176, %v4171
    %4417 = vmatprep.subr.bf16.mxu0 %v4213
    %4418 = vmatpush1.bf16.msra.mxu0 %v4212
    %4419 = vmatprep.subr.bf16.mxu0 %v4208
    %4420 = vmatpush1.bf16.msra.mxu0 %v4207
    %4421 = vmatprep.subr.bf16.mxu0 %v4203
    %4422 = vmatpush1.bf16.msra.mxu0 %v4202
    %4423 = vmatprep.subr.bf16.mxu0 %v4198
    %4424 = vmatpush1.bf16.msra.mxu0 %v4197
    %4425 = vmatprep.subr.bf16.mxu0 %v4193
    %4426 = vmatpush1.bf16.msra.mxu0 %v4192
    %4427 = vmatprep.subr.bf16.mxu0 %v4188
    %4428 = vmatpush1.bf16.msra.mxu0 %v4187
    %4429 = vmatprep.subr.bf16.mxu0 %v4183
    %4430 = vmatpush1.bf16.msra.mxu0 %v4182
    %4431 = vmatprep.subr.bf16.mxu0 %v4178
    %4432 = vmatpush1.bf16.msra.mxu0 %v4177
    %4433 = vmatprep.subr.bf16.mxu0 %v4253
    %4434 = vmatpush2.bf16.msra.mxu0 %v4252
    %4435 = vmatprep.subr.bf16.mxu0 %v4248
    %4436 = vmatpush2.bf16.msra.mxu0 %v4247
    %4437 = vmatprep.subr.bf16.mxu0 %v4243
    %4438 = vmatpush2.bf16.msra.mxu0 %v4242
    %4439 = vmatprep.subr.bf16.mxu0 %v4238
    %4440 = vmatpush2.bf16.msra.mxu0 %v4237
    %4441 = vmatprep.subr.bf16.mxu0 %v4233
    %4442 = vmatpush2.bf16.msra.mxu0 %v4232
    %4443 = vmatprep.subr.bf16.mxu0 %v4228
    %4444 = vmatpush2.bf16.msra.mxu0 %v4227
    %4445 = vmatprep.subr.bf16.mxu0 %v4223
    %4446 = vmatpush2.bf16.msra.mxu0 %v4222
    %4447 = vmatprep.subr.bf16.mxu0 %v4218
    %4448 = vmatpush2.bf16.msra.mxu0 %v4217
    %4449 = vmatprep.mubr.bf16.mxu0 %v3620
    %4450 = vmatmul.mubr.bf16.gmra.mxu0 %v3619
    %v4451 = vpop.f32.mrf.mxu0
    %v4452 = vadd.f32 %v3771, %v4451
    %v4453 = vpop.f32.mrf.mxu0
    %v4454 = vadd.f32 %v3775, %v4453
    %v4455 = vpop.f32.mrf.mxu0
    %v4456 = vpop.f32.mrf.mxu0
    %4457 = vdwg.mxu0
    %4458 = vmatprep.subr.bf16.mxu0 %v4293
    %4459 = vmatpush1.bf16.msra.mxu0 %v4292
    %4460 = vmatprep.subr.bf16.mxu0 %v4288
    %4461 = vmatpush1.bf16.msra.mxu0 %v4287
    %4462 = vmatprep.subr.bf16.mxu0 %v4283
    %4463 = vmatpush1.bf16.msra.mxu0 %v4282
    %4464 = vmatprep.subr.bf16.mxu0 %v4278
    %4465 = vmatpush1.bf16.msra.mxu0 %v4277
    %4466 = vmatprep.subr.bf16.mxu0 %v4273
    %4467 = vmatpush1.bf16.msra.mxu0 %v4272
    %4468 = vmatprep.subr.bf16.mxu0 %v4268
    %4469 = vmatpush1.bf16.msra.mxu0 %v4267
    %4470 = vmatprep.subr.bf16.mxu0 %v4263
    %4471 = vmatpush1.bf16.msra.mxu0 %v4262
    %4472 = vmatprep.subr.bf16.mxu0 %v4258
    %4473 = vmatpush1.bf16.msra.mxu0 %v4257
    %4474 = vmatprep.subr.bf16.mxu0 0
    %4475 = vmatpush2.bf16.msra.mxu0 0
    %4476 = vmatprep.subr.bf16.mxu0 0
    %4477 = vmatpush2.bf16.msra.mxu0 0
    %4478 = vmatprep.subr.bf16.mxu0 0
    %4479 = vmatpush2.bf16.msra.mxu0 0
    %4480 = vmatprep.subr.bf16.mxu0 0
    %4481 = vmatpush2.bf16.msra.mxu0 0
    %4482 = vmatprep.subr.bf16.mxu0 0
    %4483 = vmatpush2.bf16.msra.mxu0 0
    %4484 = vmatprep.subr.bf16.mxu0 0
    %4485 = vmatpush2.bf16.msra.mxu0 0
    %4486 = vmatprep.subr.bf16.mxu0 0
    %4487 = vmatpush2.bf16.msra.mxu0 0
    %4488 = vmatprep.subr.bf16.mxu0 0
    %4489 = vmatpush2.bf16.msra.mxu0 0
    %4490 = vmatprep.mubr.bf16.mxu0 0
    %4491 = vmatmul.mubr.bf16.gmra.mxu0 %v3621
    %v4492 = vpop.f32.mrf.mxu0
    %v4493 = vadd.f32 %v4452, %v4492
    %v4494 = vpop.f32.mrf.mxu0
    %v4495 = vadd.f32 %v4454, %v4494
    %v4496 = vpop.f32.mrf.mxu0
    %v4497 = vpop.f32.mrf.mxu0
    %4498 = vdwg.mxu0
    %4499 = vmatprep.subr.bf16.mxu0 %v4215
    %4500 = vmatpush1.bf16.msra.mxu0 %v4214
    %4501 = vmatprep.subr.bf16.mxu0 %v4210
    %4502 = vmatpush1.bf16.msra.mxu0 %v4209
    %4503 = vmatprep.subr.bf16.mxu0 %v4205
    %4504 = vmatpush1.bf16.msra.mxu0 %v4204
    %4505 = vmatprep.subr.bf16.mxu0 %v4200
    %4506 = vmatpush1.bf16.msra.mxu0 %v4199
    %4507 = vmatprep.subr.bf16.mxu0 %v4195
    %4508 = vmatpush1.bf16.msra.mxu0 %v4194
    %4509 = vmatprep.subr.bf16.mxu0 %v4190
    %4510 = vmatpush1.bf16.msra.mxu0 %v4189
    %4511 = vmatprep.subr.bf16.mxu0 %v4185
    %4512 = vmatpush1.bf16.msra.mxu0 %v4184
    %4513 = vmatprep.subr.bf16.mxu0 %v4180
    %4514 = vmatpush1.bf16.msra.mxu0 %v4179
    %4515 = vmatprep.subr.bf16.mxu0 %v4255
    %4516 = vmatpush2.bf16.msra.mxu0 %v4254
    %4517 = vmatprep.subr.bf16.mxu0 %v4250
    %4518 = vmatpush2.bf16.msra.mxu0 %v4249
    %4519 = vmatprep.subr.bf16.mxu0 %v4245
    %4520 = vmatpush2.bf16.msra.mxu0 %v4244
    %4521 = vmatprep.subr.bf16.mxu0 %v4240
    %4522 = vmatpush2.bf16.msra.mxu0 %v4239
    %4523 = vmatprep.subr.bf16.mxu0 %v4235
    %4524 = vmatpush2.bf16.msra.mxu0 %v4234
    %4525 = vmatprep.subr.bf16.mxu0 %v4230
    %4526 = vmatpush2.bf16.msra.mxu0 %v4229
    %4527 = vmatprep.subr.bf16.mxu0 %v4225
    %4528 = vmatpush2.bf16.msra.mxu0 %v4224
    %4529 = vmatprep.subr.bf16.mxu0 %v4220
    %4530 = vmatpush2.bf16.msra.mxu0 %v4219
    %4531 = vmatprep.mubr.bf16.mxu0 %v3620
    %4532 = vmatmul.mubr.bf16.gmra.mxu0 %v3619
    %v4533 = vpop.f32.mrf.mxu0
    %v4534 = vadd.f32 %v3779, %v4533
    %v4535 = vpop.f32.mrf.mxu0
    %v4536 = vadd.f32 %v3783, %v4535
    %v4537 = vpop.f32.mrf.mxu0
    %v4538 = vpop.f32.mrf.mxu0
    %4539 = vdwg.mxu0
    %4540 = vmatprep.subr.bf16.mxu0 %v4295
    %4541 = vmatpush1.bf16.msra.mxu0 %v4294
    %4542 = vmatprep.subr.bf16.mxu0 %v4290
    %4543 = vmatpush1.bf16.msra.mxu0 %v4289
    %4544 = vmatprep.subr.bf16.mxu0 %v4285
    %4545 = vmatpush1.bf16.msra.mxu0 %v4284
    %4546 = vmatprep.subr.bf16.mxu0 %v4280
    %4547 = vmatpush1.bf16.msra.mxu0 %v4279
    %4548 = vmatprep.subr.bf16.mxu0 %v4275
    %4549 = vmatpush1.bf16.msra.mxu0 %v4274
    %4550 = vmatprep.subr.bf16.mxu0 %v4270
    %4551 = vmatpush1.bf16.msra.mxu0 %v4269
    %4552 = vmatprep.subr.bf16.mxu0 %v4265
    %4553 = vmatpush1.bf16.msra.mxu0 %v4264
    %4554 = vmatprep.subr.bf16.mxu0 %v4260
    %4555 = vmatpush1.bf16.msra.mxu0 %v4259
    %4556 = vmatprep.subr.bf16.mxu0 0
    %4557 = vmatpush2.bf16.msra.mxu0 0
    %4558 = vmatprep.subr.bf16.mxu0 0
    %4559 = vmatpush2.bf16.msra.mxu0 0
    %4560 = vmatprep.subr.bf16.mxu0 0
    %4561 = vmatpush2.bf16.msra.mxu0 0
    %4562 = vmatprep.subr.bf16.mxu0 0
    %4563 = vmatpush2.bf16.msra.mxu0 0
    %4564 = vmatprep.subr.bf16.mxu0 0
    %4565 = vmatpush2.bf16.msra.mxu0 0
    %4566 = vmatprep.subr.bf16.mxu0 0
    %4567 = vmatpush2.bf16.msra.mxu0 0
    %4568 = vmatprep.subr.bf16.mxu0 0
    %4569 = vmatpush2.bf16.msra.mxu0 0
    %4570 = vmatprep.subr.bf16.mxu0 0
    %4571 = vmatpush2.bf16.msra.mxu0 0
    %4572 = vmatprep.mubr.bf16.mxu0 0
    %4573 = vmatmul.mubr.bf16.gmra.mxu0 %v3621
    %v4574 = vpop.f32.mrf.mxu0
    %v4575 = vadd.f32 %v4534, %v4574
    %v4576 = vpop.f32.mrf.mxu0
    %v4577 = vadd.f32 %v4536, %v4576
    %v4578 = vpop.f32.mrf.mxu0
    %v4579 = vpop.f32.mrf.mxu0
    %4580 = vdwg.mxu0
    %4581 = vmatprep.subr.bf16.mxu0 0
    %4582 = vmatpush1.bf16.msra.mxu0 %v4216
    %4583 = vmatprep.subr.bf16.mxu0 0
    %4584 = vmatpush1.bf16.msra.mxu0 %v4211
    %4585 = vmatprep.subr.bf16.mxu0 0
    %4586 = vmatpush1.bf16.msra.mxu0 %v4206
    %4587 = vmatprep.subr.bf16.mxu0 0
    %4588 = vmatpush1.bf16.msra.mxu0 %v4201
    %4589 = vmatprep.subr.bf16.mxu0 0
    %4590 = vmatpush1.bf16.msra.mxu0 %v4196
    %4591 = vmatprep.subr.bf16.mxu0 0
    %4592 = vmatpush1.bf16.msra.mxu0 %v4191
    %4593 = vmatprep.subr.bf16.mxu0 0
    %4594 = vmatpush1.bf16.msra.mxu0 %v4186
    %4595 = vmatprep.subr.bf16.mxu0 0
    %4596 = vmatpush1.bf16.msra.mxu0 %v4181
    %4597 = vmatprep.subr.bf16.mxu0 0
    %4598 = vmatpush2.bf16.msra.mxu0 %v4256
    %4599 = vmatprep.subr.bf16.mxu0 0
    %4600 = vmatpush2.bf16.msra.mxu0 %v4251
    %4601 = vmatprep.subr.bf16.mxu0 0
    %4602 = vmatpush2.bf16.msra.mxu0 %v4246
    %4603 = vmatprep.subr.bf16.mxu0 0
    %4604 = vmatpush2.bf16.msra.mxu0 %v4241
    %4605 = vmatprep.subr.bf16.mxu0 0
    %4606 = vmatpush2.bf16.msra.mxu0 %v4236
    %4607 = vmatprep.subr.bf16.mxu0 0
    %4608 = vmatpush2.bf16.msra.mxu0 %v4231
    %4609 = vmatprep.subr.bf16.mxu0 0
    %4610 = vmatpush2.bf16.msra.mxu0 %v4226
    %4611 = vmatprep.subr.bf16.mxu0 0
    %4612 = vmatpush2.bf16.msra.mxu0 %v4221
    %4613 = vmatprep.mubr.bf16.mxu0 %v3620
    %4614 = vmatmul.mubr.bf16.gmra.mxu0 %v3619
    %v4615 = vpop.f32.mrf.mxu0
    %v4616 = vadd.f32 %v3787, %v4615
    %v4617 = vpop.f32.mrf.mxu0
    %v4618 = vpop.f32.mrf.mxu0
    %v4619 = vpop.f32.mrf.mxu0
    %4620 = vdwg.mxu0
    %4621 = vmatprep.subr.bf16.mxu0 0
    %4622 = vmatpush1.bf16.msra.mxu0 %v4296
    %4623 = vmatprep.subr.bf16.mxu0 0
    %4624 = vmatpush1.bf16.msra.mxu0 %v4291
    %4625 = vmatprep.subr.bf16.mxu0 0
    %4626 = vmatpush1.bf16.msra.mxu0 %v4286
    %4627 = vmatprep.subr.bf16.mxu0 0
    %4628 = vmatpush1.bf16.msra.mxu0 %v4281
    %4629 = vmatprep.subr.bf16.mxu0 0
    %4630 = vmatpush1.bf16.msra.mxu0 %v4276
    %4631 = vmatprep.subr.bf16.mxu0 0
    %4632 = vmatpush1.bf16.msra.mxu0 %v4271
    %4633 = vmatprep.subr.bf16.mxu0 0
    %4634 = vmatpush1.bf16.msra.mxu0 %v4266
    %4635 = vmatprep.subr.bf16.mxu0 0
    %4636 = vmatpush1.bf16.msra.mxu0 %v4261
    %4637 = vmatprep.subr.bf16.mxu0 0
    %4638 = vmatpush2.bf16.msra.mxu0 0
    %4639 = vmatprep.subr.bf16.mxu0 0
    %4640 = vmatpush2.bf16.msra.mxu0 0
    %4641 = vmatprep.subr.bf16.mxu0 0
    %4642 = vmatpush2.bf16.msra.mxu0 0
    %4643 = vmatprep.subr.bf16.mxu0 0
    %4644 = vmatpush2.bf16.msra.mxu0 0
    %4645 = vmatprep.subr.bf16.mxu0 0
    %4646 = vmatpush2.bf16.msra.mxu0 0
    %4647 = vmatprep.subr.bf16.mxu0 0
    %4648 = vmatpush2.bf16.msra.mxu0 0
    %4649 = vmatprep.subr.bf16.mxu0 0
    %4650 = vmatpush2.bf16.msra.mxu0 0
    %4651 = vmatprep.subr.bf16.mxu0 0
    %4652 = vmatpush2.bf16.msra.mxu0 0
    %4653 = vmatprep.mubr.bf16.mxu0 0
    %4654 = vmatmul.mubr.bf16.gmra.mxu0 %v3621
    %v4655 = vpop.f32.mrf.mxu0
    %v4656 = vadd.f32 %v4616, %v4655
    %v4657 = vpop.f32.mrf.mxu0
    %v4658 = vpop.f32.mrf.mxu0
    %v4659 = vpop.f32.mrf.mxu0
    %4660 = vdwg.mxu0
    %v4661 = vmax.f32 %v4493, 0.0
    %v4662 = vmax.f32 %v4495, 0.0
    %v4663 = vmax.f32 %v4575, 0.0
    %v4664 = vmax.f32 %v4577, 0.0
    %v4665 = vmax.f32 %v4656, 0.0
    %v4666 = vpack.c.bf16 %v4661, %v4661
    %v4667 = vpack.c.bf16 %v4662, %v4662
    %v4668 = vpack.c.bf16 %v4663, %v4663
    %v4669 = vpack.c.bf16 %v4664, %v4664
    %v4670 = vpack.c.bf16 %v4665, %v4665
    %v4671 = vld [vmem:[%s12] sm:$0xff]
    %v4672 = vld [vmem:[%s12 + $0x8] sm:$0xff]
    %v4673 = vld [vmem:[%s12 + $0x10] sm:$0xff]
    %v4674 = vld [vmem:[%s12 + $0x18] sm:$0xf]
    %v4675 = vld [vmem:[%s12 + $0x1c] sm:$0xff]
    %v4676 = vld [vmem:[%s12 + $0x24] sm:$0xff]
    %v4677 = vld [vmem:[%s12 + $0x2c] sm:$0xff]
    %v4678 = vld [vmem:[%s12 + $0x34] sm:$0xf]
    %v4679 = vld [vmem:[%s12 + $0x38] sm:$0xff]
    %v4680 = vld [vmem:[%s12 + $0x40] sm:$0xff]
    %v4681 = vld [vmem:[%s12 + $0x48] sm:$0xff]
    %v4682 = vld [vmem:[%s12 + $0x50] sm:$0xf]
    %v4683 = vld [vmem:[%s12 + $0x54] sm:$0xff]
    %v4684 = vld [vmem:[%s12 + $0x5c] sm:$0xff]
    %v4685 = vld [vmem:[%s12 + $0x64] sm:$0xff]
    %v4686 = vld [vmem:[%s12 + $0x6c] sm:$0xf]
    %v4687 = vld [vmem:[%s12 + $0x70] sm:$0xff]
    %v4688 = vld [vmem:[%s12 + $0x78] sm:$0xff]
    %v4689 = vld [vmem:[%s12 + $0x80] sm:$0xff]
    %v4690 = vld [vmem:[%s12 + $0x88] sm:$0xf]
    %v4691 = vld [vmem:[%s12 + $0x8c] sm:$0xff]
    %v4692 = vld [vmem:[%s12 + $0x94] sm:$0xff]
    %v4693 = vld [vmem:[%s12 + $0x9c] sm:$0xff]
    %v4694 = vld [vmem:[%s12 + $0xa4] sm:$0xf]
    %v4695 = vld [vmem:[%s12 + $0xa8] sm:$0xff]
    %v4696 = vld [vmem:[%s12 + $0xb0] sm:$0xff]
    %v4697 = vld [vmem:[%s12 + $0xb8] sm:$0xff]
    %v4698 = vld [vmem:[%s12 + $0xc0] sm:$0xf]
    %v4699 = vld [vmem:[%s12 + $0xc4] sm:$0xff]
    %v4700 = vld [vmem:[%s12 + $0xcc] sm:$0xff]
    %v4701 = vld [vmem:[%s12 + $0xd4] sm:$0xff]
    %v4702 = vld [vmem:[%s12 + $0xdc] sm:$0xf]
    %v4703 = vld [vmem:[%s12 + $0xe0] sm:$0xff]
    %v4704 = vld [vmem:[%s12 + $0xe8] sm:$0xff]
    %v4705 = vld [vmem:[%s12 + $0xf0] sm:$0xff]
    %v4706 = vld [vmem:[%s12 + $0xf8] sm:$0xf]
    %v4707 = vld [vmem:[%s12 + $0xfc] sm:$0xff]
    %v4708 = vld [vmem:[%s12 + $0x104] sm:$0xff]
    %v4709 = vld [vmem:[%s12 + $0x10c] sm:$0xff]
    %v4710 = vld [vmem:[%s12 + $0x114] sm:$0xf]
    %v4711 = vld [vmem:[%s12 + $0x118] sm:$0xff]
    %v4712 = vld [vmem:[%s12 + $0x120] sm:$0xff]
    %v4713 = vld [vmem:[%s12 + $0x128] sm:$0xff]
    %v4714 = vld [vmem:[%s12 + $0x130] sm:$0xf]
    %v4715 = vld [vmem:[%s12 + $0x134] sm:$0xff]
    %v4716 = vld [vmem:[%s12 + $0x13c] sm:$0xff]
    %v4717 = vld [vmem:[%s12 + $0x144] sm:$0xff]
    %v4718 = vld [vmem:[%s12 + $0x14c] sm:$0xf]
    %v4719 = vld [vmem:[%s12 + $0x150] sm:$0xff]
    %v4720 = vld [vmem:[%s12 + $0x158] sm:$0xff]
    %v4721 = vld [vmem:[%s12 + $0x160] sm:$0xff]
    %v4722 = vld [vmem:[%s12 + $0x168] sm:$0xf]
    %v4723 = vld [vmem:[%s12 + $0x16c] sm:$0xff]
    %v4724 = vld [vmem:[%s12 + $0x174] sm:$0xff]
    %v4725 = vld [vmem:[%s12 + $0x17c] sm:$0xff]
    %v4726 = vld [vmem:[%s12 + $0x184] sm:$0xf]
    %v4727 = vld [vmem:[%s12 + $0x188] sm:$0xff]
    %v4728 = vld [vmem:[%s12 + $0x190] sm:$0xff]
    %v4729 = vld [vmem:[%s12 + $0x198] sm:$0xff]
    %v4730 = vld [vmem:[%s12 + $0x1a0] sm:$0xf]
    %v4731 = vld [vmem:[%s12 + $0x1a4] sm:$0xff]
    %v4732 = vld [vmem:[%s12 + $0x1ac] sm:$0xff]
    %v4733 = vld [vmem:[%s12 + $0x1b4] sm:$0xff]
    %v4734 = vld [vmem:[%s12 + $0x1bc] sm:$0xf]
    %v4735 = vld [vmem:[%s12 + $0x1c0] sm:$0xff]
    %v4736 = vld [vmem:[%s12 + $0x1c8] sm:$0xff]
    %v4737 = vld [vmem:[%s12 + $0x1d0] sm:$0xff]
    %v4738 = vld [vmem:[%s12 + $0x1d8] sm:$0xf]
    %v4739 = vld [vmem:[%s12 + $0x1dc] sm:$0xff]
    %v4740 = vld [vmem:[%s12 + $0x1e4] sm:$0xff]
    %v4741 = vld [vmem:[%s12 + $0x1ec] sm:$0xff]
    %v4742 = vld [vmem:[%s12 + $0x1f4] sm:$0xf]
    %v4743 = vld [vmem:[%s12 + $0x1f8] sm:$0xff]
    %v4744 = vld [vmem:[%s12 + $0x200] sm:$0xff]
    %v4745 = vld [vmem:[%s12 + $0x208] sm:$0xff]
    %v4746 = vld [vmem:[%s12 + $0x210] sm:$0xf]
    %v4747 = vld [vmem:[%s12 + $0x214] sm:$0xff]
    %v4748 = vld [vmem:[%s12 + $0x21c] sm:$0xff]
    %v4749 = vld [vmem:[%s12 + $0x224] sm:$0xff]
    %v4750 = vld [vmem:[%s12 + $0x22c] sm:$0xf]
    %v4751 = vld [vmem:[%s12 + $0x230] sm:$0xff]
    %v4752 = vld [vmem:[%s12 + $0x238] sm:$0xff]
    %v4753 = vld [vmem:[%s12 + $0x240] sm:$0xff]
    %v4754 = vld [vmem:[%s12 + $0x248] sm:$0xf]
    %v4755 = vld [vmem:[%s12 + $0x24c] sm:$0xff]
    %v4756 = vld [vmem:[%s12 + $0x254] sm:$0xff]
    %v4757 = vld [vmem:[%s12 + $0x25c] sm:$0xff]
    %v4758 = vld [vmem:[%s12 + $0x264] sm:$0xf]
    %v4759 = vld [vmem:[%s12 + $0x268] sm:$0xff]
    %v4760 = vld [vmem:[%s12 + $0x270] sm:$0xff]
    %v4761 = vld [vmem:[%s12 + $0x278] sm:$0xff]
    %v4762 = vld [vmem:[%s12 + $0x280] sm:$0xf]
    %v4763 = vld [vmem:[%s12 + $0x284] sm:$0xff]
    %v4764 = vld [vmem:[%s12 + $0x28c] sm:$0xff]
    %v4765 = vld [vmem:[%s12 + $0x294] sm:$0xff]
    %v4766 = vld [vmem:[%s12 + $0x29c] sm:$0xf]
    %v4767 = vld [vmem:[%s12 + $0x2a0] sm:$0xff]
    %v4768 = vld [vmem:[%s12 + $0x2a8] sm:$0xff]
    %v4769 = vld [vmem:[%s12 + $0x2b0] sm:$0xff]
    %v4770 = vld [vmem:[%s12 + $0x2b8] sm:$0xf]
    %v4771 = vld [vmem:[%s12 + $0x2bc] sm:$0xff]
    %v4772 = vld [vmem:[%s12 + $0x2c4] sm:$0xff]
    %v4773 = vld [vmem:[%s12 + $0x2cc] sm:$0xff]
    %v4774 = vld [vmem:[%s12 + $0x2d4] sm:$0xf]
    %v4775 = vld [vmem:[%s12 + $0x2d8] sm:$0xff]
    %v4776 = vld [vmem:[%s12 + $0x2e0] sm:$0xff]
    %v4777 = vld [vmem:[%s12 + $0x2e8] sm:$0xff]
    %v4778 = vld [vmem:[%s12 + $0x2f0] sm:$0xf]
    %v4779 = vld [vmem:[%s12 + $0x2f4] sm:$0xff]
    %v4780 = vld [vmem:[%s12 + $0x2fc] sm:$0xff]
    %v4781 = vld [vmem:[%s12 + $0x304] sm:$0xff]
    %v4782 = vld [vmem:[%s12 + $0x30c] sm:$0xf]
    %v4783 = vld [vmem:[%s12 + $0x310] sm:$0xff]
    %v4784 = vld [vmem:[%s12 + $0x318] sm:$0xff]
    %v4785 = vld [vmem:[%s12 + $0x320] sm:$0xff]
    %v4786 = vld [vmem:[%s12 + $0x328] sm:$0xf]
    %v4787 = vld [vmem:[%s12 + $0x32c] sm:$0xff]
    %v4788 = vld [vmem:[%s12 + $0x334] sm:$0xff]
    %v4789 = vld [vmem:[%s12 + $0x33c] sm:$0xff]
    %v4790 = vld [vmem:[%s12 + $0x344] sm:$0xf]
    %v4791 = vld [vmem:[%s12 + $0x348] sm:$0xff]
    %v4792 = vld [vmem:[%s12 + $0x350] sm:$0xff]
    %v4793 = vld [vmem:[%s12 + $0x358] sm:$0xff]
    %v4794 = vld [vmem:[%s12 + $0x360] sm:$0xf]
    %v4795 = vld [vmem:[%s12 + $0x364] sm:$0xff]
    %v4796 = vld [vmem:[%s12 + $0x36c] sm:$0xff]
    %v4797 = vld [vmem:[%s12 + $0x374] sm:$0xff]
    %v4798 = vld [vmem:[%s12 + $0x37c] sm:$0xf]
    %v4799 = vld [vmem:[%s12 + $0x380] sm:$0xff]
    %v4800 = vld [vmem:[%s12 + $0x388] sm:$0xff]
    %v4801 = vld [vmem:[%s12 + $0x390] sm:$0xff]
    %v4802 = vld [vmem:[%s12 + $0x398] sm:$0xf]
    %v4803 = vld [vmem:[%s12 + $0x39c] sm:$0xff]
    %v4804 = vld [vmem:[%s12 + $0x3a4] sm:$0xff]
    %v4805 = vld [vmem:[%s12 + $0x3ac] sm:$0xff]
    %v4806 = vld [vmem:[%s12 + $0x3b4] sm:$0xf]
    %v4807 = vld [vmem:[%s12 + $0x3b8] sm:$0xff]
    %v4808 = vld [vmem:[%s12 + $0x3c0] sm:$0xff]
    %v4809 = vld [vmem:[%s12 + $0x3c8] sm:$0xff]
    %v4810 = vld [vmem:[%s12 + $0x3d0] sm:$0xf]
    %v4811 = vld [vmem:[%s12 + $0x3d4] sm:$0xff]
    %v4812 = vld [vmem:[%s12 + $0x3dc] sm:$0xff]
    %v4813 = vld [vmem:[%s12 + $0x3e4] sm:$0xff]
    %v4814 = vld [vmem:[%s12 + $0x3ec] sm:$0xf]
    %v4815 = vld [vmem:[%s12 + $0x3f0] sm:$0xff]
    %v4816 = vld [vmem:[%s12 + $0x3f8] sm:$0xff]
    %v4817 = vld [vmem:[%s12 + $0x400] sm:$0xff]
    %v4818 = vld [vmem:[%s12 + $0x408] sm:$0xf]
    %v4819 = vld [vmem:[%s12 + $0x40c] sm:$0xff]
    %v4820 = vld [vmem:[%s12 + $0x414] sm:$0xff]
    %v4821 = vld [vmem:[%s12 + $0x41c] sm:$0xff]
    %v4822 = vld [vmem:[%s12 + $0x424] sm:$0xf]
    %v4823 = vld [vmem:[%s12 + $0x428] sm:$0xff]
    %v4824 = vld [vmem:[%s12 + $0x430] sm:$0xff]
    %v4825 = vld [vmem:[%s12 + $0x438] sm:$0xff]
    %v4826 = vld [vmem:[%s12 + $0x440] sm:$0xf]
    %v4827 = vld [vmem:[%s12 + $0x444] sm:$0xff]
    %v4828 = vld [vmem:[%s12 + $0x44c] sm:$0xff]
    %v4829 = vld [vmem:[%s12 + $0x454] sm:$0xff]
    %v4830 = vld [vmem:[%s12 + $0x45c] sm:$0xf]
    %v4831 = vld [vmem:[%s12 + $0x460] sm:$0xff]
    %v4832 = vld [vmem:[%s12 + $0x468] sm:$0xff]
    %v4833 = vld [vmem:[%s12 + $0x470] sm:$0xff]
    %v4834 = vld [vmem:[%s12 + $0x478] sm:$0xf]
    %v4835 = vld [vmem:[%s12 + $0x47c] sm:$0xff]
    %v4836 = vld [vmem:[%s12 + $0x484] sm:$0xff]
    %v4837 = vld [vmem:[%s12 + $0x48c] sm:$0xff]
    %v4838 = vld [vmem:[%s12 + $0x494] sm:$0xf]
    %v4839 = vld [vmem:[%s12 + $0x498] sm:$0xff]
    %v4840 = vld [vmem:[%s12 + $0x4a0] sm:$0xff]
    %v4841 = vld [vmem:[%s12 + $0x4a8] sm:$0xff]
    %v4842 = vld [vmem:[%s12 + $0x4b0] sm:$0xf]
    %v4843 = vld [vmem:[%s12 + $0x4b4] sm:$0xff]
    %v4844 = vld [vmem:[%s12 + $0x4bc] sm:$0xff]
    %v4845 = vld [vmem:[%s12 + $0x4c4] sm:$0xff]
    %v4846 = vld [vmem:[%s12 + $0x4cc] sm:$0xf]
    %v4847 = vld [vmem:[%s12 + $0x4d0] sm:$0xff]
    %v4848 = vld [vmem:[%s12 + $0x4d8] sm:$0xff]
    %v4849 = vld [vmem:[%s12 + $0x4e0] sm:$0xff]
    %v4850 = vld [vmem:[%s12 + $0x4e8] sm:$0xf]
    %v4851 = vld [vmem:[%s12 + $0x4ec] sm:$0xff]
    %v4852 = vld [vmem:[%s12 + $0x4f4] sm:$0xff]
    %v4853 = vld [vmem:[%s12 + $0x4fc] sm:$0xff]
    %v4854 = vld [vmem:[%s12 + $0x504] sm:$0xf]
    %v4855 = vld [vmem:[%s12 + $0x508] sm:$0xff]
    %v4856 = vld [vmem:[%s12 + $0x510] sm:$0xff]
    %v4857 = vld [vmem:[%s12 + $0x518] sm:$0xff]
    %v4858 = vld [vmem:[%s12 + $0x520] sm:$0xf]
    %v4859 = vld [vmem:[%s12 + $0x524] sm:$0xff]
    %v4860 = vld [vmem:[%s12 + $0x52c] sm:$0xff]
    %v4861 = vld [vmem:[%s12 + $0x534] sm:$0xff]
    %v4862 = vld [vmem:[%s12 + $0x53c] sm:$0xf]
    %v4863 = vld [vmem:[%s12 + $0x540] sm:$0xff]
    %v4864 = vld [vmem:[%s12 + $0x548] sm:$0xff]
    %v4865 = vld [vmem:[%s12 + $0x550] sm:$0xff]
    %v4866 = vld [vmem:[%s12 + $0x558] sm:$0xf]
    %v4867 = vld [vmem:[%s12 + $0x55c] sm:$0xff]
    %v4868 = vld [vmem:[%s12 + $0x564] sm:$0xff]
    %v4869 = vld [vmem:[%s12 + $0x56c] sm:$0xff]
    %v4870 = vld [vmem:[%s12 + $0x574] sm:$0xf]
    %v4871 = vld [vmem:[%s12 + $0x578] sm:$0xff]
    %v4872 = vld [vmem:[%s12 + $0x580] sm:$0xff]
    %v4873 = vld [vmem:[%s12 + $0x588] sm:$0xff]
    %v4874 = vld [vmem:[%s12 + $0x590] sm:$0xf]
    %v4875 = vld [vmem:[%s12 + $0x594] sm:$0xff]
    %v4876 = vld [vmem:[%s12 + $0x59c] sm:$0xff]
    %v4877 = vld [vmem:[%s12 + $0x5a4] sm:$0xff]
    %v4878 = vld [vmem:[%s12 + $0x5ac] sm:$0xf]
    %v4879 = vld [vmem:[%s12 + $0x5b0] sm:$0xff]
    %v4880 = vld [vmem:[%s12 + $0x5b8] sm:$0xff]
    %v4881 = vld [vmem:[%s12 + $0x5c0] sm:$0xff]
    %v4882 = vld [vmem:[%s12 + $0x5c8] sm:$0xf]
    %v4883 = vld [vmem:[%s12 + $0x5cc] sm:$0xff]
    %v4884 = vld [vmem:[%s12 + $0x5d4] sm:$0xff]
    %v4885 = vld [vmem:[%s12 + $0x5dc] sm:$0xff]
    %v4886 = vld [vmem:[%s12 + $0x5e4] sm:$0xf]
    %v4887 = vld [vmem:[%s12 + $0x5e8] sm:$0xff]
    %v4888 = vld [vmem:[%s12 + $0x5f0] sm:$0xff]
    %v4889 = vld [vmem:[%s12 + $0x5f8] sm:$0xff]
    %v4890 = vld [vmem:[%s12 + $0x600] sm:$0xf]
    %v4891 = vld [vmem:[%s12 + $0x604] sm:$0xff]
    %v4892 = vld [vmem:[%s12 + $0x60c] sm:$0xff]
    %v4893 = vld [vmem:[%s12 + $0x614] sm:$0xff]
    %v4894 = vld [vmem:[%s12 + $0x61c] sm:$0xf]
    %v4895 = vld [vmem:[%s12 + $0x620] sm:$0xff]
    %v4896 = vld [vmem:[%s12 + $0x628] sm:$0xff]
    %v4897 = vld [vmem:[%s12 + $0x630] sm:$0xff]
    %v4898 = vld [vmem:[%s12 + $0x638] sm:$0xf]
    %v4899 = vld [vmem:[%s12 + $0x63c] sm:$0xff]
    %v4900 = vld [vmem:[%s12 + $0x644] sm:$0xff]
    %v4901 = vld [vmem:[%s12 + $0x64c] sm:$0xff]
    %v4902 = vld [vmem:[%s12 + $0x654] sm:$0xf]
    %v4903 = vld [vmem:[%s12 + $0x658] sm:$0xff]
    %v4904 = vld [vmem:[%s12 + $0x660] sm:$0xff]
    %v4905 = vld [vmem:[%s12 + $0x668] sm:$0xff]
    %v4906 = vld [vmem:[%s12 + $0x670] sm:$0xf]
    %v4907 = vld [vmem:[%s12 + $0x674] sm:$0xff]
    %v4908 = vld [vmem:[%s12 + $0x67c] sm:$0xff]
    %v4909 = vld [vmem:[%s12 + $0x684] sm:$0xff]
    %v4910 = vld [vmem:[%s12 + $0x68c] sm:$0xf]
    %v4911 = vld [vmem:[%s12 + $0x690] sm:$0xff]
    %v4912 = vld [vmem:[%s12 + $0x698] sm:$0xff]
    %v4913 = vld [vmem:[%s12 + $0x6a0] sm:$0xff]
    %v4914 = vld [vmem:[%s12 + $0x6a8] sm:$0xf]
    %v4915 = vld [vmem:[%s12 + $0x6ac] sm:$0xff]
    %v4916 = vld [vmem:[%s12 + $0x6b4] sm:$0xff]
    %v4917 = vld [vmem:[%s12 + $0x6bc] sm:$0xff]
    %v4918 = vld [vmem:[%s12 + $0x6c4] sm:$0xf]
    %v4919 = vld [vmem:[%s12 + $0x6c8] sm:$0xff]
    %v4920 = vld [vmem:[%s12 + $0x6d0] sm:$0xff]
    %v4921 = vld [vmem:[%s12 + $0x6d8] sm:$0xff]
    %v4922 = vld [vmem:[%s12 + $0x6e0] sm:$0xf]
    %v4923 = vld [vmem:[%s12 + $0x6e4] sm:$0xff]
    %v4924 = vld [vmem:[%s12 + $0x6ec] sm:$0xff]
    %v4925 = vld [vmem:[%s12 + $0x6f4] sm:$0xff]
    %v4926 = vld [vmem:[%s12 + $0x6fc] sm:$0xf]
    %v4927 = vld [vmem:[%s12 + $0x700] sm:$0xff]
    %v4928 = vld [vmem:[%s12 + $0x708] sm:$0xff]
    %v4929 = vld [vmem:[%s12 + $0x710] sm:$0xff]
    %v4930 = vld [vmem:[%s12 + $0x718] sm:$0xf]
    %v4931 = vld [vmem:[%s12 + $0x71c] sm:$0xff]
    %v4932 = vld [vmem:[%s12 + $0x724] sm:$0xff]
    %v4933 = vld [vmem:[%s12 + $0x72c] sm:$0xff]
    %v4934 = vld [vmem:[%s12 + $0x734] sm:$0xf]
    %v4935 = vld [vmem:[%s12 + $0x738] sm:$0xff]
    %v4936 = vld [vmem:[%s12 + $0x740] sm:$0xff]
    %v4937 = vld [vmem:[%s12 + $0x748] sm:$0xff]
    %v4938 = vld [vmem:[%s12 + $0x750] sm:$0xf]
    %v4939 = vld [vmem:[%s12 + $0x754] sm:$0xff]
    %v4940 = vld [vmem:[%s12 + $0x75c] sm:$0xff]
    %v4941 = vld [vmem:[%s12 + $0x764] sm:$0xff]
    %v4942 = vld [vmem:[%s12 + $0x76c] sm:$0xf]
    %v4943 = vld [vmem:[%s12 + $0x770] sm:$0xff]
    %v4944 = vld [vmem:[%s12 + $0x778] sm:$0xff]
    %v4945 = vld [vmem:[%s12 + $0x780] sm:$0xff]
    %v4946 = vld [vmem:[%s12 + $0x788] sm:$0xf]
    %v4947 = vld [vmem:[%s12 + $0x78c] sm:$0xff]
    %v4948 = vld [vmem:[%s12 + $0x794] sm:$0xff]
    %v4949 = vld [vmem:[%s12 + $0x79c] sm:$0xff]
    %v4950 = vld [vmem:[%s12 + $0x7a4] sm:$0xf]
    %v4951 = vld [vmem:[%s12 + $0x7a8] sm:$0xff]
    %v4952 = vld [vmem:[%s12 + $0x7b0] sm:$0xff]
    %v4953 = vld [vmem:[%s12 + $0x7b8] sm:$0xff]
    %v4954 = vld [vmem:[%s12 + $0x7c0] sm:$0xf]
    %v4955 = vld [vmem:[%s12 + $0x7c4] sm:$0xff]
    %v4956 = vld [vmem:[%s12 + $0x7cc] sm:$0xff]
    %v4957 = vld [vmem:[%s12 + $0x7d4] sm:$0xff]
    %v4958 = vld [vmem:[%s12 + $0x7dc] sm:$0xf]
    %v4959 = vld [vmem:[%s12 + $0x7e0] sm:$0xff]
    %v4960 = vld [vmem:[%s12 + $0x7e8] sm:$0xff]
    %v4961 = vld [vmem:[%s12 + $0x7f0] sm:$0xff]
    %v4962 = vld [vmem:[%s12 + $0x7f8] sm:$0xf]
    %v4963 = vld [vmem:[%s12 + $0x7fc] sm:$0xff]
    %v4964 = vld [vmem:[%s12 + $0x804] sm:$0xff]
    %v4965 = vld [vmem:[%s12 + $0x80c] sm:$0xff]
    %v4966 = vld [vmem:[%s12 + $0x814] sm:$0xf]
    %v4967 = vld [vmem:[%s12 + $0x818] sm:$0xff]
    %v4968 = vld [vmem:[%s12 + $0x820] sm:$0xff]
    %v4969 = vld [vmem:[%s12 + $0x828] sm:$0xff]
    %v4970 = vld [vmem:[%s12 + $0x830] sm:$0xf]
    %v4971 = vld [vmem:[%s12 + $0x834] sm:$0xff]
    %v4972 = vld [vmem:[%s12 + $0x83c] sm:$0xff]
    %v4973 = vld [vmem:[%s12 + $0x844] sm:$0xff]
    %v4974 = vld [vmem:[%s12 + $0x84c] sm:$0xf]
    %v4975 = vld [vmem:[%s12 + $0x850] sm:$0xff]
    %v4976 = vld [vmem:[%s12 + $0x858] sm:$0xff]
    %v4977 = vld [vmem:[%s12 + $0x860] sm:$0xff]
    %v4978 = vld [vmem:[%s12 + $0x868] sm:$0xf]
    %v4979 = vld [vmem:[%s12 + $0x86c] sm:$0xff]
    %v4980 = vld [vmem:[%s12 + $0x874] sm:$0xff]
    %v4981 = vld [vmem:[%s12 + $0x87c] sm:$0xff]
    %v4982 = vld [vmem:[%s12 + $0x884] sm:$0xf]
    %v4983 = vld [vmem:[%s12 + $0x888] sm:$0xff]
    %v4984 = vld [vmem:[%s12 + $0x890] sm:$0xff]
    %v4985 = vld [vmem:[%s12 + $0x898] sm:$0xff]
    %v4986 = vld [vmem:[%s12 + $0x8a0] sm:$0xf]
    %v4987 = vld [vmem:[%s12 + $0x8a4] sm:$0xff]
    %v4988 = vld [vmem:[%s12 + $0x8ac] sm:$0xff]
    %v4989 = vld [vmem:[%s12 + $0x8b4] sm:$0xff]
    %v4990 = vld [vmem:[%s12 + $0x8bc] sm:$0xf]
    %v4991 = vld [vmem:[%s13] sm:$0x7f]
    %v4993 = vlaneseq
    %v4994 = vshrl.u32 %v4993, 7
    %v4995 = vsub.s32 0, %v4994
    %v4996 = vrot.slane %v4991, %v4995
    %v4997 = vlaneseq
    %v4998 = vshrl.u32 %v4997, 7
    %v4999 = vsub.s32 1, %v4998
    %v5000 = vrot.slane %v4991, %v4999
    %v5001 = vlaneseq
    %v5002 = vshrl.u32 %v5001, 7
    %v5003 = vsub.s32 2, %v5002
    %v5004 = vrot.slane %v4991, %v5003
    %v5005 = vlaneseq
    %v5006 = vshrl.u32 %v5005, 7
    %v5007 = vsub.s32 3, %v5006
    %v5008 = vrot.slane %v4991, %v5007
    %v5009 = vlaneseq
    %v5010 = vshrl.u32 %v5009, 7
    %v5011 = vsub.s32 4, %v5010
    %v5012 = vrot.slane %v4991, %v5011
    %v5013 = vlaneseq
    %v5014 = vshrl.u32 %v5013, 7
    %v5015 = vsub.s32 5, %v5014
    %v5016 = vrot.slane %v4991, %v5015
    %v5017 = vlaneseq
    %v5018 = vshrl.u32 %v5017, 7
    %v5019 = vsub.s32 6, %v5018
    %v5020 = vrot.slane %v4991, %v5019
    %v5348 = vunpack.c.l.b16 %v4671
    %v5349 = vunpack.c.h.b16 %v4671
    %v5350 = vunpack.c.l.b16 %v4672
    %v5351 = vunpack.c.h.b16 %v4672
    %v5352 = vunpack.c.l.b16 %v4673
    %v5353 = vunpack.c.h.b16 %v4673
    %v5354 = vunpack.c.l.b16 %v4674
    %v5355 = vunpack.c.l.b16 %v4675
    %v5356 = vunpack.c.h.b16 %v4675
    %v5357 = vunpack.c.l.b16 %v4676
    %v5358 = vunpack.c.h.b16 %v4676
    %v5359 = vunpack.c.l.b16 %v4677
    %v5360 = vunpack.c.h.b16 %v4677
    %v5361 = vunpack.c.l.b16 %v4678
    %v5362 = vunpack.c.l.b16 %v4679
    %v5363 = vunpack.c.h.b16 %v4679
    %v5364 = vunpack.c.l.b16 %v4680
    %v5365 = vunpack.c.h.b16 %v4680
    %v5366 = vunpack.c.l.b16 %v4681
    %v5367 = vunpack.c.h.b16 %v4681
    %v5368 = vunpack.c.l.b16 %v4682
    %v5369 = vunpack.c.l.b16 %v4683
    %v5370 = vunpack.c.h.b16 %v4683
    %v5371 = vunpack.c.l.b16 %v4684
    %v5372 = vunpack.c.h.b16 %v4684
    %v5373 = vunpack.c.l.b16 %v4685
    %v5374 = vunpack.c.h.b16 %v4685
    %v5375 = vunpack.c.l.b16 %v4686
    %v5376 = vunpack.c.l.b16 %v4687
    %v5377 = vunpack.c.h.b16 %v4687
    %v5378 = vunpack.c.l.b16 %v4688
    %v5379 = vunpack.c.h.b16 %v4688
    %v5380 = vunpack.c.l.b16 %v4689
    %v5381 = vunpack.c.h.b16 %v4689
    %v5382 = vunpack.c.l.b16 %v4690
    %v5383 = vunpack.c.l.b16 %v4691
    %v5384 = vunpack.c.h.b16 %v4691
    %v5385 = vunpack.c.l.b16 %v4692
    %v5386 = vunpack.c.h.b16 %v4692
    %v5387 = vunpack.c.l.b16 %v4693
    %v5388 = vunpack.c.h.b16 %v4693
    %v5389 = vunpack.c.l.b16 %v4694
    %v5390 = vunpack.c.l.b16 %v4695
    %v5391 = vunpack.c.h.b16 %v4695
    %v5392 = vunpack.c.l.b16 %v4696
    %v5393 = vunpack.c.h.b16 %v4696
    %v5394 = vunpack.c.l.b16 %v4697
    %v5395 = vunpack.c.h.b16 %v4697
    %v5396 = vunpack.c.l.b16 %v4698
    %v5397 = vunpack.c.l.b16 %v4699
    %v5398 = vunpack.c.h.b16 %v4699
    %v5399 = vunpack.c.l.b16 %v4700
    %v5400 = vunpack.c.h.b16 %v4700
    %v5401 = vunpack.c.l.b16 %v4701
    %v5402 = vunpack.c.h.b16 %v4701
    %v5403 = vunpack.c.l.b16 %v4702
    %v5404 = vunpack.c.l.b16 %v4703
    %v5405 = vunpack.c.h.b16 %v4703
    %v5406 = vunpack.c.l.b16 %v4704
    %v5407 = vunpack.c.h.b16 %v4704
    %v5408 = vunpack.c.l.b16 %v4705
    %v5409 = vunpack.c.h.b16 %v4705
    %v5410 = vunpack.c.l.b16 %v4706
    %v5411 = vunpack.c.l.b16 %v4707
    %v5412 = vunpack.c.h.b16 %v4707
    %v5413 = vunpack.c.l.b16 %v4708
    %v5414 = vunpack.c.h.b16 %v4708
    %v5415 = vunpack.c.l.b16 %v4709
    %v5416 = vunpack.c.h.b16 %v4709
    %v5417 = vunpack.c.l.b16 %v4710
    %v5418 = vunpack.c.l.b16 %v4711
    %v5419 = vunpack.c.h.b16 %v4711
    %v5420 = vunpack.c.l.b16 %v4712
    %v5421 = vunpack.c.h.b16 %v4712
    %v5422 = vunpack.c.l.b16 %v4713
    %v5423 = vunpack.c.h.b16 %v4713
    %v5424 = vunpack.c.l.b16 %v4714
    %v5425 = vunpack.c.l.b16 %v4715
    %v5426 = vunpack.c.h.b16 %v4715
    %v5427 = vunpack.c.l.b16 %v4716
    %v5428 = vunpack.c.h.b16 %v4716
    %v5429 = vunpack.c.l.b16 %v4717
    %v5430 = vunpack.c.h.b16 %v4717
    %v5431 = vunpack.c.l.b16 %v4718
    %v5432 = vunpack.c.l.b16 %v4719
    %v5433 = vunpack.c.h.b16 %v4719
    %v5434 = vunpack.c.l.b16 %v4720
    %v5435 = vunpack.c.h.b16 %v4720
    %v5436 = vunpack.c.l.b16 %v4721
    %v5437 = vunpack.c.h.b16 %v4721
    %v5438 = vunpack.c.l.b16 %v4722
    %v5439 = vunpack.c.l.b16 %v4723
    %v5440 = vunpack.c.h.b16 %v4723
    %v5441 = vunpack.c.l.b16 %v4724
    %v5442 = vunpack.c.h.b16 %v4724
    %v5443 = vunpack.c.l.b16 %v4725
    %v5444 = vunpack.c.h.b16 %v4725
    %v5445 = vunpack.c.l.b16 %v4726
    %v5446 = vunpack.c.l.b16 %v4727
    %v5447 = vunpack.c.h.b16 %v4727
    %v5448 = vunpack.c.l.b16 %v4728
    %v5449 = vunpack.c.h.b16 %v4728
    %v5450 = vunpack.c.l.b16 %v4729
    %v5451 = vunpack.c.h.b16 %v4729
    %v5452 = vunpack.c.l.b16 %v4730
    %v5453 = vunpack.c.l.b16 %v4731
    %v5454 = vunpack.c.h.b16 %v4731
    %v5455 = vunpack.c.l.b16 %v4732
    %v5456 = vunpack.c.h.b16 %v4732
    %v5457 = vunpack.c.l.b16 %v4733
    %v5458 = vunpack.c.h.b16 %v4733
    %v5459 = vunpack.c.l.b16 %v4734
    %v5460 = vunpack.c.l.b16 %v4735
    %v5461 = vunpack.c.h.b16 %v4735
    %v5462 = vunpack.c.l.b16 %v4736
    %v5463 = vunpack.c.h.b16 %v4736
    %v5464 = vunpack.c.l.b16 %v4737
    %v5465 = vunpack.c.h.b16 %v4737
    %v5466 = vunpack.c.l.b16 %v4738
    %v5467 = vunpack.c.l.b16 %v4739
    %v5468 = vunpack.c.h.b16 %v4739
    %v5469 = vunpack.c.l.b16 %v4740
    %v5470 = vunpack.c.h.b16 %v4740
    %v5471 = vunpack.c.l.b16 %v4741
    %v5472 = vunpack.c.h.b16 %v4741
    %v5473 = vunpack.c.l.b16 %v4742
    %v5474 = vunpack.c.l.b16 %v4743
    %v5475 = vunpack.c.h.b16 %v4743
    %v5476 = vunpack.c.l.b16 %v4744
    %v5477 = vunpack.c.h.b16 %v4744
    %v5478 = vunpack.c.l.b16 %v4745
    %v5479 = vunpack.c.h.b16 %v4745
    %v5480 = vunpack.c.l.b16 %v4746
    %v5481 = vunpack.c.l.b16 %v4747
    %v5482 = vunpack.c.h.b16 %v4747
    %v5483 = vunpack.c.l.b16 %v4748
    %v5484 = vunpack.c.h.b16 %v4748
    %v5485 = vunpack.c.l.b16 %v4749
    %v5486 = vunpack.c.h.b16 %v4749
    %v5487 = vunpack.c.l.b16 %v4750
    %v5488 = vunpack.c.l.b16 %v4751
    %v5489 = vunpack.c.h.b16 %v4751
    %v5490 = vunpack.c.l.b16 %v4752
    %v5491 = vunpack.c.h.b16 %v4752
    %v5492 = vunpack.c.l.b16 %v4753
    %v5493 = vunpack.c.h.b16 %v4753
    %v5494 = vunpack.c.l.b16 %v4754
    %v5495 = vunpack.c.l.b16 %v4755
    %v5496 = vunpack.c.h.b16 %v4755
    %v5497 = vunpack.c.l.b16 %v4756
    %v5498 = vunpack.c.h.b16 %v4756
    %v5499 = vunpack.c.l.b16 %v4757
    %v5500 = vunpack.c.h.b16 %v4757
    %v5501 = vunpack.c.l.b16 %v4758
    %v5502 = vunpack.c.l.b16 %v4759
    %v5503 = vunpack.c.h.b16 %v4759
    %v5504 = vunpack.c.l.b16 %v4760
    %v5505 = vunpack.c.h.b16 %v4760
    %v5506 = vunpack.c.l.b16 %v4761
    %v5507 = vunpack.c.h.b16 %v4761
    %v5508 = vunpack.c.l.b16 %v4762
    %v5509 = vunpack.c.l.b16 %v4763
    %v5510 = vunpack.c.h.b16 %v4763
    %v5511 = vunpack.c.l.b16 %v4764
    %v5512 = vunpack.c.h.b16 %v4764
    %v5513 = vunpack.c.l.b16 %v4765
    %v5514 = vunpack.c.h.b16 %v4765
    %v5515 = vunpack.c.l.b16 %v4766
    %v5516 = vunpack.c.l.b16 %v4767
    %v5517 = vunpack.c.h.b16 %v4767
    %v5518 = vunpack.c.l.b16 %v4768
    %v5519 = vunpack.c.h.b16 %v4768
    %v5520 = vunpack.c.l.b16 %v4769
    %v5521 = vunpack.c.h.b16 %v4769
    %v5522 = vunpack.c.l.b16 %v4770
    %v5523 = vunpack.c.l.b16 %v4771
    %v5524 = vunpack.c.h.b16 %v4771
    %v5525 = vunpack.c.l.b16 %v4772
    %v5526 = vunpack.c.h.b16 %v4772
    %v5527 = vunpack.c.l.b16 %v4773
    %v5528 = vunpack.c.h.b16 %v4773
    %v5529 = vunpack.c.l.b16 %v4774
    %v5530 = vunpack.c.l.b16 %v4775
    %v5531 = vunpack.c.h.b16 %v4775
    %v5532 = vunpack.c.l.b16 %v4776
    %v5533 = vunpack.c.h.b16 %v4776
    %v5534 = vunpack.c.l.b16 %v4777
    %v5535 = vunpack.c.h.b16 %v4777
    %v5536 = vunpack.c.l.b16 %v4778
    %v5537 = vunpack.c.l.b16 %v4779
    %v5538 = vunpack.c.h.b16 %v4779
    %v5539 = vunpack.c.l.b16 %v4780
    %v5540 = vunpack.c.h.b16 %v4780
    %v5541 = vunpack.c.l.b16 %v4781
    %v5542 = vunpack.c.h.b16 %v4781
    %v5543 = vunpack.c.l.b16 %v4782
    %v5544 = vunpack.c.l.b16 %v4783
    %v5545 = vunpack.c.h.b16 %v4783
    %v5546 = vunpack.c.l.b16 %v4784
    %v5547 = vunpack.c.h.b16 %v4784
    %v5548 = vunpack.c.l.b16 %v4785
    %v5549 = vunpack.c.h.b16 %v4785
    %v5550 = vunpack.c.l.b16 %v4786
    %v5551 = vunpack.c.l.b16 %v4787
    %v5552 = vunpack.c.h.b16 %v4787
    %v5553 = vunpack.c.l.b16 %v4788
    %v5554 = vunpack.c.h.b16 %v4788
    %v5555 = vunpack.c.l.b16 %v4789
    %v5556 = vunpack.c.h.b16 %v4789
    %v5557 = vunpack.c.l.b16 %v4790
    %v5558 = vunpack.c.l.b16 %v4791
    %v5559 = vunpack.c.h.b16 %v4791
    %v5560 = vunpack.c.l.b16 %v4792
    %v5561 = vunpack.c.h.b16 %v4792
    %v5562 = vunpack.c.l.b16 %v4793
    %v5563 = vunpack.c.h.b16 %v4793
    %v5564 = vunpack.c.l.b16 %v4794
    %v5565 = vunpack.c.l.b16 %v4795
    %v5566 = vunpack.c.h.b16 %v4795
    %v5567 = vunpack.c.l.b16 %v4796
    %v5568 = vunpack.c.h.b16 %v4796
    %v5569 = vunpack.c.l.b16 %v4797
    %v5570 = vunpack.c.h.b16 %v4797
    %v5571 = vunpack.c.l.b16 %v4798
    %v5572 = vunpack.c.l.b16 %v4799
    %v5573 = vunpack.c.h.b16 %v4799
    %v5574 = vunpack.c.l.b16 %v4800
    %v5575 = vunpack.c.h.b16 %v4800
    %v5576 = vunpack.c.l.b16 %v4801
    %v5577 = vunpack.c.h.b16 %v4801
    %v5578 = vunpack.c.l.b16 %v4802
    %v5579 = vunpack.c.l.b16 %v4803
    %v5580 = vunpack.c.h.b16 %v4803
    %v5581 = vunpack.c.l.b16 %v4804
    %v5582 = vunpack.c.h.b16 %v4804
    %v5583 = vunpack.c.l.b16 %v4805
    %v5584 = vunpack.c.h.b16 %v4805
    %v5585 = vunpack.c.l.b16 %v4806
    %v5586 = vunpack.c.l.b16 %v4807
    %v5587 = vunpack.c.h.b16 %v4807
    %v5588 = vunpack.c.l.b16 %v4808
    %v5589 = vunpack.c.h.b16 %v4808
    %v5590 = vunpack.c.l.b16 %v4809
    %v5591 = vunpack.c.h.b16 %v4809
    %v5592 = vunpack.c.l.b16 %v4810
    %v5593 = vunpack.c.l.b16 %v4811
    %v5594 = vunpack.c.h.b16 %v4811
    %v5595 = vunpack.c.l.b16 %v4812
    %v5596 = vunpack.c.h.b16 %v4812
    %v5597 = vunpack.c.l.b16 %v4813
    %v5598 = vunpack.c.h.b16 %v4813
    %v5599 = vunpack.c.l.b16 %v4814
    %v5600 = vunpack.c.l.b16 %v4815
    %v5601 = vunpack.c.h.b16 %v4815
    %v5602 = vunpack.c.l.b16 %v4816
    %v5603 = vunpack.c.h.b16 %v4816
    %v5604 = vunpack.c.l.b16 %v4817
    %v5605 = vunpack.c.h.b16 %v4817
    %v5606 = vunpack.c.l.b16 %v4818
    %v5607 = vunpack.c.l.b16 %v4819
    %v5608 = vunpack.c.h.b16 %v4819
    %v5609 = vunpack.c.l.b16 %v4820
    %v5610 = vunpack.c.h.b16 %v4820
    %v5611 = vunpack.c.l.b16 %v4821
    %v5612 = vunpack.c.h.b16 %v4821
    %v5613 = vunpack.c.l.b16 %v4822
    %v5614 = vunpack.c.l.b16 %v4823
    %v5615 = vunpack.c.h.b16 %v4823
    %v5616 = vunpack.c.l.b16 %v4824
    %v5617 = vunpack.c.h.b16 %v4824
    %v5618 = vunpack.c.l.b16 %v4825
    %v5619 = vunpack.c.h.b16 %v4825
    %v5620 = vunpack.c.l.b16 %v4826
    %v5621 = vunpack.c.l.b16 %v4827
    %v5622 = vunpack.c.h.b16 %v4827
    %v5623 = vunpack.c.l.b16 %v4828
    %v5624 = vunpack.c.h.b16 %v4828
    %v5625 = vunpack.c.l.b16 %v4829
    %v5626 = vunpack.c.h.b16 %v4829
    %v5627 = vunpack.c.l.b16 %v4830
    %v5628 = vunpack.c.l.b16 %v4831
    %v5629 = vunpack.c.h.b16 %v4831
    %v5630 = vunpack.c.l.b16 %v4832
    %v5631 = vunpack.c.h.b16 %v4832
    %v5632 = vunpack.c.l.b16 %v4833
    %v5633 = vunpack.c.h.b16 %v4833
    %v5634 = vunpack.c.l.b16 %v4834
    %v5635 = vunpack.c.l.b16 %v4835
    %v5636 = vunpack.c.h.b16 %v4835
    %v5637 = vunpack.c.l.b16 %v4836
    %v5638 = vunpack.c.h.b16 %v4836
    %v5639 = vunpack.c.l.b16 %v4837
    %v5640 = vunpack.c.h.b16 %v4837
    %v5641 = vunpack.c.l.b16 %v4838
    %v5642 = vunpack.c.l.b16 %v4839
    %v5643 = vunpack.c.h.b16 %v4839
    %v5644 = vunpack.c.l.b16 %v4840
    %v5645 = vunpack.c.h.b16 %v4840
    %v5646 = vunpack.c.l.b16 %v4841
    %v5647 = vunpack.c.h.b16 %v4841
    %v5648 = vunpack.c.l.b16 %v4842
    %v5649 = vunpack.c.l.b16 %v4843
    %v5650 = vunpack.c.h.b16 %v4843
    %v5651 = vunpack.c.l.b16 %v4844
    %v5652 = vunpack.c.h.b16 %v4844
    %v5653 = vunpack.c.l.b16 %v4845
    %v5654 = vunpack.c.h.b16 %v4845
    %v5655 = vunpack.c.l.b16 %v4846
    %v5656 = vunpack.c.l.b16 %v4847
    %v5657 = vunpack.c.h.b16 %v4847
    %v5658 = vunpack.c.l.b16 %v4848
    %v5659 = vunpack.c.h.b16 %v4848
    %v5660 = vunpack.c.l.b16 %v4849
    %v5661 = vunpack.c.h.b16 %v4849
    %v5662 = vunpack.c.l.b16 %v4850
    %v5663 = vunpack.c.l.b16 %v4851
    %v5664 = vunpack.c.h.b16 %v4851
    %v5665 = vunpack.c.l.b16 %v4852
    %v5666 = vunpack.c.h.b16 %v4852
    %v5667 = vunpack.c.l.b16 %v4853
    %v5668 = vunpack.c.h.b16 %v4853
    %v5669 = vunpack.c.l.b16 %v4854
    %v5670 = vunpack.c.l.b16 %v4855
    %v5671 = vunpack.c.h.b16 %v4855
    %v5672 = vunpack.c.l.b16 %v4856
    %v5673 = vunpack.c.h.b16 %v4856
    %v5674 = vunpack.c.l.b16 %v4857
    %v5675 = vunpack.c.h.b16 %v4857
    %v5676 = vunpack.c.l.b16 %v4858
    %v5677 = vunpack.c.l.b16 %v4859
    %v5678 = vunpack.c.h.b16 %v4859
    %v5679 = vunpack.c.l.b16 %v4860
    %v5680 = vunpack.c.h.b16 %v4860
    %v5681 = vunpack.c.l.b16 %v4861
    %v5682 = vunpack.c.h.b16 %v4861
    %v5683 = vunpack.c.l.b16 %v4862
    %v5684 = vunpack.c.l.b16 %v4863
    %v5685 = vunpack.c.h.b16 %v4863
    %v5686 = vunpack.c.l.b16 %v4864
    %v5687 = vunpack.c.h.b16 %v4864
    %v5688 = vunpack.c.l.b16 %v4865
    %v5689 = vunpack.c.h.b16 %v4865
    %v5690 = vunpack.c.l.b16 %v4866
    %v5691 = vunpack.c.l.b16 %v4867
    %v5692 = vunpack.c.h.b16 %v4867
    %v5693 = vunpack.c.l.b16 %v4868
    %v5694 = vunpack.c.h.b16 %v4868
    %v5695 = vunpack.c.l.b16 %v4869
    %v5696 = vunpack.c.h.b16 %v4869
    %v5697 = vunpack.c.l.b16 %v4870
    %v5698 = vunpack.c.l.b16 %v4871
    %v5699 = vunpack.c.h.b16 %v4871
    %v5700 = vunpack.c.l.b16 %v4872
    %v5701 = vunpack.c.h.b16 %v4872
    %v5702 = vunpack.c.l.b16 %v4873
    %v5703 = vunpack.c.h.b16 %v4873
    %v5704 = vunpack.c.l.b16 %v4874
    %v5705 = vunpack.c.l.b16 %v4875
    %v5706 = vunpack.c.h.b16 %v4875
    %v5707 = vunpack.c.l.b16 %v4876
    %v5708 = vunpack.c.h.b16 %v4876
    %v5709 = vunpack.c.l.b16 %v4877
    %v5710 = vunpack.c.h.b16 %v4877
    %v5711 = vunpack.c.l.b16 %v4878
    %v5712 = vunpack.c.l.b16 %v4879
    %v5713 = vunpack.c.h.b16 %v4879
    %v5714 = vunpack.c.l.b16 %v4880
    %v5715 = vunpack.c.h.b16 %v4880
    %v5716 = vunpack.c.l.b16 %v4881
    %v5717 = vunpack.c.h.b16 %v4881
    %v5718 = vunpack.c.l.b16 %v4882
    %v5719 = vunpack.c.l.b16 %v4883
    %v5720 = vunpack.c.h.b16 %v4883
    %v5721 = vunpack.c.l.b16 %v4884
    %v5722 = vunpack.c.h.b16 %v4884
    %v5723 = vunpack.c.l.b16 %v4885
    %v5724 = vunpack.c.h.b16 %v4885
    %v5725 = vunpack.c.l.b16 %v4886
    %v5726 = vunpack.c.l.b16 %v4887
    %v5727 = vunpack.c.h.b16 %v4887
    %v5728 = vunpack.c.l.b16 %v4888
    %v5729 = vunpack.c.h.b16 %v4888
    %v5730 = vunpack.c.l.b16 %v4889
    %v5731 = vunpack.c.h.b16 %v4889
    %v5732 = vunpack.c.l.b16 %v4890
    %v5733 = vunpack.c.l.b16 %v4891
    %v5734 = vunpack.c.h.b16 %v4891
    %v5735 = vunpack.c.l.b16 %v4892
    %v5736 = vunpack.c.h.b16 %v4892
    %v5737 = vunpack.c.l.b16 %v4893
    %v5738 = vunpack.c.h.b16 %v4893
    %v5739 = vunpack.c.l.b16 %v4894
    %v5740 = vunpack.c.l.b16 %v4895
    %v5741 = vunpack.c.h.b16 %v4895
    %v5742 = vunpack.c.l.b16 %v4896
    %v5743 = vunpack.c.h.b16 %v4896
    %v5744 = vunpack.c.l.b16 %v4897
    %v5745 = vunpack.c.h.b16 %v4897
    %v5746 = vunpack.c.l.b16 %v4898
    %v5747 = vunpack.c.l.b16 %v4899
    %v5748 = vunpack.c.h.b16 %v4899
    %v5749 = vunpack.c.l.b16 %v4900
    %v5750 = vunpack.c.h.b16 %v4900
    %v5751 = vunpack.c.l.b16 %v4901
    %v5752 = vunpack.c.h.b16 %v4901
    %v5753 = vunpack.c.l.b16 %v4902
    %v5754 = vunpack.c.l.b16 %v4903
    %v5755 = vunpack.c.h.b16 %v4903
    %v5756 = vunpack.c.l.b16 %v4904
    %v5757 = vunpack.c.h.b16 %v4904
    %v5758 = vunpack.c.l.b16 %v4905
    %v5759 = vunpack.c.h.b16 %v4905
    %v5760 = vunpack.c.l.b16 %v4906
    %v5761 = vunpack.c.l.b16 %v4907
    %v5762 = vunpack.c.h.b16 %v4907
    %v5763 = vunpack.c.l.b16 %v4908
    %v5764 = vunpack.c.h.b16 %v4908
    %v5765 = vunpack.c.l.b16 %v4909
    %v5766 = vunpack.c.h.b16 %v4909
    %v5767 = vunpack.c.l.b16 %v4910
    %v5768 = vunpack.c.l.b16 %v4911
    %v5769 = vunpack.c.h.b16 %v4911
    %v5770 = vunpack.c.l.b16 %v4912
    %v5771 = vunpack.c.h.b16 %v4912
    %v5772 = vunpack.c.l.b16 %v4913
    %v5773 = vunpack.c.h.b16 %v4913
    %v5774 = vunpack.c.l.b16 %v4914
    %v5775 = vunpack.c.l.b16 %v4915
    %v5776 = vunpack.c.h.b16 %v4915
    %v5777 = vunpack.c.l.b16 %v4916
    %v5778 = vunpack.c.h.b16 %v4916
    %v5779 = vunpack.c.l.b16 %v4917
    %v5780 = vunpack.c.h.b16 %v4917
    %v5781 = vunpack.c.l.b16 %v4918
    %v5782 = vunpack.c.l.b16 %v4919
    %v5783 = vunpack.c.h.b16 %v4919
    %v5784 = vunpack.c.l.b16 %v4920
    %v5785 = vunpack.c.h.b16 %v4920
    %v5786 = vunpack.c.l.b16 %v4921
    %v5787 = vunpack.c.h.b16 %v4921
    %v5788 = vunpack.c.l.b16 %v4922
    %v5789 = vunpack.c.l.b16 %v4923
    %v5790 = vunpack.c.h.b16 %v4923
    %v5791 = vunpack.c.l.b16 %v4924
    %v5792 = vunpack.c.h.b16 %v4924
    %v5793 = vunpack.c.l.b16 %v4925
    %v5794 = vunpack.c.h.b16 %v4925
    %v5795 = vunpack.c.l.b16 %v4926
    %v5796 = vunpack.c.l.b16 %v4927
    %v5797 = vunpack.c.h.b16 %v4927
    %v5798 = vunpack.c.l.b16 %v4928
    %v5799 = vunpack.c.h.b16 %v4928
    %v5800 = vunpack.c.l.b16 %v4929
    %v5801 = vunpack.c.h.b16 %v4929
    %v5802 = vunpack.c.l.b16 %v4930
    %v5803 = vunpack.c.l.b16 %v4931
    %v5804 = vunpack.c.h.b16 %v4931
    %v5805 = vunpack.c.l.b16 %v4932
    %v5806 = vunpack.c.h.b16 %v4932
    %v5807 = vunpack.c.l.b16 %v4933
    %v5808 = vunpack.c.h.b16 %v4933
    %v5809 = vunpack.c.l.b16 %v4934
    %v5810 = vunpack.c.l.b16 %v4935
    %v5811 = vunpack.c.h.b16 %v4935
    %v5812 = vunpack.c.l.b16 %v4936
    %v5813 = vunpack.c.h.b16 %v4936
    %v5814 = vunpack.c.l.b16 %v4937
    %v5815 = vunpack.c.h.b16 %v4937
    %v5816 = vunpack.c.l.b16 %v4938
    %v5817 = vunpack.c.l.b16 %v4939
    %v5818 = vunpack.c.h.b16 %v4939
    %v5819 = vunpack.c.l.b16 %v4940
    %v5820 = vunpack.c.h.b16 %v4940
    %v5821 = vunpack.c.l.b16 %v4941
    %v5822 = vunpack.c.h.b16 %v4941
    %v5823 = vunpack.c.l.b16 %v4942
    %v5824 = vunpack.c.l.b16 %v4943
    %v5825 = vunpack.c.h.b16 %v4943
    %v5826 = vunpack.c.l.b16 %v4944
    %v5827 = vunpack.c.h.b16 %v4944
    %v5828 = vunpack.c.l.b16 %v4945
    %v5829 = vunpack.c.h.b16 %v4945
    %v5830 = vunpack.c.l.b16 %v4946
    %v5831 = vunpack.c.l.b16 %v4947
    %v5832 = vunpack.c.h.b16 %v4947
    %v5833 = vunpack.c.l.b16 %v4948
    %v5834 = vunpack.c.h.b16 %v4948
    %v5835 = vunpack.c.l.b16 %v4949
    %v5836 = vunpack.c.h.b16 %v4949
    %v5837 = vunpack.c.l.b16 %v4950
    %v5838 = vunpack.c.l.b16 %v4951
    %v5839 = vunpack.c.h.b16 %v4951
    %v5840 = vunpack.c.l.b16 %v4952
    %v5841 = vunpack.c.h.b16 %v4952
    %v5842 = vunpack.c.l.b16 %v4953
    %v5843 = vunpack.c.h.b16 %v4953
    %v5844 = vunpack.c.l.b16 %v4954
    %v5845 = vunpack.c.l.b16 %v4955
    %v5846 = vunpack.c.h.b16 %v4955
    %v5847 = vunpack.c.l.b16 %v4956
    %v5848 = vunpack.c.h.b16 %v4956
    %v5849 = vunpack.c.l.b16 %v4957
    %v5850 = vunpack.c.h.b16 %v4957
    %v5851 = vunpack.c.l.b16 %v4958
    %v5852 = vunpack.c.l.b16 %v4959
    %v5853 = vunpack.c.h.b16 %v4959
    %v5854 = vunpack.c.l.b16 %v4960
    %v5855 = vunpack.c.h.b16 %v4960
    %v5856 = vunpack.c.l.b16 %v4961
    %v5857 = vunpack.c.h.b16 %v4961
    %v5858 = vunpack.c.l.b16 %v4962
    %v5859 = vunpack.c.l.b16 %v4963
    %v5860 = vunpack.c.h.b16 %v4963
    %v5861 = vunpack.c.l.b16 %v4964
    %v5862 = vunpack.c.h.b16 %v4964
    %v5863 = vunpack.c.l.b16 %v4965
    %v5864 = vunpack.c.h.b16 %v4965
    %v5865 = vunpack.c.l.b16 %v4966
    %v5866 = vunpack.c.l.b16 %v4967
    %v5867 = vunpack.c.h.b16 %v4967
    %v5868 = vunpack.c.l.b16 %v4968
    %v5869 = vunpack.c.h.b16 %v4968
    %v5870 = vunpack.c.l.b16 %v4969
    %v5871 = vunpack.c.h.b16 %v4969
    %v5872 = vunpack.c.l.b16 %v4970
    %v5873 = vunpack.c.l.b16 %v4971
    %v5874 = vunpack.c.h.b16 %v4971
    %v5875 = vunpack.c.l.b16 %v4972
    %v5876 = vunpack.c.h.b16 %v4972
    %v5877 = vunpack.c.l.b16 %v4973
    %v5878 = vunpack.c.h.b16 %v4973
    %v5879 = vunpack.c.l.b16 %v4974
    %v5880 = vunpack.c.l.b16 %v4975
    %v5881 = vunpack.c.h.b16 %v4975
    %v5882 = vunpack.c.l.b16 %v4976
    %v5883 = vunpack.c.h.b16 %v4976
    %v5884 = vunpack.c.l.b16 %v4977
    %v5885 = vunpack.c.h.b16 %v4977
    %v5886 = vunpack.c.l.b16 %v4978
    %v5887 = vunpack.c.l.b16 %v4979
    %v5888 = vunpack.c.h.b16 %v4979
    %v5889 = vunpack.c.l.b16 %v4980
    %v5890 = vunpack.c.h.b16 %v4980
    %v5891 = vunpack.c.l.b16 %v4981
    %v5892 = vunpack.c.h.b16 %v4981
    %v5893 = vunpack.c.l.b16 %v4982
    %v5894 = vunpack.c.l.b16 %v4983
    %v5895 = vunpack.c.h.b16 %v4983
    %v5896 = vunpack.c.l.b16 %v4984
    %v5897 = vunpack.c.h.b16 %v4984
    %v5898 = vunpack.c.l.b16 %v4985
    %v5899 = vunpack.c.h.b16 %v4985
    %v5900 = vunpack.c.l.b16 %v4986
    %v5901 = vunpack.c.l.b16 %v4987
    %v5902 = vunpack.c.h.b16 %v4987
    %v5903 = vunpack.c.l.b16 %v4988
    %v5904 = vunpack.c.h.b16 %v4988
    %v5905 = vunpack.c.l.b16 %v4989
    %v5906 = vunpack.c.h.b16 %v4989
    %v5907 = vunpack.c.l.b16 %v4990
    %v5908 = vpack.c.b16 %v5355, %v5348
    %v5909 = vpack.c.b16 %v5356, %v5349
    %v5910 = vpack.c.b16 %v5357, %v5350
    %v5911 = vpack.c.b16 %v5358, %v5351
    %v5912 = vpack.c.b16 %v5359, %v5352
    %v5913 = vpack.c.b16 %v5360, %v5353
    %v5914 = vpack.c.b16 %v5361, %v5354
    %v5915 = vpack.c.b16 %v5369, %v5362
    %v5916 = vpack.c.b16 %v5370, %v5363
    %v5917 = vpack.c.b16 %v5371, %v5364
    %v5918 = vpack.c.b16 %v5372, %v5365
    %v5919 = vpack.c.b16 %v5373, %v5366
    %v5920 = vpack.c.b16 %v5374, %v5367
    %v5921 = vpack.c.b16 %v5375, %v5368
    %v5922 = vpack.c.b16 %v5383, %v5376
    %v5923 = vpack.c.b16 %v5384, %v5377
    %v5924 = vpack.c.b16 %v5385, %v5378
    %v5925 = vpack.c.b16 %v5386, %v5379
    %v5926 = vpack.c.b16 %v5387, %v5380
    %v5927 = vpack.c.b16 %v5388, %v5381
    %v5928 = vpack.c.b16 %v5389, %v5382
    %v5929 = vpack.c.b16 %v5397, %v5390
    %v5930 = vpack.c.b16 %v5398, %v5391
    %v5931 = vpack.c.b16 %v5399, %v5392
    %v5932 = vpack.c.b16 %v5400, %v5393
    %v5933 = vpack.c.b16 %v5401, %v5394
    %v5934 = vpack.c.b16 %v5402, %v5395
    %v5935 = vpack.c.b16 %v5403, %v5396
    %v5936 = vpack.c.b16 %v5411, %v5404
    %v5937 = vpack.c.b16 %v5412, %v5405
    %v5938 = vpack.c.b16 %v5413, %v5406
    %v5939 = vpack.c.b16 %v5414, %v5407
    %v5940 = vpack.c.b16 %v5415, %v5408
    %v5941 = vpack.c.b16 %v5416, %v5409
    %v5942 = vpack.c.b16 %v5417, %v5410
    %v5943 = vpack.c.b16 %v5425, %v5418
    %v5944 = vpack.c.b16 %v5426, %v5419
    %v5945 = vpack.c.b16 %v5427, %v5420
    %v5946 = vpack.c.b16 %v5428, %v5421
    %v5947 = vpack.c.b16 %v5429, %v5422
    %v5948 = vpack.c.b16 %v5430, %v5423
    %v5949 = vpack.c.b16 %v5431, %v5424
    %v5950 = vpack.c.b16 %v5439, %v5432
    %v5951 = vpack.c.b16 %v5440, %v5433
    %v5952 = vpack.c.b16 %v5441, %v5434
    %v5953 = vpack.c.b16 %v5442, %v5435
    %v5954 = vpack.c.b16 %v5443, %v5436
    %v5955 = vpack.c.b16 %v5444, %v5437
    %v5956 = vpack.c.b16 %v5445, %v5438
    %v5957 = vpack.c.b16 %v5453, %v5446
    %v5958 = vpack.c.b16 %v5454, %v5447
    %v5959 = vpack.c.b16 %v5455, %v5448
    %v5960 = vpack.c.b16 %v5456, %v5449
    %v5961 = vpack.c.b16 %v5457, %v5450
    %v5962 = vpack.c.b16 %v5458, %v5451
    %v5963 = vpack.c.b16 %v5459, %v5452
    %v5964 = vpack.c.b16 %v5467, %v5460
    %v5965 = vpack.c.b16 %v5468, %v5461
    %v5966 = vpack.c.b16 %v5469, %v5462
    %v5967 = vpack.c.b16 %v5470, %v5463
    %v5968 = vpack.c.b16 %v5471, %v5464
    %v5969 = vpack.c.b16 %v5472, %v5465
    %v5970 = vpack.c.b16 %v5473, %v5466
    %v5971 = vpack.c.b16 %v5481, %v5474
    %v5972 = vpack.c.b16 %v5482, %v5475
    %v5973 = vpack.c.b16 %v5483, %v5476
    %v5974 = vpack.c.b16 %v5484, %v5477
    %v5975 = vpack.c.b16 %v5485, %v5478
    %v5976 = vpack.c.b16 %v5486, %v5479
    %v5977 = vpack.c.b16 %v5487, %v5480
    %v5978 = vpack.c.b16 %v5495, %v5488
    %v5979 = vpack.c.b16 %v5496, %v5489
    %v5980 = vpack.c.b16 %v5497, %v5490
    %v5981 = vpack.c.b16 %v5498, %v5491
    %v5982 = vpack.c.b16 %v5499, %v5492
    %v5983 = vpack.c.b16 %v5500, %v5493
    %v5984 = vpack.c.b16 %v5501, %v5494
    %v5985 = vpack.c.b16 %v5509, %v5502
    %v5986 = vpack.c.b16 %v5510, %v5503
    %v5987 = vpack.c.b16 %v5511, %v5504
    %v5988 = vpack.c.b16 %v5512, %v5505
    %v5989 = vpack.c.b16 %v5513, %v5506
    %v5990 = vpack.c.b16 %v5514, %v5507
    %v5991 = vpack.c.b16 %v5515, %v5508
    %v5992 = vpack.c.b16 %v5523, %v5516
    %v5993 = vpack.c.b16 %v5524, %v5517
    %v5994 = vpack.c.b16 %v5525, %v5518
    %v5995 = vpack.c.b16 %v5526, %v5519
    %v5996 = vpack.c.b16 %v5527, %v5520
    %v5997 = vpack.c.b16 %v5528, %v5521
    %v5998 = vpack.c.b16 %v5529, %v5522
    %v5999 = vpack.c.b16 %v5537, %v5530
    %v6000 = vpack.c.b16 %v5538, %v5531
    %v6001 = vpack.c.b16 %v5539, %v5532
    %v6002 = vpack.c.b16 %v5540, %v5533
    %v6003 = vpack.c.b16 %v5541, %v5534
    %v6004 = vpack.c.b16 %v5542, %v5535
    %v6005 = vpack.c.b16 %v5543, %v5536
    %v6006 = vpack.c.b16 %v5551, %v5544
    %v6007 = vpack.c.b16 %v5552, %v5545
    %v6008 = vpack.c.b16 %v5553, %v5546
    %v6009 = vpack.c.b16 %v5554, %v5547
    %v6010 = vpack.c.b16 %v5555, %v5548
    %v6011 = vpack.c.b16 %v5556, %v5549
    %v6012 = vpack.c.b16 %v5557, %v5550
    %v6013 = vpack.c.b16 %v5565, %v5558
    %v6014 = vpack.c.b16 %v5566, %v5559
    %v6015 = vpack.c.b16 %v5567, %v5560
    %v6016 = vpack.c.b16 %v5568, %v5561
    %v6017 = vpack.c.b16 %v5569, %v5562
    %v6018 = vpack.c.b16 %v5570, %v5563
    %v6019 = vpack.c.b16 %v5571, %v5564
    %v6020 = vpack.c.b16 %v5579, %v5572
    %v6021 = vpack.c.b16 %v5580, %v5573
    %v6022 = vpack.c.b16 %v5581, %v5574
    %v6023 = vpack.c.b16 %v5582, %v5575
    %v6024 = vpack.c.b16 %v5583, %v5576
    %v6025 = vpack.c.b16 %v5584, %v5577
    %v6026 = vpack.c.b16 %v5585, %v5578
    %v6027 = vpack.c.b16 %v5593, %v5586
    %v6028 = vpack.c.b16 %v5594, %v5587
    %v6029 = vpack.c.b16 %v5595, %v5588
    %v6030 = vpack.c.b16 %v5596, %v5589
    %v6031 = vpack.c.b16 %v5597, %v5590
    %v6032 = vpack.c.b16 %v5598, %v5591
    %v6033 = vpack.c.b16 %v5599, %v5592
    %v6034 = vpack.c.b16 %v5607, %v5600
    %v6035 = vpack.c.b16 %v5608, %v5601
    %v6036 = vpack.c.b16 %v5609, %v5602
    %v6037 = vpack.c.b16 %v5610, %v5603
    %v6038 = vpack.c.b16 %v5611, %v5604
    %v6039 = vpack.c.b16 %v5612, %v5605
    %v6040 = vpack.c.b16 %v5613, %v5606
    %v6041 = vpack.c.b16 %v5621, %v5614
    %v6042 = vpack.c.b16 %v5622, %v5615
    %v6043 = vpack.c.b16 %v5623, %v5616
    %v6044 = vpack.c.b16 %v5624, %v5617
    %v6045 = vpack.c.b16 %v5625, %v5618
    %v6046 = vpack.c.b16 %v5626, %v5619
    %v6047 = vpack.c.b16 %v5627, %v5620
    %v6048 = vpack.c.b16 %v5635, %v5628
    %v6049 = vpack.c.b16 %v5636, %v5629
    %v6050 = vpack.c.b16 %v5637, %v5630
    %v6051 = vpack.c.b16 %v5638, %v5631
    %v6052 = vpack.c.b16 %v5639, %v5632
    %v6053 = vpack.c.b16 %v5640, %v5633
    %v6054 = vpack.c.b16 %v5641, %v5634
    %v6055 = vpack.c.b16 %v5649, %v5642
    %v6056 = vpack.c.b16 %v5650, %v5643
    %v6057 = vpack.c.b16 %v5651, %v5644
    %v6058 = vpack.c.b16 %v5652, %v5645
    %v6059 = vpack.c.b16 %v5653, %v5646
    %v6060 = vpack.c.b16 %v5654, %v5647
    %v6061 = vpack.c.b16 %v5655, %v5648
    %v6062 = vpack.c.b16 %v5663, %v5656
    %v6063 = vpack.c.b16 %v5664, %v5657
    %v6064 = vpack.c.b16 %v5665, %v5658
    %v6065 = vpack.c.b16 %v5666, %v5659
    %v6066 = vpack.c.b16 %v5667, %v5660
    %v6067 = vpack.c.b16 %v5668, %v5661
    %v6068 = vpack.c.b16 %v5669, %v5662
    %v6069 = vpack.c.b16 %v5677, %v5670
    %v6070 = vpack.c.b16 %v5678, %v5671
    %v6071 = vpack.c.b16 %v5679, %v5672
    %v6072 = vpack.c.b16 %v5680, %v5673
    %v6073 = vpack.c.b16 %v5681, %v5674
    %v6074 = vpack.c.b16 %v5682, %v5675
    %v6075 = vpack.c.b16 %v5683, %v5676
    %v6076 = vpack.c.b16 %v5691, %v5684
    %v6077 = vpack.c.b16 %v5692, %v5685
    %v6078 = vpack.c.b16 %v5693, %v5686
    %v6079 = vpack.c.b16 %v5694, %v5687
    %v6080 = vpack.c.b16 %v5695, %v5688
    %v6081 = vpack.c.b16 %v5696, %v5689
    %v6082 = vpack.c.b16 %v5697, %v5690
    %v6083 = vpack.c.b16 %v5705, %v5698
    %v6084 = vpack.c.b16 %v5706, %v5699
    %v6085 = vpack.c.b16 %v5707, %v5700
    %v6086 = vpack.c.b16 %v5708, %v5701
    %v6087 = vpack.c.b16 %v5709, %v5702
    %v6088 = vpack.c.b16 %v5710, %v5703
    %v6089 = vpack.c.b16 %v5711, %v5704
    %v6090 = vpack.c.b16 %v5719, %v5712
    %v6091 = vpack.c.b16 %v5720, %v5713
    %v6092 = vpack.c.b16 %v5721, %v5714
    %v6093 = vpack.c.b16 %v5722, %v5715
    %v6094 = vpack.c.b16 %v5723, %v5716
    %v6095 = vpack.c.b16 %v5724, %v5717
    %v6096 = vpack.c.b16 %v5725, %v5718
    %v6097 = vpack.c.b16 %v5733, %v5726
    %v6098 = vpack.c.b16 %v5734, %v5727
    %v6099 = vpack.c.b16 %v5735, %v5728
    %v6100 = vpack.c.b16 %v5736, %v5729
    %v6101 = vpack.c.b16 %v5737, %v5730
    %v6102 = vpack.c.b16 %v5738, %v5731
    %v6103 = vpack.c.b16 %v5739, %v5732
    %v6104 = vpack.c.b16 %v5747, %v5740
    %v6105 = vpack.c.b16 %v5748, %v5741
    %v6106 = vpack.c.b16 %v5749, %v5742
    %v6107 = vpack.c.b16 %v5750, %v5743
    %v6108 = vpack.c.b16 %v5751, %v5744
    %v6109 = vpack.c.b16 %v5752, %v5745
    %v6110 = vpack.c.b16 %v5753, %v5746
    %v6111 = vpack.c.b16 %v5761, %v5754
    %v6112 = vpack.c.b16 %v5762, %v5755
    %v6113 = vpack.c.b16 %v5763, %v5756
    %v6114 = vpack.c.b16 %v5764, %v5757
    %v6115 = vpack.c.b16 %v5765, %v5758
    %v6116 = vpack.c.b16 %v5766, %v5759
    %v6117 = vpack.c.b16 %v5767, %v5760
    %v6118 = vpack.c.b16 %v5775, %v5768
    %v6119 = vpack.c.b16 %v5776, %v5769
    %v6120 = vpack.c.b16 %v5777, %v5770
    %v6121 = vpack.c.b16 %v5778, %v5771
    %v6122 = vpack.c.b16 %v5779, %v5772
    %v6123 = vpack.c.b16 %v5780, %v5773
    %v6124 = vpack.c.b16 %v5781, %v5774
    %v6125 = vpack.c.b16 %v5789, %v5782
    %v6126 = vpack.c.b16 %v5790, %v5783
    %v6127 = vpack.c.b16 %v5791, %v5784
    %v6128 = vpack.c.b16 %v5792, %v5785
    %v6129 = vpack.c.b16 %v5793, %v5786
    %v6130 = vpack.c.b16 %v5794, %v5787
    %v6131 = vpack.c.b16 %v5795, %v5788
    %v6132 = vpack.c.b16 %v5803, %v5796
    %v6133 = vpack.c.b16 %v5804, %v5797
    %v6134 = vpack.c.b16 %v5805, %v5798
    %v6135 = vpack.c.b16 %v5806, %v5799
    %v6136 = vpack.c.b16 %v5807, %v5800
    %v6137 = vpack.c.b16 %v5808, %v5801
    %v6138 = vpack.c.b16 %v5809, %v5802
    %v6139 = vpack.c.b16 %v5817, %v5810
    %v6140 = vpack.c.b16 %v5818, %v5811
    %v6141 = vpack.c.b16 %v5819, %v5812
    %v6142 = vpack.c.b16 %v5820, %v5813
    %v6143 = vpack.c.b16 %v5821, %v5814
    %v6144 = vpack.c.b16 %v5822, %v5815
    %v6145 = vpack.c.b16 %v5823, %v5816
    %v6146 = vpack.c.b16 %v5831, %v5824
    %v6147 = vpack.c.b16 %v5832, %v5825
    %v6148 = vpack.c.b16 %v5833, %v5826
    %v6149 = vpack.c.b16 %v5834, %v5827
    %v6150 = vpack.c.b16 %v5835, %v5828
    %v6151 = vpack.c.b16 %v5836, %v5829
    %v6152 = vpack.c.b16 %v5837, %v5830
    %v6153 = vpack.c.b16 %v5845, %v5838
    %v6154 = vpack.c.b16 %v5846, %v5839
    %v6155 = vpack.c.b16 %v5847, %v5840
    %v6156 = vpack.c.b16 %v5848, %v5841
    %v6157 = vpack.c.b16 %v5849, %v5842
    %v6158 = vpack.c.b16 %v5850, %v5843
    %v6159 = vpack.c.b16 %v5851, %v5844
    %v6160 = vpack.c.b16 %v5859, %v5852
    %v6161 = vpack.c.b16 %v5860, %v5853
    %v6162 = vpack.c.b16 %v5861, %v5854
    %v6163 = vpack.c.b16 %v5862, %v5855
    %v6164 = vpack.c.b16 %v5863, %v5856
    %v6165 = vpack.c.b16 %v5864, %v5857
    %v6166 = vpack.c.b16 %v5865, %v5858
    %v6167 = vpack.c.b16 %v5873, %v5866
    %v6168 = vpack.c.b16 %v5874, %v5867
    %v6169 = vpack.c.b16 %v5875, %v5868
    %v6170 = vpack.c.b16 %v5876, %v5869
    %v6171 = vpack.c.b16 %v5877, %v5870
    %v6172 = vpack.c.b16 %v5878, %v5871
    %v6173 = vpack.c.b16 %v5879, %v5872
    %v6174 = vpack.c.b16 %v5887, %v5880
    %v6175 = vpack.c.b16 %v5888, %v5881
    %v6176 = vpack.c.b16 %v5889, %v5882
    %v6177 = vpack.c.b16 %v5890, %v5883
    %v6178 = vpack.c.b16 %v5891, %v5884
    %v6179 = vpack.c.b16 %v5892, %v5885
    %v6180 = vpack.c.b16 %v5893, %v5886
    %v6181 = vpack.c.b16 %v5901, %v5894
    %v6182 = vpack.c.b16 %v5902, %v5895
    %v6183 = vpack.c.b16 %v5903, %v5896
    %v6184 = vpack.c.b16 %v5904, %v5897
    %v6185 = vpack.c.b16 %v5905, %v5898
    %v6186 = vpack.c.b16 %v5906, %v5899
    %v6187 = vpack.c.b16 %v5907, %v5900
    %6468 = vmatprep.subr.bf16.mxu0 %v5958
    %6469 = vmatpush1.bf16.msra.mxu0 %v5957
    %6470 = vmatprep.subr.bf16.mxu0 %v5951
    %6471 = vmatpush1.bf16.msra.mxu0 %v5950
    %6472 = vmatprep.subr.bf16.mxu0 %v5944
    %6473 = vmatpush1.bf16.msra.mxu0 %v5943
    %6474 = vmatprep.subr.bf16.mxu0 %v5937
    %6475 = vmatpush1.bf16.msra.mxu0 %v5936
    %6476 = vmatprep.subr.bf16.mxu0 %v5930
    %6477 = vmatpush1.bf16.msra.mxu0 %v5929
    %6478 = vmatprep.subr.bf16.mxu0 %v5923
    %6479 = vmatpush1.bf16.msra.mxu0 %v5922
    %6480 = vmatprep.subr.bf16.mxu0 %v5916
    %6481 = vmatpush1.bf16.msra.mxu0 %v5915
    %6482 = vmatprep.subr.bf16.mxu0 %v5909
    %6483 = vmatpush1.bf16.msra.mxu0 %v5908
    %6484 = vmatprep.subr.bf16.mxu0 %v6014
    %6485 = vmatpush2.bf16.msra.mxu0 %v6013
    %6486 = vmatprep.subr.bf16.mxu0 %v6007
    %6487 = vmatpush2.bf16.msra.mxu0 %v6006
    %6488 = vmatprep.subr.bf16.mxu0 %v6000
    %6489 = vmatpush2.bf16.msra.mxu0 %v5999
    %6490 = vmatprep.subr.bf16.mxu0 %v5993
    %6491 = vmatpush2.bf16.msra.mxu0 %v5992
    %6492 = vmatprep.subr.bf16.mxu0 %v5986
    %6493 = vmatpush2.bf16.msra.mxu0 %v5985
    %6494 = vmatprep.subr.bf16.mxu0 %v5979
    %6495 = vmatpush2.bf16.msra.mxu0 %v5978
    %6496 = vmatprep.subr.bf16.mxu0 %v5972
    %6497 = vmatpush2.bf16.msra.mxu0 %v5971
    %6498 = vmatprep.subr.bf16.mxu0 %v5965
    %6499 = vmatpush2.bf16.msra.mxu0 %v5964
    %6500 = vmatprep.mubr.bf16.mxu0 %v4667
    %6501 = vmatmul.mubr.bf16.gmra.mxu0 %v4666
    %v6502 = vpop.f32.mrf.mxu0
    %v6503 = vadd.f32 %v4996, %v6502
    %v6504 = vpop.f32.mrf.mxu0
    %v6505 = vadd.f32 %v5000, %v6504
    %v6506 = vpop.f32.mrf.mxu0
    %v6507 = vpop.f32.mrf.mxu0
    %6508 = vdwg.mxu0
    %6509 = vmatprep.subr.bf16.mxu0 %v6070
    %6510 = vmatpush1.bf16.msra.mxu0 %v6069
    %6511 = vmatprep.subr.bf16.mxu0 %v6063
    %6512 = vmatpush1.bf16.msra.mxu0 %v6062
    %6513 = vmatprep.subr.bf16.mxu0 %v6056
    %6514 = vmatpush1.bf16.msra.mxu0 %v6055
    %6515 = vmatprep.subr.bf16.mxu0 %v6049
    %6516 = vmatpush1.bf16.msra.mxu0 %v6048
    %6517 = vmatprep.subr.bf16.mxu0 %v6042
    %6518 = vmatpush1.bf16.msra.mxu0 %v6041
    %6519 = vmatprep.subr.bf16.mxu0 %v6035
    %6520 = vmatpush1.bf16.msra.mxu0 %v6034
    %6521 = vmatprep.subr.bf16.mxu0 %v6028
    %6522 = vmatpush1.bf16.msra.mxu0 %v6027
    %6523 = vmatprep.subr.bf16.mxu0 %v6021
    %6524 = vmatpush1.bf16.msra.mxu0 %v6020
    %6525 = vmatprep.subr.bf16.mxu0 %v6126
    %6526 = vmatpush2.bf16.msra.mxu0 %v6125
    %6527 = vmatprep.subr.bf16.mxu0 %v6119
    %6528 = vmatpush2.bf16.msra.mxu0 %v6118
    %6529 = vmatprep.subr.bf16.mxu0 %v6112
    %6530 = vmatpush2.bf16.msra.mxu0 %v6111
    %6531 = vmatprep.subr.bf16.mxu0 %v6105
    %6532 = vmatpush2.bf16.msra.mxu0 %v6104
    %6533 = vmatprep.subr.bf16.mxu0 %v6098
    %6534 = vmatpush2.bf16.msra.mxu0 %v6097
    %6535 = vmatprep.subr.bf16.mxu0 %v6091
    %6536 = vmatpush2.bf16.msra.mxu0 %v6090
    %6537 = vmatprep.subr.bf16.mxu0 %v6084
    %6538 = vmatpush2.bf16.msra.mxu0 %v6083
    %6539 = vmatprep.subr.bf16.mxu0 %v6077
    %6540 = vmatpush2.bf16.msra.mxu0 %v6076
    %6541 = vmatprep.mubr.bf16.mxu0 %v4669
    %6542 = vmatmul.mubr.bf16.gmra.mxu0 %v4668
    %v6543 = vpop.f32.mrf.mxu0
    %v6544 = vadd.f32 %v6503, %v6543
    %v6545 = vpop.f32.mrf.mxu0
    %v6546 = vadd.f32 %v6505, %v6545
    %v6547 = vpop.f32.mrf.mxu0
    %v6548 = vpop.f32.mrf.mxu0
    %6549 = vdwg.mxu0
    %6550 = vmatprep.subr.bf16.mxu0 %v6182
    %6551 = vmatpush1.bf16.msra.mxu0 %v6181
    %6552 = vmatprep.subr.bf16.mxu0 %v6175
    %6553 = vmatpush1.bf16.msra.mxu0 %v6174
    %6554 = vmatprep.subr.bf16.mxu0 %v6168
    %6555 = vmatpush1.bf16.msra.mxu0 %v6167
    %6556 = vmatprep.subr.bf16.mxu0 %v6161
    %6557 = vmatpush1.bf16.msra.mxu0 %v6160
    %6558 = vmatprep.subr.bf16.mxu0 %v6154
    %6559 = vmatpush1.bf16.msra.mxu0 %v6153
    %6560 = vmatprep.subr.bf16.mxu0 %v6147
    %6561 = vmatpush1.bf16.msra.mxu0 %v6146
    %6562 = vmatprep.subr.bf16.mxu0 %v6140
    %6563 = vmatpush1.bf16.msra.mxu0 %v6139
    %6564 = vmatprep.subr.bf16.mxu0 %v6133
    %6565 = vmatpush1.bf16.msra.mxu0 %v6132
    %6566 = vmatprep.subr.bf16.mxu0 0
    %6567 = vmatpush2.bf16.msra.mxu0 0
    %6568 = vmatprep.subr.bf16.mxu0 0
    %6569 = vmatpush2.bf16.msra.mxu0 0
    %6570 = vmatprep.subr.bf16.mxu0 0
    %6571 = vmatpush2.bf16.msra.mxu0 0
    %6572 = vmatprep.subr.bf16.mxu0 0
    %6573 = vmatpush2.bf16.msra.mxu0 0
    %6574 = vmatprep.subr.bf16.mxu0 0
    %6575 = vmatpush2.bf16.msra.mxu0 0
    %6576 = vmatprep.subr.bf16.mxu0 0
    %6577 = vmatpush2.bf16.msra.mxu0 0
    %6578 = vmatprep.subr.bf16.mxu0 0
    %6579 = vmatpush2.bf16.msra.mxu0 0
    %6580 = vmatprep.subr.bf16.mxu0 0
    %6581 = vmatpush2.bf16.msra.mxu0 0
    %6582 = vmatprep.mubr.bf16.mxu0 0
    %6583 = vmatmul.mubr.bf16.gmra.mxu0 %v4670
    %v6584 = vpop.f32.mrf.mxu0
    %v6585 = vadd.f32 %v6544, %v6584
    %v6586 = vpop.f32.mrf.mxu0
    %v6587 = vadd.f32 %v6546, %v6586
    %v6588 = vpop.f32.mrf.mxu0
    %v6589 = vpop.f32.mrf.mxu0
    %6590 = vdwg.mxu0
    %6591 = vmatprep.subr.bf16.mxu0 %v5960
    %6592 = vmatpush1.bf16.msra.mxu0 %v5959
    %6593 = vmatprep.subr.bf16.mxu0 %v5953
    %6594 = vmatpush1.bf16.msra.mxu0 %v5952
    %6595 = vmatprep.subr.bf16.mxu0 %v5946
    %6596 = vmatpush1.bf16.msra.mxu0 %v5945
    %6597 = vmatprep.subr.bf16.mxu0 %v5939
    %6598 = vmatpush1.bf16.msra.mxu0 %v5938
    %6599 = vmatprep.subr.bf16.mxu0 %v5932
    %6600 = vmatpush1.bf16.msra.mxu0 %v5931
    %6601 = vmatprep.subr.bf16.mxu0 %v5925
    %6602 = vmatpush1.bf16.msra.mxu0 %v5924
    %6603 = vmatprep.subr.bf16.mxu0 %v5918
    %6604 = vmatpush1.bf16.msra.mxu0 %v5917
    %6605 = vmatprep.subr.bf16.mxu0 %v5911
    %6606 = vmatpush1.bf16.msra.mxu0 %v5910
    %6607 = vmatprep.subr.bf16.mxu0 %v6016
    %6608 = vmatpush2.bf16.msra.mxu0 %v6015
    %6609 = vmatprep.subr.bf16.mxu0 %v6009
    %6610 = vmatpush2.bf16.msra.mxu0 %v6008
    %6611 = vmatprep.subr.bf16.mxu0 %v6002
    %6612 = vmatpush2.bf16.msra.mxu0 %v6001
    %6613 = vmatprep.subr.bf16.mxu0 %v5995
    %6614 = vmatpush2.bf16.msra.mxu0 %v5994
    %6615 = vmatprep.subr.bf16.mxu0 %v5988
    %6616 = vmatpush2.bf16.msra.mxu0 %v5987
    %6617 = vmatprep.subr.bf16.mxu0 %v5981
    %6618 = vmatpush2.bf16.msra.mxu0 %v5980
    %6619 = vmatprep.subr.bf16.mxu0 %v5974
    %6620 = vmatpush2.bf16.msra.mxu0 %v5973
    %6621 = vmatprep.subr.bf16.mxu0 %v5967
    %6622 = vmatpush2.bf16.msra.mxu0 %v5966
    %6623 = vmatprep.mubr.bf16.mxu0 %v4667
    %6624 = vmatmul.mubr.bf16.gmra.mxu0 %v4666
    %v6625 = vpop.f32.mrf.mxu0
    %v6626 = vadd.f32 %v5004, %v6625
    %v6627 = vpop.f32.mrf.mxu0
    %v6628 = vadd.f32 %v5008, %v6627
    %v6629 = vpop.f32.mrf.mxu0
    %v6630 = vpop.f32.mrf.mxu0
    %6631 = vdwg.mxu0
    %6632 = vmatprep.subr.bf16.mxu0 %v6072
    %6633 = vmatpush1.bf16.msra.mxu0 %v6071
    %6634 = vmatprep.subr.bf16.mxu0 %v6065
    %6635 = vmatpush1.bf16.msra.mxu0 %v6064
    %6636 = vmatprep.subr.bf16.mxu0 %v6058
    %6637 = vmatpush1.bf16.msra.mxu0 %v6057
    %6638 = vmatprep.subr.bf16.mxu0 %v6051
    %6639 = vmatpush1.bf16.msra.mxu0 %v6050
    %6640 = vmatprep.subr.bf16.mxu0 %v6044
    %6641 = vmatpush1.bf16.msra.mxu0 %v6043
    %6642 = vmatprep.subr.bf16.mxu0 %v6037
    %6643 = vmatpush1.bf16.msra.mxu0 %v6036
    %6644 = vmatprep.subr.bf16.mxu0 %v6030
    %6645 = vmatpush1.bf16.msra.mxu0 %v6029
    %6646 = vmatprep.subr.bf16.mxu0 %v6023
    %6647 = vmatpush1.bf16.msra.mxu0 %v6022
    %6648 = vmatprep.subr.bf16.mxu0 %v6128
    %6649 = vmatpush2.bf16.msra.mxu0 %v6127
    %6650 = vmatprep.subr.bf16.mxu0 %v6121
    %6651 = vmatpush2.bf16.msra.mxu0 %v6120
    %6652 = vmatprep.subr.bf16.mxu0 %v6114
    %6653 = vmatpush2.bf16.msra.mxu0 %v6113
    %6654 = vmatprep.subr.bf16.mxu0 %v6107
    %6655 = vmatpush2.bf16.msra.mxu0 %v6106
    %6656 = vmatprep.subr.bf16.mxu0 %v6100
    %6657 = vmatpush2.bf16.msra.mxu0 %v6099
    %6658 = vmatprep.subr.bf16.mxu0 %v6093
    %6659 = vmatpush2.bf16.msra.mxu0 %v6092
    %6660 = vmatprep.subr.bf16.mxu0 %v6086
    %6661 = vmatpush2.bf16.msra.mxu0 %v6085
    %6662 = vmatprep.subr.bf16.mxu0 %v6079
    %6663 = vmatpush2.bf16.msra.mxu0 %v6078
    %6664 = vmatprep.mubr.bf16.mxu0 %v4669
    %6665 = vmatmul.mubr.bf16.gmra.mxu0 %v4668
    %v6666 = vpop.f32.mrf.mxu0
    %v6667 = vadd.f32 %v6626, %v6666
    %v6668 = vpop.f32.mrf.mxu0
    %v6669 = vadd.f32 %v6628, %v6668
    %v6670 = vpop.f32.mrf.mxu0
    %v6671 = vpop.f32.mrf.mxu0
    %6672 = vdwg.mxu0
    %6673 = vmatprep.subr.bf16.mxu0 %v6184
    %6674 = vmatpush1.bf16.msra.mxu0 %v6183
    %6675 = vmatprep.subr.bf16.mxu0 %v6177
    %6676 = vmatpush1.bf16.msra.mxu0 %v6176
    %6677 = vmatprep.subr.bf16.mxu0 %v6170
    %6678 = vmatpush1.bf16.msra.mxu0 %v6169
    %6679 = vmatprep.subr.bf16.mxu0 %v6163
    %6680 = vmatpush1.bf16.msra.mxu0 %v6162
    %6681 = vmatprep.subr.bf16.mxu0 %v6156
    %6682 = vmatpush1.bf16.msra.mxu0 %v6155
    %6683 = vmatprep.subr.bf16.mxu0 %v6149
    %6684 = vmatpush1.bf16.msra.mxu0 %v6148
    %6685 = vmatprep.subr.bf16.mxu0 %v6142
    %6686 = vmatpush1.bf16.msra.mxu0 %v6141
    %6687 = vmatprep.subr.bf16.mxu0 %v6135
    %6688 = vmatpush1.bf16.msra.mxu0 %v6134
    %6689 = vmatprep.subr.bf16.mxu0 0
    %6690 = vmatpush2.bf16.msra.mxu0 0
    %6691 = vmatprep.subr.bf16.mxu0 0
    %6692 = vmatpush2.bf16.msra.mxu0 0
    %6693 = vmatprep.subr.bf16.mxu0 0
    %6694 = vmatpush2.bf16.msra.mxu0 0
    %6695 = vmatprep.subr.bf16.mxu0 0
    %6696 = vmatpush2.bf16.msra.mxu0 0
    %6697 = vmatprep.subr.bf16.mxu0 0
    %6698 = vmatpush2.bf16.msra.mxu0 0
    %6699 = vmatprep.subr.bf16.mxu0 0
    %6700 = vmatpush2.bf16.msra.mxu0 0
    %6701 = vmatprep.subr.bf16.mxu0 0
    %6702 = vmatpush2.bf16.msra.mxu0 0
    %6703 = vmatprep.subr.bf16.mxu0 0
    %6704 = vmatpush2.bf16.msra.mxu0 0
    %6705 = vmatprep.mubr.bf16.mxu0 0
    %6706 = vmatmul.mubr.bf16.gmra.mxu0 %v4670
    %v6707 = vpop.f32.mrf.mxu0
    %v6708 = vadd.f32 %v6667, %v6707
    %v6709 = vpop.f32.mrf.mxu0
    %v6710 = vadd.f32 %v6669, %v6709
    %v6711 = vpop.f32.mrf.mxu0
    %v6712 = vpop.f32.mrf.mxu0
    %6713 = vdwg.mxu0
    %6714 = vmatprep.subr.bf16.mxu0 %v5962
    %6715 = vmatpush1.bf16.msra.mxu0 %v5961
    %6716 = vmatprep.subr.bf16.mxu0 %v5955
    %6717 = vmatpush1.bf16.msra.mxu0 %v5954
    %6718 = vmatprep.subr.bf16.mxu0 %v5948
    %6719 = vmatpush1.bf16.msra.mxu0 %v5947
    %6720 = vmatprep.subr.bf16.mxu0 %v5941
    %6721 = vmatpush1.bf16.msra.mxu0 %v5940
    %6722 = vmatprep.subr.bf16.mxu0 %v5934
    %6723 = vmatpush1.bf16.msra.mxu0 %v5933
    %6724 = vmatprep.subr.bf16.mxu0 %v5927
    %6725 = vmatpush1.bf16.msra.mxu0 %v5926
    %6726 = vmatprep.subr.bf16.mxu0 %v5920
    %6727 = vmatpush1.bf16.msra.mxu0 %v5919
    %6728 = vmatprep.subr.bf16.mxu0 %v5913
    %6729 = vmatpush1.bf16.msra.mxu0 %v5912
    %6730 = vmatprep.subr.bf16.mxu0 %v6018
    %6731 = vmatpush2.bf16.msra.mxu0 %v6017
    %6732 = vmatprep.subr.bf16.mxu0 %v6011
    %6733 = vmatpush2.bf16.msra.mxu0 %v6010
    %6734 = vmatprep.subr.bf16.mxu0 %v6004
    %6735 = vmatpush2.bf16.msra.mxu0 %v6003
    %6736 = vmatprep.subr.bf16.mxu0 %v5997
    %6737 = vmatpush2.bf16.msra.mxu0 %v5996
    %6738 = vmatprep.subr.bf16.mxu0 %v5990
    %6739 = vmatpush2.bf16.msra.mxu0 %v5989
    %6740 = vmatprep.subr.bf16.mxu0 %v5983
    %6741 = vmatpush2.bf16.msra.mxu0 %v5982
    %6742 = vmatprep.subr.bf16.mxu0 %v5976
    %6743 = vmatpush2.bf16.msra.mxu0 %v5975
    %6744 = vmatprep.subr.bf16.mxu0 %v5969
    %6745 = vmatpush2.bf16.msra.mxu0 %v5968
    %6746 = vmatprep.mubr.bf16.mxu0 %v4667
    %6747 = vmatmul.mubr.bf16.gmra.mxu0 %v4666
    %v6748 = vpop.f32.mrf.mxu0
    %v6749 = vadd.f32 %v5012, %v6748
    %v6750 = vpop.f32.mrf.mxu0
    %v6751 = vadd.f32 %v5016, %v6750
    %v6752 = vpop.f32.mrf.mxu0
    %v6753 = vpop.f32.mrf.mxu0
    %6754 = vdwg.mxu0
    %6755 = vmatprep.subr.bf16.mxu0 %v6074
    %6756 = vmatpush1.bf16.msra.mxu0 %v6073
    %6757 = vmatprep.subr.bf16.mxu0 %v6067
    %6758 = vmatpush1.bf16.msra.mxu0 %v6066
    %6759 = vmatprep.subr.bf16.mxu0 %v6060
    %6760 = vmatpush1.bf16.msra.mxu0 %v6059
    %6761 = vmatprep.subr.bf16.mxu0 %v6053
    %6762 = vmatpush1.bf16.msra.mxu0 %v6052
    %6763 = vmatprep.subr.bf16.mxu0 %v6046
    %6764 = vmatpush1.bf16.msra.mxu0 %v6045
    %6765 = vmatprep.subr.bf16.mxu0 %v6039
    %6766 = vmatpush1.bf16.msra.mxu0 %v6038
    %6767 = vmatprep.subr.bf16.mxu0 %v6032
    %6768 = vmatpush1.bf16.msra.mxu0 %v6031
    %6769 = vmatprep.subr.bf16.mxu0 %v6025
    %6770 = vmatpush1.bf16.msra.mxu0 %v6024
    %6771 = vmatprep.subr.bf16.mxu0 %v6130
    %6772 = vmatpush2.bf16.msra.mxu0 %v6129
    %6773 = vmatprep.subr.bf16.mxu0 %v6123
    %6774 = vmatpush2.bf16.msra.mxu0 %v6122
    %6775 = vmatprep.subr.bf16.mxu0 %v6116
    %6776 = vmatpush2.bf16.msra.mxu0 %v6115
    %6777 = vmatprep.subr.bf16.mxu0 %v6109
    %6778 = vmatpush2.bf16.msra.mxu0 %v6108
    %6779 = vmatprep.subr.bf16.mxu0 %v6102
    %6780 = vmatpush2.bf16.msra.mxu0 %v6101
    %6781 = vmatprep.subr.bf16.mxu0 %v6095
    %6782 = vmatpush2.bf16.msra.mxu0 %v6094
    %6783 = vmatprep.subr.bf16.mxu0 %v6088
    %6784 = vmatpush2.bf16.msra.mxu0 %v6087
    %6785 = vmatprep.subr.bf16.mxu0 %v6081
    %6786 = vmatpush2.bf16.msra.mxu0 %v6080
    %6787 = vmatprep.mubr.bf16.mxu0 %v4669
    %6788 = vmatmul.mubr.bf16.gmra.mxu0 %v4668
    %v6789 = vpop.f32.mrf.mxu0
    %v6790 = vadd.f32 %v6749, %v6789
    %v6791 = vpop.f32.mrf.mxu0
    %v6792 = vadd.f32 %v6751, %v6791
    %v6793 = vpop.f32.mrf.mxu0
    %v6794 = vpop.f32.mrf.mxu0
    %6795 = vdwg.mxu0
    %6796 = vmatprep.subr.bf16.mxu0 %v6186
    %6797 = vmatpush1.bf16.msra.mxu0 %v6185
    %6798 = vmatprep.subr.bf16.mxu0 %v6179
    %6799 = vmatpush1.bf16.msra.mxu0 %v6178
    %6800 = vmatprep.subr.bf16.mxu0 %v6172
    %6801 = vmatpush1.bf16.msra.mxu0 %v6171
    %6802 = vmatprep.subr.bf16.mxu0 %v6165
    %6803 = vmatpush1.bf16.msra.mxu0 %v6164
    %6804 = vmatprep.subr.bf16.mxu0 %v6158
    %6805 = vmatpush1.bf16.msra.mxu0 %v6157
    %6806 = vmatprep.subr.bf16.mxu0 %v6151
    %6807 = vmatpush1.bf16.msra.mxu0 %v6150
    %6808 = vmatprep.subr.bf16.mxu0 %v6144
    %6809 = vmatpush1.bf16.msra.mxu0 %v6143
    %6810 = vmatprep.subr.bf16.mxu0 %v6137
    %6811 = vmatpush1.bf16.msra.mxu0 %v6136
    %6812 = vmatprep.subr.bf16.mxu0 0
    %6813 = vmatpush2.bf16.msra.mxu0 0
    %6814 = vmatprep.subr.bf16.mxu0 0
    %6815 = vmatpush2.bf16.msra.mxu0 0
    %6816 = vmatprep.subr.bf16.mxu0 0
    %6817 = vmatpush2.bf16.msra.mxu0 0
    %6818 = vmatprep.subr.bf16.mxu0 0
    %6819 = vmatpush2.bf16.msra.mxu0 0
    %6820 = vmatprep.subr.bf16.mxu0 0
    %6821 = vmatpush2.bf16.msra.mxu0 0
    %6822 = vmatprep.subr.bf16.mxu0 0
    %6823 = vmatpush2.bf16.msra.mxu0 0
    %6824 = vmatprep.subr.bf16.mxu0 0
    %6825 = vmatpush2.bf16.msra.mxu0 0
    %6826 = vmatprep.subr.bf16.mxu0 0
    %6827 = vmatpush2.bf16.msra.mxu0 0
    %6828 = vmatprep.mubr.bf16.mxu0 0
    %6829 = vmatmul.mubr.bf16.gmra.mxu0 %v4670
    %v6830 = vpop.f32.mrf.mxu0
    %v6831 = vadd.f32 %v6790, %v6830
    %v6832 = vpop.f32.mrf.mxu0
    %v6833 = vadd.f32 %v6792, %v6832
    %v6834 = vpop.f32.mrf.mxu0
    %v6835 = vpop.f32.mrf.mxu0
    %6836 = vdwg.mxu0
    %6837 = vmatprep.subr.bf16.mxu0 0
    %6838 = vmatpush1.bf16.msra.mxu0 %v5963
    %6839 = vmatprep.subr.bf16.mxu0 0
    %6840 = vmatpush1.bf16.msra.mxu0 %v5956
    %6841 = vmatprep.subr.bf16.mxu0 0
    %6842 = vmatpush1.bf16.msra.mxu0 %v5949
    %6843 = vmatprep.subr.bf16.mxu0 0
    %6844 = vmatpush1.bf16.msra.mxu0 %v5942
    %6845 = vmatprep.subr.bf16.mxu0 0
    %6846 = vmatpush1.bf16.msra.mxu0 %v5935
    %6847 = vmatprep.subr.bf16.mxu0 0
    %6848 = vmatpush1.bf16.msra.mxu0 %v5928
    %6849 = vmatprep.subr.bf16.mxu0 0
    %6850 = vmatpush1.bf16.msra.mxu0 %v5921
    %6851 = vmatprep.subr.bf16.mxu0 0
    %6852 = vmatpush1.bf16.msra.mxu0 %v5914
    %6853 = vmatprep.subr.bf16.mxu0 0
    %6854 = vmatpush2.bf16.msra.mxu0 %v6019
    %6855 = vmatprep.subr.bf16.mxu0 0
    %6856 = vmatpush2.bf16.msra.mxu0 %v6012
    %6857 = vmatprep.subr.bf16.mxu0 0
    %6858 = vmatpush2.bf16.msra.mxu0 %v6005
    %6859 = vmatprep.subr.bf16.mxu0 0
    %6860 = vmatpush2.bf16.msra.mxu0 %v5998
    %6861 = vmatprep.subr.bf16.mxu0 0
    %6862 = vmatpush2.bf16.msra.mxu0 %v5991
    %6863 = vmatprep.subr.bf16.mxu0 0
    %6864 = vmatpush2.bf16.msra.mxu0 %v5984
    %6865 = vmatprep.subr.bf16.mxu0 0
    %6866 = vmatpush2.bf16.msra.mxu0 %v5977
    %6867 = vmatprep.subr.bf16.mxu0 0
    %6868 = vmatpush2.bf16.msra.mxu0 %v5970
    %6869 = vmatprep.mubr.bf16.mxu0 %v4667
    %6870 = vmatmul.mubr.bf16.gmra.mxu0 %v4666
    %v6871 = vpop.f32.mrf.mxu0
    %v6872 = vadd.f32 %v5020, %v6871
    %v6873 = vpop.f32.mrf.mxu0
    %v6874 = vpop.f32.mrf.mxu0
    %v6875 = vpop.f32.mrf.mxu0
    %6876 = vdwg.mxu0
    %6877 = vmatprep.subr.bf16.mxu0 0
    %6878 = vmatpush1.bf16.msra.mxu0 %v6075
    %6879 = vmatprep.subr.bf16.mxu0 0
    %6880 = vmatpush1.bf16.msra.mxu0 %v6068
    %6881 = vmatprep.subr.bf16.mxu0 0
    %6882 = vmatpush1.bf16.msra.mxu0 %v6061
    %6883 = vmatprep.subr.bf16.mxu0 0
    %6884 = vmatpush1.bf16.msra.mxu0 %v6054
    %6885 = vmatprep.subr.bf16.mxu0 0
    %6886 = vmatpush1.bf16.msra.mxu0 %v6047
    %6887 = vmatprep.subr.bf16.mxu0 0
    %6888 = vmatpush1.bf16.msra.mxu0 %v6040
    %6889 = vmatprep.subr.bf16.mxu0 0
    %6890 = vmatpush1.bf16.msra.mxu0 %v6033
    %6891 = vmatprep.subr.bf16.mxu0 0
    %6892 = vmatpush1.bf16.msra.mxu0 %v6026
    %6893 = vmatprep.subr.bf16.mxu0 0
    %6894 = vmatpush2.bf16.msra.mxu0 %v6131
    %6895 = vmatprep.subr.bf16.mxu0 0
    %6896 = vmatpush2.bf16.msra.mxu0 %v6124
    %6897 = vmatprep.subr.bf16.mxu0 0
    %6898 = vmatpush2.bf16.msra.mxu0 %v6117
    %6899 = vmatprep.subr.bf16.mxu0 0
    %6900 = vmatpush2.bf16.msra.mxu0 %v6110
    %6901 = vmatprep.subr.bf16.mxu0 0
    %6902 = vmatpush2.bf16.msra.mxu0 %v6103
    %6903 = vmatprep.subr.bf16.mxu0 0
    %6904 = vmatpush2.bf16.msra.mxu0 %v6096
    %6905 = vmatprep.subr.bf16.mxu0 0
    %6906 = vmatpush2.bf16.msra.mxu0 %v6089
    %6907 = vmatprep.subr.bf16.mxu0 0
    %6908 = vmatpush2.bf16.msra.mxu0 %v6082
    %6909 = vmatprep.mubr.bf16.mxu0 %v4669
    %6910 = vmatmul.mubr.bf16.gmra.mxu0 %v4668
    %v6911 = vpop.f32.mrf.mxu0
    %v6912 = vadd.f32 %v6872, %v6911
    %v6913 = vpop.f32.mrf.mxu0
    %v6914 = vpop.f32.mrf.mxu0
    %v6915 = vpop.f32.mrf.mxu0
    %6916 = vdwg.mxu0
    %6917 = vmatprep.subr.bf16.mxu0 0
    %6918 = vmatpush1.bf16.msra.mxu0 %v6187
    %6919 = vmatprep.subr.bf16.mxu0 0
    %6920 = vmatpush1.bf16.msra.mxu0 %v6180
    %6921 = vmatprep.subr.bf16.mxu0 0
    %6922 = vmatpush1.bf16.msra.mxu0 %v6173
    %6923 = vmatprep.subr.bf16.mxu0 0
    %6924 = vmatpush1.bf16.msra.mxu0 %v6166
    %6925 = vmatprep.subr.bf16.mxu0 0
    %6926 = vmatpush1.bf16.msra.mxu0 %v6159
    %6927 = vmatprep.subr.bf16.mxu0 0
    %6928 = vmatpush1.bf16.msra.mxu0 %v6152
    %6929 = vmatprep.subr.bf16.mxu0 0
    %6930 = vmatpush1.bf16.msra.mxu0 %v6145
    %6931 = vmatprep.subr.bf16.mxu0 0
    %6932 = vmatpush1.bf16.msra.mxu0 %v6138
    %6933 = vmatprep.subr.bf16.mxu0 0
    %6934 = vmatpush2.bf16.msra.mxu0 0
    %6935 = vmatprep.subr.bf16.mxu0 0
    %6936 = vmatpush2.bf16.msra.mxu0 0
    %6937 = vmatprep.subr.bf16.mxu0 0
    %6938 = vmatpush2.bf16.msra.mxu0 0
    %6939 = vmatprep.subr.bf16.mxu0 0
    %6940 = vmatpush2.bf16.msra.mxu0 0
    %6941 = vmatprep.subr.bf16.mxu0 0
    %6942 = vmatpush2.bf16.msra.mxu0 0
    %6943 = vmatprep.subr.bf16.mxu0 0
    %6944 = vmatpush2.bf16.msra.mxu0 0
    %6945 = vmatprep.subr.bf16.mxu0 0
    %6946 = vmatpush2.bf16.msra.mxu0 0
    %6947 = vmatprep.subr.bf16.mxu0 0
    %6948 = vmatpush2.bf16.msra.mxu0 0
    %6949 = vmatprep.mubr.bf16.mxu0 0
    %6950 = vmatmul.mubr.bf16.gmra.mxu0 %v4670
    %v6951 = vpop.f32.mrf.mxu0
    %v6952 = vadd.f32 %v6912, %v6951
    %v6953 = vpop.f32.mrf.mxu0
    %v6954 = vpop.f32.mrf.mxu0
    %v6955 = vpop.f32.mrf.mxu0
    %6956 = vdwg.mxu0
    %v6957 = vxor.u32 %v6585, 2147483648
    %v6958 = vxor.u32 %v6587, 2147483648
    %v6959 = vxor.u32 %v6708, 2147483648
    %v6960 = vxor.u32 %v6710, 2147483648
    %v6961 = vxor.u32 %v6831, 2147483648
    %v6962 = vxor.u32 %v6833, 2147483648
    %v6963 = vxor.u32 %v6952, 2147483648
    %v6964 = vmul.f32 %v6957, 1.442695
    %v6965 = vpow.pop %v6964
    %v6966 = vmul.f32 %v6958, 1.442695
    %v6967 = vpow.pop %v6966
    %v6968 = vmul.f32 %v6959, 1.442695
    %v6969 = vpow.pop %v6968
    %v6970 = vmul.f32 %v6960, 1.442695
    %v6971 = vpow.pop %v6970
    %v6972 = vmul.f32 %v6961, 1.442695
    %v6973 = vpow.pop %v6972
    %v6974 = vmul.f32 %v6962, 1.442695
    %v6975 = vpow.pop %v6974
    %v6976 = vmul.f32 %v6963, 1.442695
    %v6977 = vpow.pop %v6976
    %v6978 = vadd.f32 %v6965, 1.0
    %v6979 = vadd.f32 %v6967, 1.0
    %v6980 = vadd.f32 %v6969, 1.0
    %v6981 = vadd.f32 %v6971, 1.0
    %v6982 = vadd.f32 %v6973, 1.0
    %v6983 = vadd.f32 %v6975, 1.0
    %v6984 = vadd.f32 %v6977, 1.0
    %v6985 = vrcp.pop %v6978
    %v6986 = vmul.f32 1.0, %v6985
    %v6987 = vrcp.pop %v6979
    %v6988 = vmul.f32 1.0, %v6987
    %v6989 = vrcp.pop %v6980
    %v6990 = vmul.f32 1.0, %v6989
    %v6991 = vrcp.pop %v6981
    %v6992 = vmul.f32 1.0, %v6991
    %v6993 = vrcp.pop %v6982
    %v6994 = vmul.f32 1.0, %v6993
    %v6995 = vrcp.pop %v6983
    %v6996 = vmul.f32 1.0, %v6995
    %v6997 = vrcp.pop %v6984
    %v6998 = vmul.f32 1.0, %v6997
    %v6999 = vpack.c.bf16 %v6986, %v6986
    %v7000 = vpack.c.bf16 %v6988, %v6988
    %v7001 = vpack.c.bf16 %v6990, %v6990
    %v7002 = vpack.c.bf16 %v6992, %v6992
    %v7003 = vpack.c.bf16 %v6994, %v6994
    %v7004 = vpack.c.bf16 %v6996, %v6996
    %v7005 = vpack.c.bf16 %v6998, %v6998
    %v7013 = vunpack.c.l.b16 %v6999
    %v7014 = vunpack.c.l.b16 %v7000
    %v7015 = vunpack.c.l.b16 %v7001
    %v7016 = vunpack.c.l.b16 %v7002
    %v7017 = vunpack.c.l.b16 %v7003
    %v7018 = vunpack.c.l.b16 %v7004
    %v7019 = vunpack.c.l.b16 %v7005
    %v7020 = vpack.c.b16 %v7014, %v7013
    %v7021 = vpack.c.b16 %v7016, %v7015
    %v7022 = vpack.c.b16 %v7018, %v7017
    %v7023 = vpack.c.b16 %v7019, %v7019
    %7028 = vst [vmem:[#allocation2] sm:$0xff] %v7020
    %7029 = vst [vmem:[#allocation2 + $0x8] sm:$0xff] %v7021
    %7030 = vst [vmem:[#allocation2 + $0x10] sm:$0xff] %v7022
    %vm7031 = vcmask 125952
    %7032 = vst.msk [vmem:[#allocation2 + $0x18] sm:$0xf] %vm7031, %v7023
    %vm7033 = vcmask 31744
    %7034 = vst.msk [vmem:[%s15] sm:$0xff] %vm7033, %v3502
    // Predicated region
    $region58: #{vae_forward.1} parent=1 // pred_check
      _
    $region59: #{vae_forward.1} parent=1 // pred_check_branch
      %7036 = sbr.rel (0) target = $region61
    $region60: #{vae_forward.1} parent=1 // pred_region
      %s7038 = ssub.s32 448, 448
      %7039 = vsyncadd [#allocation3], %s7038
      %s7041 = sshll.u32 [#allocation2], 4
      %s7042 = int_to_ptr.vmem [resolvable:$true] %s7041
      %7044 = dma.vmem_to_hbm [thread:$0]  %s7042, 448, %s14, [#allocation3]
    $region61: #{vae_forward.1} parent=1 // pred_fallthru
      _
    // Predicated region
    $region62: #{vae_forward.1} parent=1 // pred_check
      _
    $region63: #{vae_forward.1} parent=1 // pred_check_branch
      %7046 = sbr.rel (0) target = $region65
    $region64: #{vae_forward.1} parent=1 // pred_region
      _
    $region65: #{vae_forward.1} parent=1 // pred_fallthru
      _
    // Predicated region
    $region66: #{vae_forward.1} parent=1 // pred_check
      _
    $region67: #{vae_forward.1} parent=1 // pred_check_branch
      %7048 = sbr.rel (0) target = $region69
    $region68: #{vae_forward.1} parent=1 // pred_region
      %7049 = dma.done [#allocation3], 448
    $region69: #{vae_forward.1} parent=1 // pred_fallthru
      _
    // Predicated region
    $region70: #{vae_forward.1} parent=1 // pred_check
      _
    $region71: #{vae_forward.1} parent=1 // pred_check_branch
      %7051 = sbr.rel (0) target = $region73
    $region72: #{vae_forward.1} parent=1 // pred_region
      _
    $region73: #{vae_forward.1} parent=1 // pred_fallthru
      _
    %7052 = vsyncpa [#allocation3], 1

</llo_original>
